<compile_context>
chip_gen: v6e
topology: v6e:2x2x1
jax: 0.10.0
libtpu: 0.0.40
codegen_flags: <defaults>
</compile_context>

<pallas_src>
import functools

import jax
import jax.numpy as jnp
from jax.experimental import pallas as pl
from jax.experimental.pallas import tpu as pltpu


LANES = 128  # all channel/output dims are zero-padded to a full lane width


def _round_up(x, m):
    return (x + m - 1) // m * m


# ----------------------------------------------------------------------------
# Kernel 1: conv (im2col matmul) + bias + ReLU + MaxPool3d(2) epilogue
# ----------------------------------------------------------------------------
def _conv_relu_maxpool_kernel(a_ref, w_ref, b_ref, o_ref):
    # a_ref: (8, tmp, K) bf16  -- axis 0 = the 8 members of each 2x2x2 window
    # w_ref: (K, 128)  bf16    -- Cout zero-padded to 128 lanes (resident)
    # b_ref: (1, 128)  f32     -- resident
    # o_ref: (tmp, 128) bf16   -- pooled, lane-dense
    w = w_ref[...]
    # Static unroll: 8 MXU pushes; max-tree runs on the VPU (free alongside MXU).
    pooled = jnp.dot(a_ref[0], w, preferred_element_type=jnp.float32)
    for j in range(1, 8):
        pooled = jnp.maximum(
            pooled, jnp.dot(a_ref[j], w, preferred_element_type=jnp.float32))
    # bias + ReLU hoisted out of the max (monotonicity): one add + one max per tile.
    o_ref[...] = jnp.maximum(pooled + b_ref[...], 0.0).astype(o_ref.dtype)


def conv_relu_maxpool(a, w_pad, b_pad, *, tmp=128):
    """a: (8, Mp, K) window-member-major im2col rows -> (Mp, 128) pooled bf16."""
    _, Mp, K = a.shape
    tmp = min(tmp, _round_up(Mp, 8))          # sweepable; 8*tmp rows per grid step
    Mp_pad = _round_up(Mp, tmp)
    if Mp_pad != Mp:
        # Padded rows produce garbage pooled values but are sliced off below.
        a = jnp.pad(a, ((0, 0), (0, Mp_pad - Mp), (0, 0)))
    grid = (Mp_pad // tmp,)
    out = pl.pallas_call(
        _conv_relu_maxpool_kernel,
        out_shape=jax.ShapeDtypeStruct((Mp_pad, LANES), jnp.bfloat16),
        grid_spec=pltpu.PrefetchScalarGridSpec(
            num_scalar_prefetch=0,
            grid=grid,
            in_specs=[
                pl.BlockSpec((8, tmp, K), lambda i: (0, i, 0)),
                pl.BlockSpec((K, LANES), lambda i: (0, 0)),   # resident weights
                pl.BlockSpec((1, LANES), lambda i: (0, 0)),   # resident bias
            ],
            out_specs=pl.BlockSpec((tmp, LANES), lambda i: (i, 0)),
        ),
        compiler_params=pltpu.CompilerParams(
            dimension_semantics=("parallel",)),
    )(a.astype(jnp.bfloat16), w_pad.astype(jnp.bfloat16), b_pad)
    return out[:Mp]


# ----------------------------------------------------------------------------
# Kernel 2: conv (im2col matmul) + bias + ReLU + global-avg-pool + fc1 + ReLU
# ----------------------------------------------------------------------------
def _conv_relu_avgpool_fc_kernel(a_ref, w_ref, b_ref, wf_ref, bf_ref,
                                 o_ref, acc_ref, *, rows_valid, needs_mask):
    # a_ref : (1, tm, K) bf16 im2col rows of one sample
    # w_ref : (K, 128)  bf16 conv weights (Cout padded to 128)
    # b_ref : (1, 128)  f32  conv bias
    # wf_ref: (128, 128) f32 fc1 weights (in/out padded to 128)
    # bf_ref: (1, 128)  f32  fc1 bias
    # o_ref : (1, 1, 128) f32 ; acc_ref: (1, 128) f32 per-sample channel sums
    m = pl.program_id(1)

    @pl.when(m == 0)
    def _():
        acc_ref[...] = jnp.zeros_like(acc_ref)

    y = jnp.dot(a_ref[0], w_ref[...], preferred_element_type=jnp.float32)
    y = jnp.maximum(y + b_ref[...], 0.0)                       # (tm, 128)
    if needs_mask:                                             # static: only if padded
        tm = y.shape[0]
        row = m * tm + jax.lax.broadcasted_iota(jnp.int32, (tm, 1), 0)
        y = jnp.where(row < rows_valid, y, 0.0)
    acc_ref[...] += jnp.sum(y, axis=0, keepdims=True)          # (1, 128)

    @pl.when(m == pl.num_programs(1) - 1)
    def _():
        pooled = acc_ref[...] * (1.0 / float(rows_valid))      # global avg pool
        z = jnp.dot(pooled, wf_ref[...], preferred_element_type=jnp.float32)
        o_ref[0] = jnp.maximum(z + bf_ref[...], 0.0)           # fc1 + ReLU


def conv_relu_avgpool_fc(a, w_pad, b_pad, wf_pad, bf_pad, *, tm=512):
    """a: (N, Mp, K) per-sample im2col rows -> (N, 128) fused features (f32)."""
    N, Mp, K = a.shape
    tm = min(tm, _round_up(Mp, 8))
    Mp_pad = _round_up(Mp, tm)
    if Mp_pad != Mp:
        a = jnp.pad(a, ((0, 0), (0, Mp_pad - Mp), (0, 0)))
    grid = (N, Mp_pad // tm)
    kernel = functools.partial(_conv_relu_avgpool_fc_kernel,
                               rows_valid=Mp, needs_mask=(Mp_pad != Mp))
    out = pl.pallas_call(
        kernel,
        out_shape=jax.ShapeDtypeStruct((N, 1, LANES), jnp.float32),
        grid_spec=pltpu.PrefetchScalarGridSpec(
            num_scalar_prefetch=0,
            grid=grid,
            in_specs=[
                pl.BlockSpec((1, tm, K), lambda n, m: (n, m, 0)),
                pl.BlockSpec((K, LANES), lambda n, m: (0, 0)),
                pl.BlockSpec((1, LANES), lambda n, m: (0, 0)),
                pl.BlockSpec((LANES, LANES), lambda n, m: (0, 0)),
                pl.BlockSpec((1, LANES), lambda n, m: (0, 0)),
            ],
            out_specs=pl.BlockSpec((1, 1, LANES), lambda n, m: (n, 0, 0)),
            scratch_shapes=[pltpu.VMEM((1, LANES), jnp.float32)],
        ),
        compiler_params=pltpu.CompilerParams(
            dimension_semantics=("parallel", "arbitrary")),
    )(a.astype(jnp.bfloat16), w_pad.astype(jnp.bfloat16), b_pad, wf_pad, bf_pad)
    return out.reshape(N, LANES)


# ----------------------------------------------------------------------------
# XLA glue: im2col (channels-last), weight/bias lane padding
# ----------------------------------------------------------------------------
def im2col3d_ndhwc(x, k=3, pad=1):
    """x: (N, D, H, W, C) -> (N, D, H, W, C*k^3), feature order (c, kz, ky, kx)."""
    N, D, H, W, C = x.shape
    xp = jnp.pad(x, ((0, 0), (pad, pad), (pad, pad), (pad, pad), (0, 0)))
    patches = []
    for dz in range(k):
        for dy in range(k):
            for dx in range(k):
                patches.append(xp[:, dz:dz + D, dy:dy + H, dx:dx + W, :])
    p = jnp.stack(patches, axis=-1)                    # (N, D, H, W, C, k^3)
    return p.reshape(N, D, H, W, C * k * k * k)        # (c, kz, ky, kx) order


def _pad_conv_weight(w):
    """(Cout, Cin, 3,3,3) -> (Cin*27, 128) lane-dense, zero-padded weight matrix."""
    cout = w.shape[0]
    wm = w.reshape(cout, -1).T.astype(jnp.float32)     # (Cin*27, Cout)
    return jnp.pad(wm, ((0, 0), (0, LANES - cout)))


def _pad_bias(b):
    return jnp.pad(b.astype(jnp.float32), (0, LANES - b.shape[0])).reshape(1, LANES)


# ----------------------------------------------------------------------------
# VideoEncoder forward (fc2 == Identity, params frozen / inference-only)
# ----------------------------------------------------------------------------
def video_encoder_forward(x, params):
    # x: (N, Cin, T, H, W) in PyTorch NCDHW layout.
    N, _, T, H, W = x.shape
    T2, H2, W2 = T // 2, H // 2, W // 2     # MaxPool3d(2) floors odd dims

    # ---- Stage 1: conv1 + ReLU + MaxPool3d(2), one fused Pallas kernel ----
    x_ndhwc = jnp.transpose(x, (0, 2, 3, 4, 1)).astype(jnp.bfloat16)
    p1 = im2col3d_ndhwc(x_ndhwc)                         # (N, T, H, W, 81)
    K1 = p1.shape[-1]
    p1 = p1[:, :2 * T2, :2 * H2, :2 * W2, :]             # crop odd dims (floor)
    p1 = p1.reshape(N, T2, 2, H2, 2, W2, 2, K1)
    p1 = p1.transpose(2, 4, 6, 0, 1, 3, 5, 7)            # window member -> axis 0
    a1 = p1.reshape(8, N * T2 * H2 * W2, K1)
    y1 = conv_relu_maxpool(a1, _pad_conv_weight(params["w1"]),
                           _pad_bias(params["b1"]))      # (N*T2*H2*W2, 128) bf16
    c1 = params["w1"].shape[0]
    y1 = y1.reshape(N, T2, H2, W2, LANES)[..., :c1]      # (N, T2, H2, W2, 8)

    # ---- Stage 2: conv2 + ReLU + AdaptiveAvgPool3d(1) + fc1 + ReLU, fused ----
    p2 = im2col3d_ndhwc(y1)                              # (N, T2, H2, W2, 216)
    K2 = p2.shape[-1]
    a2 = p2.reshape(N, T2 * H2 * W2, K2)
    wf = params["w_fc1"].T.astype(jnp.float32)           # (16, 32), PyTorch (out,in)
    wf = jnp.pad(wf, ((0, LANES - wf.shape[0]), (0, LANES - wf.shape[1])))
    y2 = conv_relu_avgpool_fc(a2, _pad_conv_weight(params["w2"]),
                              _pad_bias(params["b2"]), wf,
                              _pad_bias(params["b_fc1"]))  # (N, 128)
    return y2[:, :params["w_fc1"].shape[0]]              # fc2 is Identity -> (N, 32)


def init_params(key):
    k1, k2, k3 = jax.random.split(key, 3)

    def kaiming(k, shape, fan_in):
        return jax.random.normal(k, shape, jnp.float32) / jnp.sqrt(fan_in)

    return {
        "w1": kaiming(k1, (8, 3, 3, 3, 3), 3 * 27),
        "b1": jnp.zeros((8,), jnp.float32),
        "w2": kaiming(k2, (16, 8, 3, 3, 3), 8 * 27),
        "b2": jnp.zeros((16,), jnp.float32),
        "w_fc1": kaiming(k3, (32, 16), 16),               # PyTorch Linear: (out, in)
        "b_fc1": jnp.zeros((32,), jnp.float32),
    }


if __name__ == "__main__":
    key = jax.random.PRNGKey(0)
    pkey, xkey = jax.random.split(key)
    params = init_params(pkey)

    # Small video batch: (N=2, C=3, T=8, H=16, W=16), NCDHW like PyTorch.
    x = jax.random.normal(xkey, (2, 3, 8, 16, 16), jnp.float32)

    out = jax.jit(video_encoder_forward)(x, params)
    out = jax.block_until_ready(out)
    assert out.shape == (2, 32) and out.dtype == jnp.float32
    assert bool(jnp.all(jnp.isfinite(out)))
    print("KERNEL_OK")
</pallas_src>

<mosaic_0001>
module attributes {stable_mosaic.version = 11 : i64} {
  func.func @_conv_relu_maxpool_kernel(%arg0: i32, %arg1: memref<8x128x81xbf16, #tpu.memory_space<vmem>>, %arg2: memref<81x128xbf16, #tpu.memory_space<vmem>>, %arg3: memref<1x128xf32, #tpu.memory_space<vmem>>, %arg4: memref<128x128xbf16, #tpu.memory_space<vmem>>) attributes {dimension_semantics = [#tpu.dimension_semantics<parallel>], iteration_bounds = array<i64: 4>, scalar_prefetch = 0 : i64, scratch_operands = 0 : i64, tpu.core_type = #tpu.core_type<tc>, window_params = [{transform_indices = @transform_0, window_bounds = array<i64: 8, 128, 81>}, {pipeline_mode = #tpu.pipeline_mode<synchronous>, transform_indices = @transform_1, window_bounds = array<i64: 81, 128>}, {pipeline_mode = #tpu.pipeline_mode<synchronous>, transform_indices = @transform_2, window_bounds = array<i64: 1, 128>}, {transform_indices = @transform_3, window_bounds = array<i64: 128, 128>}]} {
    %c0 = arith.constant 0 : index
    %c0_0 = arith.constant 0 : index
    %0 = vector.load %arg2[%c0, %c0_0] : memref<81x128xbf16, #tpu.memory_space<vmem>>, vector<81x128xbf16>
    %c0_1 = arith.constant 0 : index
    %c0_2 = arith.constant 0 : index
    %c0_3 = arith.constant 0 : index
    %1 = vector.load %arg1[%c0_1, %c0_2, %c0_3] : memref<8x128x81xbf16, #tpu.memory_space<vmem>>, vector<1x128x81xbf16>
    %2 = vector.shape_cast %1 : vector<1x128x81xbf16> to vector<128x81xbf16>
    %cst = arith.constant dense<0.000000e+00> : vector<128x128xf32>
    %3 = tpu.matmul %2, %0, %cst {dimension_numbers = #tpu.dot_dimension_numbers<[1], [0], [0], [1], [0, 0, 1, 1], [], []>} : vector<128x81xbf16>, vector<81x128xbf16>, vector<128x128xf32> -> vector<128x128xf32>
    %c1 = arith.constant 1 : index
    %c0_4 = arith.constant 0 : index
    %c0_5 = arith.constant 0 : index
    %4 = vector.load %arg1[%c1, %c0_4, %c0_5] : memref<8x128x81xbf16, #tpu.memory_space<vmem>>, vector<1x128x81xbf16>
    %5 = vector.shape_cast %4 : vector<1x128x81xbf16> to vector<128x81xbf16>
    %cst_6 = arith.constant dense<0.000000e+00> : vector<128x128xf32>
    %6 = tpu.matmul %5, %0, %cst_6 {dimension_numbers = #tpu.dot_dimension_numbers<[1], [0], [0], [1], [0, 0, 1, 1], [], []>} : vector<128x81xbf16>, vector<81x128xbf16>, vector<128x128xf32> -> vector<128x128xf32>
    %7 = arith.maximumf %3, %6 : vector<128x128xf32>
    %c2 = arith.constant 2 : index
    %c0_7 = arith.constant 0 : index
    %c0_8 = arith.constant 0 : index
    %8 = vector.load %arg1[%c2, %c0_7, %c0_8] : memref<8x128x81xbf16, #tpu.memory_space<vmem>>, vector<1x128x81xbf16>
    %9 = vector.shape_cast %8 : vector<1x128x81xbf16> to vector<128x81xbf16>
    %cst_9 = arith.constant dense<0.000000e+00> : vector<128x128xf32>
    %10 = tpu.matmul %9, %0, %cst_9 {dimension_numbers = #tpu.dot_dimension_numbers<[1], [0], [0], [1], [0, 0, 1, 1], [], []>} : vector<128x81xbf16>, vector<81x128xbf16>, vector<128x128xf32> -> vector<128x128xf32>
    %11 = arith.maximumf %7, %10 : vector<128x128xf32>
    %c3 = arith.constant 3 : index
    %c0_10 = arith.constant 0 : index
    %c0_11 = arith.constant 0 : index
    %12 = vector.load %arg1[%c3, %c0_10, %c0_11] : memref<8x128x81xbf16, #tpu.memory_space<vmem>>, vector<1x128x81xbf16>
    %13 = vector.shape_cast %12 : vector<1x128x81xbf16> to vector<128x81xbf16>
    %cst_12 = arith.constant dense<0.000000e+00> : vector<128x128xf32>
    %14 = tpu.matmul %13, %0, %cst_12 {dimension_numbers = #tpu.dot_dimension_numbers<[1], [0], [0], [1], [0, 0, 1, 1], [], []>} : vector<128x81xbf16>, vector<81x128xbf16>, vector<128x128xf32> -> vector<128x128xf32>
    %15 = arith.maximumf %11, %14 : vector<128x128xf32>
    %c4 = arith.constant 4 : index
    %c0_13 = arith.constant 0 : index
    %c0_14 = arith.constant 0 : index
    %16 = vector.load %arg1[%c4, %c0_13, %c0_14] : memref<8x128x81xbf16, #tpu.memory_space<vmem>>, vector<1x128x81xbf16>
    %17 = vector.shape_cast %16 : vector<1x128x81xbf16> to vector<128x81xbf16>
    %cst_15 = arith.constant dense<0.000000e+00> : vector<128x128xf32>
    %18 = tpu.matmul %17, %0, %cst_15 {dimension_numbers = #tpu.dot_dimension_numbers<[1], [0], [0], [1], [0, 0, 1, 1], [], []>} : vector<128x81xbf16>, vector<81x128xbf16>, vector<128x128xf32> -> vector<128x128xf32>
    %19 = arith.maximumf %15, %18 : vector<128x128xf32>
    %c5 = arith.constant 5 : index
    %c0_16 = arith.constant 0 : index
    %c0_17 = arith.constant 0 : index
    %20 = vector.load %arg1[%c5, %c0_16, %c0_17] : memref<8x128x81xbf16, #tpu.memory_space<vmem>>, vector<1x128x81xbf16>
    %21 = vector.shape_cast %20 : vector<1x128x81xbf16> to vector<128x81xbf16>
    %cst_18 = arith.constant dense<0.000000e+00> : vector<128x128xf32>
    %22 = tpu.matmul %21, %0, %cst_18 {dimension_numbers = #tpu.dot_dimension_numbers<[1], [0], [0], [1], [0, 0, 1, 1], [], []>} : vector<128x81xbf16>, vector<81x128xbf16>, vector<128x128xf32> -> vector<128x128xf32>
    %23 = arith.maximumf %19, %22 : vector<128x128xf32>
    %c6 = arith.constant 6 : index
    %c0_19 = arith.constant 0 : index
    %c0_20 = arith.constant 0 : index
    %24 = vector.load %arg1[%c6, %c0_19, %c0_20] : memref<8x128x81xbf16, #tpu.memory_space<vmem>>, vector<1x128x81xbf16>
    %25 = vector.shape_cast %24 : vector<1x128x81xbf16> to vector<128x81xbf16>
    %cst_21 = arith.constant dense<0.000000e+00> : vector<128x128xf32>
    %26 = tpu.matmul %25, %0, %cst_21 {dimension_numbers = #tpu.dot_dimension_numbers<[1], [0], [0], [1], [0, 0, 1, 1], [], []>} : vector<128x81xbf16>, vector<81x128xbf16>, vector<128x128xf32> -> vector<128x128xf32>
    %27 = arith.maximumf %23, %26 : vector<128x128xf32>
    %c7 = arith.constant 7 : index
    %c0_22 = arith.constant 0 : index
    %c0_23 = arith.constant 0 : index
    %28 = vector.load %arg1[%c7, %c0_22, %c0_23] : memref<8x128x81xbf16, #tpu.memory_space<vmem>>, vector<1x128x81xbf16>
    %29 = vector.shape_cast %28 : vector<1x128x81xbf16> to vector<128x81xbf16>
    %cst_24 = arith.constant dense<0.000000e+00> : vector<128x128xf32>
    %30 = tpu.matmul %29, %0, %cst_24 {dimension_numbers = #tpu.dot_dimension_numbers<[1], [0], [0], [1], [0, 0, 1, 1], [], []>} : vector<128x81xbf16>, vector<81x128xbf16>, vector<128x128xf32> -> vector<128x128xf32>
    %31 = arith.maximumf %27, %30 : vector<128x128xf32>
    %c0_25 = arith.constant 0 : index
    %c0_26 = arith.constant 0 : index
    %32 = vector.load %arg3[%c0_25, %c0_26] : memref<1x128xf32, #tpu.memory_space<vmem>>, vector<1x128xf32>
    %33 = vector.broadcast %32 : vector<1x128xf32> to vector<128x128xf32>
    %34 = arith.addf %31, %33 : vector<128x128xf32>
    %cst_27 = arith.constant 0.000000e+00 : f32
    %35 = vector.broadcast %cst_27 : f32 to vector<128x128xf32>
    %36 = arith.maximumf %34, %35 : vector<128x128xf32>
    %37 = arith.truncf %36 : vector<128x128xf32> to vector<128x128xbf16>
    %c0_28 = arith.constant 0 : index
    %c0_29 = arith.constant 0 : index
    %38 = vector.load %arg4[%c0_28, %c0_29] : memref<128x128xbf16, #tpu.memory_space<vmem>>, vector<128x128xbf16>
    tpu.vector_store %arg4[%c0_28, %c0_29], %37 {strides = array<i32>} : memref<128x128xbf16, #tpu.memory_space<vmem>>, vector<128x128xbf16>,
    return
  }
  func.func @transform_0(%arg0: i32) -> (i32, i32, i32) {
    %c0_i32 = arith.constant 0 : i32
    %c0_i32_0 = arith.constant 0 : i32
    %c0_i32_1 = arith.constant 0 : i32
    return %c0_i32, %arg0, %c0_i32_0 : i32, i32, i32
  }
  func.func @transform_1(%arg0: i32) -> (i32, i32) {
    %c0_i32 = arith.constant 0 : i32
    %c0_i32_0 = arith.constant 0 : i32
    %c0_i32_1 = arith.constant 0 : i32
    return %c0_i32, %c0_i32_0 : i32, i32
  }
  func.func @transform_2(%arg0: i32) -> (i32, i32) {
    %c0_i32 = arith.constant 0 : i32
    %c0_i32_0 = arith.constant 0 : i32
    %c0_i32_1 = arith.constant 0 : i32
    return %c0_i32, %c0_i32_0 : i32, i32
  }
  func.func @transform_3(%arg0: i32) -> (i32, i32) {
    %c0_i32 = arith.constant 0 : i32
    %c0_i32_0 = arith.constant 0 : i32
    return %arg0, %c0_i32 : i32, i32
  }
}

module attributes {stable_mosaic.version = 11 : i64} {
  func.func @_conv_relu_avgpool_fc_kernel(%arg0: i32, %arg1: i32, %arg2: memref<1x256x216xbf16, #tpu.memory_space<vmem>>, %arg3: memref<216x128xbf16, #tpu.memory_space<vmem>>, %arg4: memref<1x128xf32, #tpu.memory_space<vmem>>, %arg5: memref<128x128xf32, #tpu.memory_space<vmem>>, %arg6: memref<1x128xf32, #tpu.memory_space<vmem>>, %arg7: memref<1x1x128xf32, #tpu.memory_space<vmem>>, %arg8: memref<1x128xf32, #tpu.memory_space<vmem>>) attributes {dimension_semantics = [#tpu.dimension_semantics<parallel>, #tpu.dimension_semantics<arbitrary>], iteration_bounds = array<i64: 2, 1>, scalar_prefetch = 0 : i64, scratch_operands = 1 : i64, tpu.core_type = #tpu.core_type<tc>, window_params = [{transform_indices = @transform_0, window_bounds = array<i64: 1, 256, 216>}, {pipeline_mode = #tpu.pipeline_mode<synchronous>, transform_indices = @transform_1, window_bounds = array<i64: 216, 128>}, {pipeline_mode = #tpu.pipeline_mode<synchronous>, transform_indices = @transform_2, window_bounds = array<i64: 1, 128>}, {pipeline_mode = #tpu.pipeline_mode<synchronous>, transform_indices = @transform_3, window_bounds = array<i64: 128, 128>}, {pipeline_mode = #tpu.pipeline_mode<synchronous>, transform_indices = @transform_4, window_bounds = array<i64: 1, 128>}, {transform_indices = @transform_5, window_bounds = array<i64: 1, 1, 128>}]} {
    %c0_i32 = arith.constant 0 : i32
    %0 = arith.cmpi eq, %arg1, %c0_i32 : i32
    %1 = arith.extui %0 : i1 to i32
    %c0_i32_0 = arith.constant 0 : i32
    %2 = arith.cmpi ne, %1, %c0_i32_0 : i32
    scf.if %2 {
      %cst_15 = arith.constant 0.000000e+00 : f32
      %20 = vector.broadcast %cst_15 : f32 to vector<1x128xf32>
      %c0_16 = arith.constant 0 : index
      %c0_17 = arith.constant 0 : index
      %21 = vector.load %arg8[%c0_16, %c0_17] : memref<1x128xf32, #tpu.memory_space<vmem>>, vector<1x128xf32>
      tpu.vector_store %arg8[%c0_16, %c0_17], %20 {strides = array<i32>} : memref<1x128xf32, #tpu.memory_space<vmem>>, vector<1x128xf32>,
    } else {
    }
    %c0 = arith.constant 0 : index
    %c0_1 = arith.constant 0 : index
    %c0_2 = arith.constant 0 : index
    %3 = vector.load %arg2[%c0, %c0_1, %c0_2] : memref<1x256x216xbf16, #tpu.memory_space<vmem>>, vector<1x256x216xbf16>
    %4 = vector.shape_cast %3 : vector<1x256x216xbf16> to vector<256x216xbf16>
    %c0_3 = arith.constant 0 : index
    %c0_4 = arith.constant 0 : index
    %5 = vector.load %arg3[%c0_3, %c0_4] : memref<216x128xbf16, #tpu.memory_space<vmem>>, vector<216x128xbf16>
    %cst = arith.constant dense<0.000000e+00> : vector<256x128xf32>
    %6 = tpu.matmul %4, %5, %cst {dimension_numbers = #tpu.dot_dimension_numbers<[1], [0], [0], [1], [0, 0, 1, 1], [], []>} : vector<256x216xbf16>, vector<216x128xbf16>, vector<256x128xf32> -> vector<256x128xf32>
    %c0_5 = arith.constant 0 : index
    %c0_6 = arith.constant 0 : index
    %7 = vector.load %arg4[%c0_5, %c0_6] : memref<1x128xf32, #tpu.memory_space<vmem>>, vector<1x128xf32>
    %8 = vector.broadcast %7 : vector<1x128xf32> to vector<256x128xf32>
    %9 = arith.addf %6, %8 : vector<256x128xf32>
    %cst_7 = arith.constant 0.000000e+00 : f32
    %10 = vector.broadcast %cst_7 : f32 to vector<256x128xf32>
    %11 = arith.maximumf %9, %10 : vector<256x128xf32>
    %c0_8 = arith.constant 0 : index
    %c0_9 = arith.constant 0 : index
    %12 = vector.load %arg8[%c0_8, %c0_9] : memref<1x128xf32, #tpu.memory_space<vmem>>, vector<1x128xf32>
    %cst_10 = arith.constant dense<0.000000e+00> : vector<128xf32>
    %13 = vector.multi_reduction <add>, %11, %cst_10 [0] : vector<256x128xf32> to vector<128xf32>
    %14 = vector.shape_cast %13 : vector<128xf32> to vector<1x128xf32>
    %15 = arith.addf %12, %14 : vector<1x128xf32>
    %c0_11 = arith.constant 0 : index
    %c0_12 = arith.constant 0 : index
    %16 = vector.load %arg8[%c0_11, %c0_12] : memref<1x128xf32, #tpu.memory_space<vmem>>, vector<1x128xf32>
    tpu.vector_store %arg8[%c0_11, %c0_12], %15 {strides = array<i32>} : memref<1x128xf32, #tpu.memory_space<vmem>>, vector<1x128xf32>,
    %c0_i32_13 = arith.constant 0 : i32
    %17 = arith.cmpi eq, %arg1, %c0_i32_13 : i32
    %18 = arith.extui %17 : i1 to i32
    %c0_i32_14 = arith.constant 0 : i32
    %19 = arith.cmpi ne, %18, %c0_i32_14 : i32
    scf.if %19 {
      %c0_15 = arith.constant 0 : index
      %c0_16 = arith.constant 0 : index
      %20 = vector.load %arg8[%c0_15, %c0_16] : memref<1x128xf32, #tpu.memory_space<vmem>>, vector<1x128xf32>
      %cst_17 = arith.constant 3.906250e-03 : f32
      %21 = vector.broadcast %cst_17 : f32 to vector<1x128xf32>
      %22 = arith.mulf %20, %21 : vector<1x128xf32>
      %c0_18 = arith.constant 0 : index
      %c0_19 = arith.constant 0 : index
      %23 = vector.load %arg5[%c0_18, %c0_19] : memref<128x128xf32, #tpu.memory_space<vmem>>, vector<128x128xf32>
      %cst_20 = arith.constant dense<0.000000e+00> : vector<1x128xf32>
      %24 = tpu.matmul %22, %23, %cst_20 {dimension_numbers = #tpu.dot_dimension_numbers<[1], [0], [0], [1], [0, 0, 1, 1], [], []>} : vector<1x128xf32>, vector<128x128xf32>, vector<1x128xf32> -> vector<1x128xf32>
      %c0_21 = arith.constant 0 : index
      %c0_22 = arith.constant 0 : index
      %25 = vector.load %arg6[%c0_21, %c0_22] : memref<1x128xf32, #tpu.memory_space<vmem>>, vector<1x128xf32>
      %26 = arith.addf %24, %25 : vector<1x128xf32>
      %cst_23 = arith.constant 0.000000e+00 : f32
      %27 = vector.broadcast %cst_23 : f32 to vector<1x128xf32>
      %28 = arith.maximumf %26, %27 : vector<1x128xf32>
      %c0_24 = arith.constant 0 : index
      %c0_25 = arith.constant 0 : index
      %c0_26 = arith.constant 0 : index
      %29 = vector.load %arg7[%c0_24, %c0_25, %c0_26] : memref<1x1x128xf32, #tpu.memory_space<vmem>>, vector<1x1x128xf32>
      %30 = vector.shape_cast %29 : vector<1x1x128xf32> to vector<1x128xf32>
      %31 = vector.shape_cast %28 : vector<1x128xf32> to vector<1x1x128xf32>
      tpu.vector_store %arg7[%c0_24, %c0_25, %c0_26], %31 {strides = array<i32>} : memref<1x1x128xf32, #tpu.memory_space<vmem>>, vector<1x1x128xf32>,
    } else {
    }
    return
  }
  func.func @transform_0(%arg0: i32, %arg1: i32) -> (i32, i32, i32) {
    %c0_i32 = arith.constant 0 : i32
    %c0_i32_0 = arith.constant 0 : i32
    return %arg0, %arg1, %c0_i32 : i32, i32, i32
  }
  func.func @transform_1(%arg0: i32, %arg1: i32) -> (i32, i32) {
    %c0_i32 = arith.constant 0 : i32
    %c0_i32_0 = arith.constant 0 : i32
    %c0_i32_1 = arith.constant 0 : i32
    return %c0_i32, %c0_i32_0 : i32, i32
  }
  func.func @transform_2(%arg0: i32, %arg1: i32) -> (i32, i32) {
    %c0_i32 = arith.constant 0 : i32
    %c0_i32_0 = arith.constant 0 : i32
    %c0_i32_1 = arith.constant 0 : i32
    return %c0_i32, %c0_i32_0 : i32, i32
  }
  func.func @transform_3(%arg0: i32, %arg1: i32) -> (i32, i32) {
    %c0_i32 = arith.constant 0 : i32
    %c0_i32_0 = arith.constant 0 : i32
    %c0_i32_1 = arith.constant 0 : i32
    return %c0_i32, %c0_i32_0 : i32, i32
  }
  func.func @transform_4(%arg0: i32, %arg1: i32) -> (i32, i32) {
    %c0_i32 = arith.constant 0 : i32
    %c0_i32_0 = arith.constant 0 : i32
    %c0_i32_1 = arith.constant 0 : i32
    return %c0_i32, %c0_i32_0 : i32, i32
  }
  func.func @transform_5(%arg0: i32, %arg1: i32) -> (i32, i32, i32) {
    %c0_i32 = arith.constant 0 : i32
    %c0_i32_0 = arith.constant 0 : i32
    %c0_i32_1 = arith.constant 0 : i32
    return %arg0, %c0_i32, %c0_i32_0 : i32, i32, i32
  }
}

</mosaic_0001>

<llo_original>
// kernel: video_encoder_forward.2
$region0: #{video_encoder_forward.2}
  #allocation0 [shape = 'u32[]', space=smem, size = 0x4, offset = 0x4, fixed_abs, tag = 'smem constant byte address 0x4 - core index']
  #allocation1 [shape = 'u32[144,128]{1,0:T(1,128)}', space=vmem, size = 0x12000, scoped, tag = 'internal scratch']
  %s0 = inlined_call_operand.vmem [shape: bf16[8,512,81], index: 0, kind: input, shape index: {}]
  %s1 = inlined_call_operand.vmem [shape: bf16[81,128], index: 1, kind: input, shape index: {}]
  %s2 = inlined_call_operand.vmem [shape: f32[1,128], index: 2, kind: input, shape index: {}]
  %s3 = inlined_call_operand.vmem [shape: bf16[512,128], index: 3, kind: output, shape index: {}]
  %s4 = sld [smem:[#allocation0]]
  $region86: #{video_encoder_forward.2} parent=0
    _
  %s6 = ssub.s32 1, %s4
  %s7 = scalar_select 0, %s6, %s4
  $region1: #{video_encoder_forward.2} parent=0
    #allocation2 [shape = 'u8[524288]{0}', space=vmem, size = 0x80000, scoped, tag = 'input window, operand 0']
    loop: start=0, step=1, limit=6
    $region2: #{video_encoder_forward.2} parent=1 // loop_pre_header
      _
    $region3: #{video_encoder_forward.2} parent=1 // loop_header
      %s9 = sphi 0, %s13
      %p10 = scmp.ge.s32.totalorder %s9, 6
      %s19 = sphi 0, %s21
      %s22 = sphi 0, %s19
      %s23 = sphi 0, %s22
      %s39 = sphi 0, %s23
      %s43 = sphi 0, %s43
      %s45 = sphi 0, %s43
      %s46 = sphi 0, %s45
      %s60 = sphi 0, %s46
      %s64 = sphi 0, %s64
      %s66 = sphi 0, %s64
      %s67 = sphi 0, %s66
      %s81 = sphi 0, %s67
      %s87 = sphi 0, %s89
      %s90 = sphi 0, %s87
      %s91 = sphi 0, %s90
      %s107 = sphi 0, %s91
    $region4: #{video_encoder_forward.2} parent=1 // loop_header_branch
      %12 = sbr.rel (%p10) target = $region8
    $region5: #{video_encoder_forward.2} parent=1 // loop_body
      %s14 = ssub.s32 %s9, 1
      %s15 = ssub.s32 %s9, 2
      %s16 = sadd.s32 %s9, 1
      %s17 = ssub.s32 %s9, %s16
      %p18 = scmp.eq.s32.totalorder %s17, 0
      %s20 = sadd.s32 %s19, 1
      %s21 = scalar_select %p18, %s19, %s20
      %p24 = pneg %p18
      %p25 = scmp.eq.s32.totalorder %s9, 3
      %p26 = por %p24, %p25
      %p27 = scmp.ne.s32.totalorder %s19, %s22
      %p28 = scmp.eq.s32.totalorder %s9, 0
      %p29 = por %p27, %p28
      %p30 = scmp.ne.s32.totalorder %s19, %s22
      %p31 = scmp.eq.s32.totalorder %s14, 3
      %p32 = por %p30, %p31
      %p33 = scmp.ne.s32.totalorder %s22, %s23
      %p34 = scmp.eq.s32.totalorder %s14, 0
      %p35 = por %p33, %p34
      %p36 = scmp.ne.s32.totalorder %s22, %s23
      %p37 = scmp.eq.s32.totalorder %s15, 3
      %p38 = por %p36, %p37
      %p40 = scmp.ne.s32.totalorder %s23, %s39
      %p41 = scmp.eq.s32.totalorder %s15, 0
      %p42 = por %p40, %p41
      %s44 = sadd.s32 %s43, 1
      %p47 = scmp.eq.s32.totalorder %s9, 3
      %p48 = scmp.ne.s32.totalorder %s43, %s45
      %p49 = scmp.eq.s32.totalorder %s9, 0
      %p50 = por %p48, %p49
      %p51 = scmp.ne.s32.totalorder %s43, %s45
      %p52 = scmp.eq.s32.totalorder %s14, 3
      %p53 = por %p51, %p52
      %p54 = scmp.ne.s32.totalorder %s45, %s46
      %p55 = scmp.eq.s32.totalorder %s14, 0
      %p56 = por %p54, %p55
      %p57 = scmp.ne.s32.totalorder %s45, %s46
      %p58 = scmp.eq.s32.totalorder %s15, 3
      %p59 = por %p57, %p58
      %p61 = scmp.ne.s32.totalorder %s46, %s60
      %p62 = scmp.eq.s32.totalorder %s15, 0
      %p63 = por %p61, %p62
      %s65 = sadd.s32 %s64, 1
      %p68 = scmp.eq.s32.totalorder %s9, 3
      %p69 = scmp.ne.s32.totalorder %s64, %s66
      %p70 = scmp.eq.s32.totalorder %s9, 0
      %p71 = por %p69, %p70
      %p72 = scmp.ne.s32.totalorder %s64, %s66
      %p73 = scmp.eq.s32.totalorder %s14, 3
      %p74 = por %p72, %p73
      %p75 = scmp.ne.s32.totalorder %s66, %s67
      %p76 = scmp.eq.s32.totalorder %s14, 0
      %p77 = por %p75, %p76
      %p78 = scmp.ne.s32.totalorder %s66, %s67
      %p79 = scmp.eq.s32.totalorder %s15, 3
      %p80 = por %p78, %p79
      %p82 = scmp.ne.s32.totalorder %s67, %s81
      %p83 = scmp.eq.s32.totalorder %s15, 0
      %p84 = por %p82, %p83
      %s85 = ssub.s32 %s9, %s16
      %p86 = scmp.eq.s32.totalorder %s85, 0
      %s88 = sadd.s32 %s87, 1
      %s89 = scalar_select %p86, %s87, %s88
      %p92 = pneg %p86
      %p93 = scmp.eq.s32.totalorder %s9, 3
      %p94 = por %p92, %p93
      %p95 = scmp.ne.s32.totalorder %s87, %s90
      %p96 = scmp.eq.s32.totalorder %s9, 0
      %p97 = por %p95, %p96
      %p98 = scmp.ne.s32.totalorder %s87, %s90
      %p99 = scmp.eq.s32.totalorder %s14, 3
      %p100 = por %p98, %p99
      %p101 = scmp.ne.s32.totalorder %s90, %s91
      %p102 = scmp.eq.s32.totalorder %s14, 0
      %p103 = por %p101, %p102
      %p104 = scmp.ne.s32.totalorder %s90, %s91
      %p105 = scmp.eq.s32.totalorder %s15, 3
      %p106 = por %p104, %p105
      %p108 = scmp.ne.s32.totalorder %s91, %s107
      %p109 = scmp.eq.s32.totalorder %s15, 0
      %p110 = por %p108, %p109
      %p111 = scmp.le.s32.totalorder 1, %s9
      %p112 = scmp.lt.s32.totalorder %s9, 5
      %p113 = pnand %p111, %p112
      %p114 = pneg %p113
      // Predicated region
      $region9: #{video_encoder_forward.2} parent=5 // pred_check
        _
      $region10: #{video_encoder_forward.2} parent=5 // pred_check_branch
        %116 = sbr.rel (%p113) target = $region12
      $region11: #{video_encoder_forward.2} parent=5 // pred_region
        %s117 = ssub.s32 %s9, 1
        // Predicated region
        $region13: #{video_encoder_forward.2} parent=11 // pred_check
          %p118 = pneg %p56
        $region14: #{video_encoder_forward.2} parent=11 // pred_check_branch
          %120 = sbr.rel (%p118) target = $region16
        $region15: #{video_encoder_forward.2} parent=11 // pred_region
          _
        $region16: #{video_encoder_forward.2} parent=11 // pred_fallthru
          _
        // Predicated region
        $region17: #{video_encoder_forward.2} parent=11 // pred_check
          %p121 = pneg %p77
        $region18: #{video_encoder_forward.2} parent=11 // pred_check_branch
          %123 = sbr.rel (%p121) target = $region20
        $region19: #{video_encoder_forward.2} parent=11 // pred_region
          _
        $region20: #{video_encoder_forward.2} parent=11 // pred_fallthru
          _
      $region12: #{video_encoder_forward.2} parent=5 // pred_fallthru
        _
      %p124 = scmp.lt.s32.totalorder %s9, 4
      // Predicated region
      $region21: #{video_encoder_forward.2} parent=5 // pred_check
        %p125 = pneg %p124
      $region22: #{video_encoder_forward.2} parent=5 // pred_check_branch
        %127 = sbr.rel (%p125) target = $region24
      $region23: #{video_encoder_forward.2} parent=5 // pred_region
        // Predicated region
        $region25: #{video_encoder_forward.2} parent=23 // pred_check
          %p128 = pneg %p29
        $region26: #{video_encoder_forward.2} parent=23 // pred_check_branch
          %130 = sbr.rel (%p128) target = $region28
        $region27: #{video_encoder_forward.2} parent=23 // pred_region
          %s131 = sand.u32 %s19, 1
          %s132 = sand.u32 %s19, 1
          %s133 = smul.addr %s132, 512
          %s134 = scalar_lea.vmem [#allocation2], %s133
          %s135 = smul.u32 16, %s9
          %s136 = smul.addr %s135, 4
          %s137 = scalar_lea.vmem %s0, %s136
          // Predicated region
          $region29: #{video_encoder_forward.2} parent=27 // pred_check
            _
          $region30: #{video_encoder_forward.2} parent=27 // pred_check_branch
            %139 = sbr.rel (0) target = $region32
          $region31: #{video_encoder_forward.2} parent=27 // pred_region
            // Predicated region
            $region33: #{video_encoder_forward.2} parent=31 // pred_check
              _
            $region34: #{video_encoder_forward.2} parent=31 // pred_check_branch
              %141 = sbr.rel target = $region36
            $region35: #{video_encoder_forward.2} parent=31 // pred_region
              // Predicated region
              $region48: #{video_encoder_forward.2} parent=35 // pred_check
                _
              $region49: #{video_encoder_forward.2} parent=35 // pred_check_branch
                %411 = sbr.rel (0) target = $region51
              $region50: #{video_encoder_forward.2} parent=35 // pred_region
                loop: start=0, step=1, limit=1
                $region52: #{video_encoder_forward.2} parent=50 // loop_pre_header
                  _
                $region53: #{video_encoder_forward.2} parent=50 // loop_header
                  %s413 = sphi 0, %s417
                  %p414 = scmp.ge.s32.totalorder %s413, 1
                  %s418 = sphi %s137, %s137
                  %s419 = sphi %s134, %s134
                $region54: #{video_encoder_forward.2} parent=50 // loop_header_branch
                  %416 = sbr.rel (%p414) target = $region58
                $region55: #{video_encoder_forward.2} parent=50 // loop_body
                  _
                $region56: #{video_encoder_forward.2} parent=50 // loop_footer
                  %s417 = sadd.s32 1, %s413
                $region57: #{video_encoder_forward.2} parent=50 // loop_footer_branch
                  %412 = sbr.rel target = $region53
                $region58: #{video_encoder_forward.2} parent=50 // loop_exit
                  _
                %s421 = ssub.s32 16, 1
                loop: start=0, step=1, limit=1
                $region59: #{video_encoder_forward.2} parent=50 // loop_pre_header
                  _
                $region60: #{video_encoder_forward.2} parent=50 // loop_header
                  %s423 = sphi 0, %s427
                  %p424 = scmp.ge.s32.totalorder %s423, 1
                  %s428 = sphi %s137, %s137
                  %s429 = sphi %s134, %s134
                $region61: #{video_encoder_forward.2} parent=50 // loop_header_branch
                  %426 = sbr.rel (%p424) target = $region65
                $region62: #{video_encoder_forward.2} parent=50 // loop_body
                  %v430 = vld [vmem:[%s428] sm:%s421]
                  %431 = vst [vmem:[%s429] sm:%s421] %v430
                  %v432 = vld [vmem:[%s428 + $0x4] sm:%s421]
                  %433 = vst [vmem:[%s429 + $0x4] sm:%s421] %v432
                  %v434 = vld [vmem:[%s428 + $0x8] sm:%s421]
                  %435 = vst [vmem:[%s429 + $0x8] sm:%s421] %v434
                  %v436 = vld [vmem:[%s428 + $0xc] sm:%s421]
                  %437 = vst [vmem:[%s429 + $0xc] sm:%s421] %v436
                  %v438 = vld [vmem:[%s428 + $0x10] sm:%s421]
                  %439 = vst [vmem:[%s429 + $0x10] sm:%s421] %v438
                  %v440 = vld [vmem:[%s428 + $0x14] sm:%s421]
                  %441 = vst [vmem:[%s429 + $0x14] sm:%s421] %v440
                  %v442 = vld [vmem:[%s428 + $0x18] sm:%s421]
                  %443 = vst [vmem:[%s429 + $0x18] sm:%s421] %v442
                  %v444 = vld [vmem:[%s428 + $0x1c] sm:%s421]
                  %445 = vst [vmem:[%s429 + $0x1c] sm:%s421] %v444
                  %v446 = vld [vmem:[%s428 + $0x20] sm:%s421]
                  %447 = vst [vmem:[%s429 + $0x20] sm:%s421] %v446
                  %v448 = vld [vmem:[%s428 + $0x24] sm:%s421]
                  %449 = vst [vmem:[%s429 + $0x24] sm:%s421] %v448
                  %v450 = vld [vmem:[%s428 + $0x28] sm:%s421]
                  %451 = vst [vmem:[%s429 + $0x28] sm:%s421] %v450
                  %v452 = vld [vmem:[%s428 + $0x2c] sm:%s421]
                  %453 = vst [vmem:[%s429 + $0x2c] sm:%s421] %v452
                  %v454 = vld [vmem:[%s428 + $0x30] sm:%s421]
                  %455 = vst [vmem:[%s429 + $0x30] sm:%s421] %v454
                  %v456 = vld [vmem:[%s428 + $0x34] sm:%s421]
                  %457 = vst [vmem:[%s429 + $0x34] sm:%s421] %v456
                  %v458 = vld [vmem:[%s428 + $0x38] sm:%s421]
                  %459 = vst [vmem:[%s429 + $0x38] sm:%s421] %v458
                  %v460 = vld [vmem:[%s428 + $0x3c] sm:%s421]
                  %461 = vst [vmem:[%s429 + $0x3c] sm:%s421] %v460
                  %v462 = vld [vmem:[%s428 + $0x100] sm:%s421]
                  %463 = vst [vmem:[%s429 + $0x40] sm:%s421] %v462
                  %v464 = vld [vmem:[%s428 + $0x104] sm:%s421]
                  %465 = vst [vmem:[%s429 + $0x44] sm:%s421] %v464
                  %v466 = vld [vmem:[%s428 + $0x108] sm:%s421]
                  %467 = vst [vmem:[%s429 + $0x48] sm:%s421] %v466
                  %v468 = vld [vmem:[%s428 + $0x10c] sm:%s421]
                  %469 = vst [vmem:[%s429 + $0x4c] sm:%s421] %v468
                  %v470 = vld [vmem:[%s428 + $0x110] sm:%s421]
                  %471 = vst [vmem:[%s429 + $0x50] sm:%s421] %v470
                  %v472 = vld [vmem:[%s428 + $0x114] sm:%s421]
                  %473 = vst [vmem:[%s429 + $0x54] sm:%s421] %v472
                  %v474 = vld [vmem:[%s428 + $0x118] sm:%s421]
                  %475 = vst [vmem:[%s429 + $0x58] sm:%s421] %v474
                  %v476 = vld [vmem:[%s428 + $0x11c] sm:%s421]
                  %477 = vst [vmem:[%s429 + $0x5c] sm:%s421] %v476
                  %v478 = vld [vmem:[%s428 + $0x120] sm:%s421]
                  %479 = vst [vmem:[%s429 + $0x60] sm:%s421] %v478
                  %v480 = vld [vmem:[%s428 + $0x124] sm:%s421]
                  %481 = vst [vmem:[%s429 + $0x64] sm:%s421] %v480
                  %v482 = vld [vmem:[%s428 + $0x128] sm:%s421]
                  %483 = vst [vmem:[%s429 + $0x68] sm:%s421] %v482
                  %v484 = vld [vmem:[%s428 + $0x12c] sm:%s421]
                  %485 = vst [vmem:[%s429 + $0x6c] sm:%s421] %v484
                  %v486 = vld [vmem:[%s428 + $0x130] sm:%s421]
                  %487 = vst [vmem:[%s429 + $0x70] sm:%s421] %v486
                  %v488 = vld [vmem:[%s428 + $0x134] sm:%s421]
                  %489 = vst [vmem:[%s429 + $0x74] sm:%s421] %v488
                  %v490 = vld [vmem:[%s428 + $0x138] sm:%s421]
                  %491 = vst [vmem:[%s429 + $0x78] sm:%s421] %v490
                  %v492 = vld [vmem:[%s428 + $0x13c] sm:%s421]
                  %493 = vst [vmem:[%s429 + $0x7c] sm:%s421] %v492
                  %v494 = vld [vmem:[%s428 + $0x200] sm:%s421]
                  %495 = vst [vmem:[%s429 + $0x80] sm:%s421] %v494
                  %v496 = vld [vmem:[%s428 + $0x204] sm:%s421]
                  %497 = vst [vmem:[%s429 + $0x84] sm:%s421] %v496
                  %v498 = vld [vmem:[%s428 + $0x208] sm:%s421]
                  %499 = vst [vmem:[%s429 + $0x88] sm:%s421] %v498
                  %v500 = vld [vmem:[%s428 + $0x20c] sm:%s421]
                  %501 = vst [vmem:[%s429 + $0x8c] sm:%s421] %v500
                  %v502 = vld [vmem:[%s428 + $0x210] sm:%s421]
                  %503 = vst [vmem:[%s429 + $0x90] sm:%s421] %v502
                  %v504 = vld [vmem:[%s428 + $0x214] sm:%s421]
                  %505 = vst [vmem:[%s429 + $0x94] sm:%s421] %v504
                  %v506 = vld [vmem:[%s428 + $0x218] sm:%s421]
                  %507 = vst [vmem:[%s429 + $0x98] sm:%s421] %v506
                  %v508 = vld [vmem:[%s428 + $0x21c] sm:%s421]
                  %509 = vst [vmem:[%s429 + $0x9c] sm:%s421] %v508
                  %v510 = vld [vmem:[%s428 + $0x220] sm:%s421]
                  %511 = vst [vmem:[%s429 + $0xa0] sm:%s421] %v510
                  %v512 = vld [vmem:[%s428 + $0x224] sm:%s421]
                  %513 = vst [vmem:[%s429 + $0xa4] sm:%s421] %v512
                  %v514 = vld [vmem:[%s428 + $0x228] sm:%s421]
                  %515 = vst [vmem:[%s429 + $0xa8] sm:%s421] %v514
                  %v516 = vld [vmem:[%s428 + $0x22c] sm:%s421]
                  %517 = vst [vmem:[%s429 + $0xac] sm:%s421] %v516
                  %v518 = vld [vmem:[%s428 + $0x230] sm:%s421]
                  %519 = vst [vmem:[%s429 + $0xb0] sm:%s421] %v518
                  %v520 = vld [vmem:[%s428 + $0x234] sm:%s421]
                  %521 = vst [vmem:[%s429 + $0xb4] sm:%s421] %v520
                  %v522 = vld [vmem:[%s428 + $0x238] sm:%s421]
                  %523 = vst [vmem:[%s429 + $0xb8] sm:%s421] %v522
                  %v524 = vld [vmem:[%s428 + $0x23c] sm:%s421]
                  %525 = vst [vmem:[%s429 + $0xbc] sm:%s421] %v524
                  %v526 = vld [vmem:[%s428 + $0x300] sm:%s421]
                  %527 = vst [vmem:[%s429 + $0xc0] sm:%s421] %v526
                  %v528 = vld [vmem:[%s428 + $0x304] sm:%s421]
                  %529 = vst [vmem:[%s429 + $0xc4] sm:%s421] %v528
                  %v530 = vld [vmem:[%s428 + $0x308] sm:%s421]
                  %531 = vst [vmem:[%s429 + $0xc8] sm:%s421] %v530
                  %v532 = vld [vmem:[%s428 + $0x30c] sm:%s421]
                  %533 = vst [vmem:[%s429 + $0xcc] sm:%s421] %v532
                  %v534 = vld [vmem:[%s428 + $0x310] sm:%s421]
                  %535 = vst [vmem:[%s429 + $0xd0] sm:%s421] %v534
                  %v536 = vld [vmem:[%s428 + $0x314] sm:%s421]
                  %537 = vst [vmem:[%s429 + $0xd4] sm:%s421] %v536
                  %v538 = vld [vmem:[%s428 + $0x318] sm:%s421]
                  %539 = vst [vmem:[%s429 + $0xd8] sm:%s421] %v538
                  %v540 = vld [vmem:[%s428 + $0x31c] sm:%s421]
                  %541 = vst [vmem:[%s429 + $0xdc] sm:%s421] %v540
                  %v542 = vld [vmem:[%s428 + $0x320] sm:%s421]
                  %543 = vst [vmem:[%s429 + $0xe0] sm:%s421] %v542
                  %v544 = vld [vmem:[%s428 + $0x324] sm:%s421]
                  %545 = vst [vmem:[%s429 + $0xe4] sm:%s421] %v544
                  %v546 = vld [vmem:[%s428 + $0x328] sm:%s421]
                  %547 = vst [vmem:[%s429 + $0xe8] sm:%s421] %v546
                  %v548 = vld [vmem:[%s428 + $0x32c] sm:%s421]
                  %549 = vst [vmem:[%s429 + $0xec] sm:%s421] %v548
                  %v550 = vld [vmem:[%s428 + $0x330] sm:%s421]
                  %551 = vst [vmem:[%s429 + $0xf0] sm:%s421] %v550
                  %v552 = vld [vmem:[%s428 + $0x334] sm:%s421]
                  %553 = vst [vmem:[%s429 + $0xf4] sm:%s421] %v552
                  %v554 = vld [vmem:[%s428 + $0x338] sm:%s421]
                  %555 = vst [vmem:[%s429 + $0xf8] sm:%s421] %v554
                  %v556 = vld [vmem:[%s428 + $0x33c] sm:%s421]
                  %557 = vst [vmem:[%s429 + $0xfc] sm:%s421] %v556
                  %v558 = vld [vmem:[%s428 + $0x400] sm:%s421]
                  %559 = vst [vmem:[%s429 + $0x100] sm:%s421] %v558
                  %v560 = vld [vmem:[%s428 + $0x404] sm:%s421]
                  %561 = vst [vmem:[%s429 + $0x104] sm:%s421] %v560
                  %v562 = vld [vmem:[%s428 + $0x408] sm:%s421]
                  %563 = vst [vmem:[%s429 + $0x108] sm:%s421] %v562
                  %v564 = vld [vmem:[%s428 + $0x40c] sm:%s421]
                  %565 = vst [vmem:[%s429 + $0x10c] sm:%s421] %v564
                  %v566 = vld [vmem:[%s428 + $0x410] sm:%s421]
                  %567 = vst [vmem:[%s429 + $0x110] sm:%s421] %v566
                  %v568 = vld [vmem:[%s428 + $0x414] sm:%s421]
                  %569 = vst [vmem:[%s429 + $0x114] sm:%s421] %v568
                  %v570 = vld [vmem:[%s428 + $0x418] sm:%s421]
                  %571 = vst [vmem:[%s429 + $0x118] sm:%s421] %v570
                  %v572 = vld [vmem:[%s428 + $0x41c] sm:%s421]
                  %573 = vst [vmem:[%s429 + $0x11c] sm:%s421] %v572
                  %v574 = vld [vmem:[%s428 + $0x420] sm:%s421]
                  %575 = vst [vmem:[%s429 + $0x120] sm:%s421] %v574
                  %v576 = vld [vmem:[%s428 + $0x424] sm:%s421]
                  %577 = vst [vmem:[%s429 + $0x124] sm:%s421] %v576
                  %v578 = vld [vmem:[%s428 + $0x428] sm:%s421]
                  %579 = vst [vmem:[%s429 + $0x128] sm:%s421] %v578
                  %v580 = vld [vmem:[%s428 + $0x42c] sm:%s421]
                  %581 = vst [vmem:[%s429 + $0x12c] sm:%s421] %v580
                  %v582 = vld [vmem:[%s428 + $0x430] sm:%s421]
                  %583 = vst [vmem:[%s429 + $0x130] sm:%s421] %v582
                  %v584 = vld [vmem:[%s428 + $0x434] sm:%s421]
                  %585 = vst [vmem:[%s429 + $0x134] sm:%s421] %v584
                  %v586 = vld [vmem:[%s428 + $0x438] sm:%s421]
                  %587 = vst [vmem:[%s429 + $0x138] sm:%s421] %v586
                  %v588 = vld [vmem:[%s428 + $0x43c] sm:%s421]
                  %589 = vst [vmem:[%s429 + $0x13c] sm:%s421] %v588
                  %v590 = vld [vmem:[%s428 + $0x500] sm:%s421]
                  %591 = vst [vmem:[%s429 + $0x140] sm:%s421] %v590
                  %v592 = vld [vmem:[%s428 + $0x504] sm:%s421]
                  %593 = vst [vmem:[%s429 + $0x144] sm:%s421] %v592
                  %v594 = vld [vmem:[%s428 + $0x508] sm:%s421]
                  %595 = vst [vmem:[%s429 + $0x148] sm:%s421] %v594
                  %v596 = vld [vmem:[%s428 + $0x50c] sm:%s421]
                  %597 = vst [vmem:[%s429 + $0x14c] sm:%s421] %v596
                  %v598 = vld [vmem:[%s428 + $0x510] sm:%s421]
                  %599 = vst [vmem:[%s429 + $0x150] sm:%s421] %v598
                  %v600 = vld [vmem:[%s428 + $0x514] sm:%s421]
                  %601 = vst [vmem:[%s429 + $0x154] sm:%s421] %v600
                  %v602 = vld [vmem:[%s428 + $0x518] sm:%s421]
                  %603 = vst [vmem:[%s429 + $0x158] sm:%s421] %v602
                  %v604 = vld [vmem:[%s428 + $0x51c] sm:%s421]
                  %605 = vst [vmem:[%s429 + $0x15c] sm:%s421] %v604
                  %v606 = vld [vmem:[%s428 + $0x520] sm:%s421]
                  %607 = vst [vmem:[%s429 + $0x160] sm:%s421] %v606
                  %v608 = vld [vmem:[%s428 + $0x524] sm:%s421]
                  %609 = vst [vmem:[%s429 + $0x164] sm:%s421] %v608
                  %v610 = vld [vmem:[%s428 + $0x528] sm:%s421]
                  %611 = vst [vmem:[%s429 + $0x168] sm:%s421] %v610
                  %v612 = vld [vmem:[%s428 + $0x52c] sm:%s421]
                  %613 = vst [vmem:[%s429 + $0x16c] sm:%s421] %v612
                  %v614 = vld [vmem:[%s428 + $0x530] sm:%s421]
                  %615 = vst [vmem:[%s429 + $0x170] sm:%s421] %v614
                  %v616 = vld [vmem:[%s428 + $0x534] sm:%s421]
                  %617 = vst [vmem:[%s429 + $0x174] sm:%s421] %v616
                  %v618 = vld [vmem:[%s428 + $0x538] sm:%s421]
                  %619 = vst [vmem:[%s429 + $0x178] sm:%s421] %v618
                  %v620 = vld [vmem:[%s428 + $0x53c] sm:%s421]
                  %621 = vst [vmem:[%s429 + $0x17c] sm:%s421] %v620
                  %v622 = vld [vmem:[%s428 + $0x600] sm:%s421]
                  %623 = vst [vmem:[%s429 + $0x180] sm:%s421] %v622
                  %v624 = vld [vmem:[%s428 + $0x604] sm:%s421]
                  %625 = vst [vmem:[%s429 + $0x184] sm:%s421] %v624
                  %v626 = vld [vmem:[%s428 + $0x608] sm:%s421]
                  %627 = vst [vmem:[%s429 + $0x188] sm:%s421] %v626
                  %v628 = vld [vmem:[%s428 + $0x60c] sm:%s421]
                  %629 = vst [vmem:[%s429 + $0x18c] sm:%s421] %v628
                  %v630 = vld [vmem:[%s428 + $0x610] sm:%s421]
                  %631 = vst [vmem:[%s429 + $0x190] sm:%s421] %v630
                  %v632 = vld [vmem:[%s428 + $0x614] sm:%s421]
                  %633 = vst [vmem:[%s429 + $0x194] sm:%s421] %v632
                  %v634 = vld [vmem:[%s428 + $0x618] sm:%s421]
                  %635 = vst [vmem:[%s429 + $0x198] sm:%s421] %v634
                  %v636 = vld [vmem:[%s428 + $0x61c] sm:%s421]
                  %637 = vst [vmem:[%s429 + $0x19c] sm:%s421] %v636
                  %v638 = vld [vmem:[%s428 + $0x620] sm:%s421]
                  %639 = vst [vmem:[%s429 + $0x1a0] sm:%s421] %v638
                  %v640 = vld [vmem:[%s428 + $0x624] sm:%s421]
                  %641 = vst [vmem:[%s429 + $0x1a4] sm:%s421] %v640
                  %v642 = vld [vmem:[%s428 + $0x628] sm:%s421]
                  %643 = vst [vmem:[%s429 + $0x1a8] sm:%s421] %v642
                  %v644 = vld [vmem:[%s428 + $0x62c] sm:%s421]
                  %645 = vst [vmem:[%s429 + $0x1ac] sm:%s421] %v644
                  %v646 = vld [vmem:[%s428 + $0x630] sm:%s421]
                  %647 = vst [vmem:[%s429 + $0x1b0] sm:%s421] %v646
                  %v648 = vld [vmem:[%s428 + $0x634] sm:%s421]
                  %649 = vst [vmem:[%s429 + $0x1b4] sm:%s421] %v648
                  %v650 = vld [vmem:[%s428 + $0x638] sm:%s421]
                  %651 = vst [vmem:[%s429 + $0x1b8] sm:%s421] %v650
                  %v652 = vld [vmem:[%s428 + $0x63c] sm:%s421]
                  %653 = vst [vmem:[%s429 + $0x1bc] sm:%s421] %v652
                  %v654 = vld [vmem:[%s428 + $0x700] sm:%s421]
                  %655 = vst [vmem:[%s429 + $0x1c0] sm:%s421] %v654
                  %v656 = vld [vmem:[%s428 + $0x704] sm:%s421]
                  %657 = vst [vmem:[%s429 + $0x1c4] sm:%s421] %v656
                  %v658 = vld [vmem:[%s428 + $0x708] sm:%s421]
                  %659 = vst [vmem:[%s429 + $0x1c8] sm:%s421] %v658
                  %v660 = vld [vmem:[%s428 + $0x70c] sm:%s421]
                  %661 = vst [vmem:[%s429 + $0x1cc] sm:%s421] %v660
                  %v662 = vld [vmem:[%s428 + $0x710] sm:%s421]
                  %663 = vst [vmem:[%s429 + $0x1d0] sm:%s421] %v662
                  %v664 = vld [vmem:[%s428 + $0x714] sm:%s421]
                  %665 = vst [vmem:[%s429 + $0x1d4] sm:%s421] %v664
                  %v666 = vld [vmem:[%s428 + $0x718] sm:%s421]
                  %667 = vst [vmem:[%s429 + $0x1d8] sm:%s421] %v666
                  %v668 = vld [vmem:[%s428 + $0x71c] sm:%s421]
                  %669 = vst [vmem:[%s429 + $0x1dc] sm:%s421] %v668
                  %v670 = vld [vmem:[%s428 + $0x720] sm:%s421]
                  %671 = vst [vmem:[%s429 + $0x1e0] sm:%s421] %v670
                  %v672 = vld [vmem:[%s428 + $0x724] sm:%s421]
                  %673 = vst [vmem:[%s429 + $0x1e4] sm:%s421] %v672
                  %v674 = vld [vmem:[%s428 + $0x728] sm:%s421]
                  %675 = vst [vmem:[%s429 + $0x1e8] sm:%s421] %v674
                  %v676 = vld [vmem:[%s428 + $0x72c] sm:%s421]
                  %677 = vst [vmem:[%s429 + $0x1ec] sm:%s421] %v676
                  %v678 = vld [vmem:[%s428 + $0x730] sm:%s421]
                  %679 = vst [vmem:[%s429 + $0x1f0] sm:%s421] %v678
                  %v680 = vld [vmem:[%s428 + $0x734] sm:%s421]
                  %681 = vst [vmem:[%s429 + $0x1f4] sm:%s421] %v680
                  %v682 = vld [vmem:[%s428 + $0x738] sm:%s421]
                  %683 = vst [vmem:[%s429 + $0x1f8] sm:%s421] %v682
                  %v684 = vld [vmem:[%s428 + $0x73c] sm:%s421]
                  %685 = vst [vmem:[%s429 + $0x1fc] sm:%s421] %v684
                $region63: #{video_encoder_forward.2} parent=50 // loop_footer
                  %s427 = sadd.s32 1, %s423
                $region64: #{video_encoder_forward.2} parent=50 // loop_footer_branch
                  %422 = sbr.rel target = $region60
                $region65: #{video_encoder_forward.2} parent=50 // loop_exit
                  _
              $region51: #{video_encoder_forward.2} parent=35 // pred_fallthru
                _
            $region36: #{video_encoder_forward.2} parent=31 // pred_fallthru
              _
            // Predicated region
            $region37: #{video_encoder_forward.2} parent=31 // pred_check
              _
            $region38: #{video_encoder_forward.2} parent=31 // pred_check_branch
              %143 = sbr.rel (0) target = $region40
            $region39: #{video_encoder_forward.2} parent=31 // pred_region
              %s145 = ssub.s32 16, 1
              loop: start=0, step=1, limit=1
              $region41: #{video_encoder_forward.2} parent=39 // loop_pre_header
                _
              $region42: #{video_encoder_forward.2} parent=39 // loop_header
                %s147 = sphi 0, %s151
                %p148 = scmp.ge.s32.totalorder %s147, 1
                %s152 = sphi %s137, %s137
                %s153 = sphi %s134, %s134
              $region43: #{video_encoder_forward.2} parent=39 // loop_header_branch
                %150 = sbr.rel (%p148) target = $region47
              $region44: #{video_encoder_forward.2} parent=39 // loop_body
                %v154 = vld [vmem:[%s152] sm:%s145]
                %155 = vst [vmem:[%s153] sm:%s145] %v154
                %v156 = vld [vmem:[%s152 + $0x4] sm:%s145]
                %157 = vst [vmem:[%s153 + $0x4] sm:%s145] %v156
                %v158 = vld [vmem:[%s152 + $0x8] sm:%s145]
                %159 = vst [vmem:[%s153 + $0x8] sm:%s145] %v158
                %v160 = vld [vmem:[%s152 + $0xc] sm:%s145]
                %161 = vst [vmem:[%s153 + $0xc] sm:%s145] %v160
                %v162 = vld [vmem:[%s152 + $0x10] sm:%s145]
                %163 = vst [vmem:[%s153 + $0x10] sm:%s145] %v162
                %v164 = vld [vmem:[%s152 + $0x14] sm:%s145]
                %165 = vst [vmem:[%s153 + $0x14] sm:%s145] %v164
                %v166 = vld [vmem:[%s152 + $0x18] sm:%s145]
                %167 = vst [vmem:[%s153 + $0x18] sm:%s145] %v166
                %v168 = vld [vmem:[%s152 + $0x1c] sm:%s145]
                %169 = vst [vmem:[%s153 + $0x1c] sm:%s145] %v168
                %v170 = vld [vmem:[%s152 + $0x20] sm:%s145]
                %171 = vst [vmem:[%s153 + $0x20] sm:%s145] %v170
                %v172 = vld [vmem:[%s152 + $0x24] sm:%s145]
                %173 = vst [vmem:[%s153 + $0x24] sm:%s145] %v172
                %v174 = vld [vmem:[%s152 + $0x28] sm:%s145]
                %175 = vst [vmem:[%s153 + $0x28] sm:%s145] %v174
                %v176 = vld [vmem:[%s152 + $0x2c] sm:%s145]
                %177 = vst [vmem:[%s153 + $0x2c] sm:%s145] %v176
                %v178 = vld [vmem:[%s152 + $0x30] sm:%s145]
                %179 = vst [vmem:[%s153 + $0x30] sm:%s145] %v178
                %v180 = vld [vmem:[%s152 + $0x34] sm:%s145]
                %181 = vst [vmem:[%s153 + $0x34] sm:%s145] %v180
                %v182 = vld [vmem:[%s152 + $0x38] sm:%s145]
                %183 = vst [vmem:[%s153 + $0x38] sm:%s145] %v182
                %v184 = vld [vmem:[%s152 + $0x3c] sm:%s145]
                %185 = vst [vmem:[%s153 + $0x3c] sm:%s145] %v184
                %v186 = vld [vmem:[%s152 + $0x100] sm:%s145]
                %187 = vst [vmem:[%s153 + $0x40] sm:%s145] %v186
                %v188 = vld [vmem:[%s152 + $0x104] sm:%s145]
                %189 = vst [vmem:[%s153 + $0x44] sm:%s145] %v188
                %v190 = vld [vmem:[%s152 + $0x108] sm:%s145]
                %191 = vst [vmem:[%s153 + $0x48] sm:%s145] %v190
                %v192 = vld [vmem:[%s152 + $0x10c] sm:%s145]
                %193 = vst [vmem:[%s153 + $0x4c] sm:%s145] %v192
                %v194 = vld [vmem:[%s152 + $0x110] sm:%s145]
                %195 = vst [vmem:[%s153 + $0x50] sm:%s145] %v194
                %v196 = vld [vmem:[%s152 + $0x114] sm:%s145]
                %197 = vst [vmem:[%s153 + $0x54] sm:%s145] %v196
                %v198 = vld [vmem:[%s152 + $0x118] sm:%s145]
                %199 = vst [vmem:[%s153 + $0x58] sm:%s145] %v198
                %v200 = vld [vmem:[%s152 + $0x11c] sm:%s145]
                %201 = vst [vmem:[%s153 + $0x5c] sm:%s145] %v200
                %v202 = vld [vmem:[%s152 + $0x120] sm:%s145]
                %203 = vst [vmem:[%s153 + $0x60] sm:%s145] %v202
                %v204 = vld [vmem:[%s152 + $0x124] sm:%s145]
                %205 = vst [vmem:[%s153 + $0x64] sm:%s145] %v204
                %v206 = vld [vmem:[%s152 + $0x128] sm:%s145]
                %207 = vst [vmem:[%s153 + $0x68] sm:%s145] %v206
                %v208 = vld [vmem:[%s152 + $0x12c] sm:%s145]
                %209 = vst [vmem:[%s153 + $0x6c] sm:%s145] %v208
                %v210 = vld [vmem:[%s152 + $0x130] sm:%s145]
                %211 = vst [vmem:[%s153 + $0x70] sm:%s145] %v210
                %v212 = vld [vmem:[%s152 + $0x134] sm:%s145]
                %213 = vst [vmem:[%s153 + $0x74] sm:%s145] %v212
                %v214 = vld [vmem:[%s152 + $0x138] sm:%s145]
                %215 = vst [vmem:[%s153 + $0x78] sm:%s145] %v214
                %v216 = vld [vmem:[%s152 + $0x13c] sm:%s145]
                %217 = vst [vmem:[%s153 + $0x7c] sm:%s145] %v216
                %v218 = vld [vmem:[%s152 + $0x200] sm:%s145]
                %219 = vst [vmem:[%s153 + $0x80] sm:%s145] %v218
                %v220 = vld [vmem:[%s152 + $0x204] sm:%s145]
                %221 = vst [vmem:[%s153 + $0x84] sm:%s145] %v220
                %v222 = vld [vmem:[%s152 + $0x208] sm:%s145]
                %223 = vst [vmem:[%s153 + $0x88] sm:%s145] %v222
                %v224 = vld [vmem:[%s152 + $0x20c] sm:%s145]
                %225 = vst [vmem:[%s153 + $0x8c] sm:%s145] %v224
                %v226 = vld [vmem:[%s152 + $0x210] sm:%s145]
                %227 = vst [vmem:[%s153 + $0x90] sm:%s145] %v226
                %v228 = vld [vmem:[%s152 + $0x214] sm:%s145]
                %229 = vst [vmem:[%s153 + $0x94] sm:%s145] %v228
                %v230 = vld [vmem:[%s152 + $0x218] sm:%s145]
                %231 = vst [vmem:[%s153 + $0x98] sm:%s145] %v230
                %v232 = vld [vmem:[%s152 + $0x21c] sm:%s145]
                %233 = vst [vmem:[%s153 + $0x9c] sm:%s145] %v232
                %v234 = vld [vmem:[%s152 + $0x220] sm:%s145]
                %235 = vst [vmem:[%s153 + $0xa0] sm:%s145] %v234
                %v236 = vld [vmem:[%s152 + $0x224] sm:%s145]
                %237 = vst [vmem:[%s153 + $0xa4] sm:%s145] %v236
                %v238 = vld [vmem:[%s152 + $0x228] sm:%s145]
                %239 = vst [vmem:[%s153 + $0xa8] sm:%s145] %v238
                %v240 = vld [vmem:[%s152 + $0x22c] sm:%s145]
                %241 = vst [vmem:[%s153 + $0xac] sm:%s145] %v240
                %v242 = vld [vmem:[%s152 + $0x230] sm:%s145]
                %243 = vst [vmem:[%s153 + $0xb0] sm:%s145] %v242
                %v244 = vld [vmem:[%s152 + $0x234] sm:%s145]
                %245 = vst [vmem:[%s153 + $0xb4] sm:%s145] %v244
                %v246 = vld [vmem:[%s152 + $0x238] sm:%s145]
                %247 = vst [vmem:[%s153 + $0xb8] sm:%s145] %v246
                %v248 = vld [vmem:[%s152 + $0x23c] sm:%s145]
                %249 = vst [vmem:[%s153 + $0xbc] sm:%s145] %v248
                %v250 = vld [vmem:[%s152 + $0x300] sm:%s145]
                %251 = vst [vmem:[%s153 + $0xc0] sm:%s145] %v250
                %v252 = vld [vmem:[%s152 + $0x304] sm:%s145]
                %253 = vst [vmem:[%s153 + $0xc4] sm:%s145] %v252
                %v254 = vld [vmem:[%s152 + $0x308] sm:%s145]
                %255 = vst [vmem:[%s153 + $0xc8] sm:%s145] %v254
                %v256 = vld [vmem:[%s152 + $0x30c] sm:%s145]
                %257 = vst [vmem:[%s153 + $0xcc] sm:%s145] %v256
                %v258 = vld [vmem:[%s152 + $0x310] sm:%s145]
                %259 = vst [vmem:[%s153 + $0xd0] sm:%s145] %v258
                %v260 = vld [vmem:[%s152 + $0x314] sm:%s145]
                %261 = vst [vmem:[%s153 + $0xd4] sm:%s145] %v260
                %v262 = vld [vmem:[%s152 + $0x318] sm:%s145]
                %263 = vst [vmem:[%s153 + $0xd8] sm:%s145] %v262
                %v264 = vld [vmem:[%s152 + $0x31c] sm:%s145]
                %265 = vst [vmem:[%s153 + $0xdc] sm:%s145] %v264
                %v266 = vld [vmem:[%s152 + $0x320] sm:%s145]
                %267 = vst [vmem:[%s153 + $0xe0] sm:%s145] %v266
                %v268 = vld [vmem:[%s152 + $0x324] sm:%s145]
                %269 = vst [vmem:[%s153 + $0xe4] sm:%s145] %v268
                %v270 = vld [vmem:[%s152 + $0x328] sm:%s145]
                %271 = vst [vmem:[%s153 + $0xe8] sm:%s145] %v270
                %v272 = vld [vmem:[%s152 + $0x32c] sm:%s145]
                %273 = vst [vmem:[%s153 + $0xec] sm:%s145] %v272
                %v274 = vld [vmem:[%s152 + $0x330] sm:%s145]
                %275 = vst [vmem:[%s153 + $0xf0] sm:%s145] %v274
                %v276 = vld [vmem:[%s152 + $0x334] sm:%s145]
                %277 = vst [vmem:[%s153 + $0xf4] sm:%s145] %v276
                %v278 = vld [vmem:[%s152 + $0x338] sm:%s145]
                %279 = vst [vmem:[%s153 + $0xf8] sm:%s145] %v278
                %v280 = vld [vmem:[%s152 + $0x33c] sm:%s145]
                %281 = vst [vmem:[%s153 + $0xfc] sm:%s145] %v280
                %v282 = vld [vmem:[%s152 + $0x400] sm:%s145]
                %283 = vst [vmem:[%s153 + $0x100] sm:%s145] %v282
                %v284 = vld [vmem:[%s152 + $0x404] sm:%s145]
                %285 = vst [vmem:[%s153 + $0x104] sm:%s145] %v284
                %v286 = vld [vmem:[%s152 + $0x408] sm:%s145]
                %287 = vst [vmem:[%s153 + $0x108] sm:%s145] %v286
                %v288 = vld [vmem:[%s152 + $0x40c] sm:%s145]
                %289 = vst [vmem:[%s153 + $0x10c] sm:%s145] %v288
                %v290 = vld [vmem:[%s152 + $0x410] sm:%s145]
                %291 = vst [vmem:[%s153 + $0x110] sm:%s145] %v290
                %v292 = vld [vmem:[%s152 + $0x414] sm:%s145]
                %293 = vst [vmem:[%s153 + $0x114] sm:%s145] %v292
                %v294 = vld [vmem:[%s152 + $0x418] sm:%s145]
                %295 = vst [vmem:[%s153 + $0x118] sm:%s145] %v294
                %v296 = vld [vmem:[%s152 + $0x41c] sm:%s145]
                %297 = vst [vmem:[%s153 + $0x11c] sm:%s145] %v296
                %v298 = vld [vmem:[%s152 + $0x420] sm:%s145]
                %299 = vst [vmem:[%s153 + $0x120] sm:%s145] %v298
                %v300 = vld [vmem:[%s152 + $0x424] sm:%s145]
                %301 = vst [vmem:[%s153 + $0x124] sm:%s145] %v300
                %v302 = vld [vmem:[%s152 + $0x428] sm:%s145]
                %303 = vst [vmem:[%s153 + $0x128] sm:%s145] %v302
                %v304 = vld [vmem:[%s152 + $0x42c] sm:%s145]
                %305 = vst [vmem:[%s153 + $0x12c] sm:%s145] %v304
                %v306 = vld [vmem:[%s152 + $0x430] sm:%s145]
                %307 = vst [vmem:[%s153 + $0x130] sm:%s145] %v306
                %v308 = vld [vmem:[%s152 + $0x434] sm:%s145]
                %309 = vst [vmem:[%s153 + $0x134] sm:%s145] %v308
                %v310 = vld [vmem:[%s152 + $0x438] sm:%s145]
                %311 = vst [vmem:[%s153 + $0x138] sm:%s145] %v310
                %v312 = vld [vmem:[%s152 + $0x43c] sm:%s145]
                %313 = vst [vmem:[%s153 + $0x13c] sm:%s145] %v312
                %v314 = vld [vmem:[%s152 + $0x500] sm:%s145]
                %315 = vst [vmem:[%s153 + $0x140] sm:%s145] %v314
                %v316 = vld [vmem:[%s152 + $0x504] sm:%s145]
                %317 = vst [vmem:[%s153 + $0x144] sm:%s145] %v316
                %v318 = vld [vmem:[%s152 + $0x508] sm:%s145]
                %319 = vst [vmem:[%s153 + $0x148] sm:%s145] %v318
                %v320 = vld [vmem:[%s152 + $0x50c] sm:%s145]
                %321 = vst [vmem:[%s153 + $0x14c] sm:%s145] %v320
                %v322 = vld [vmem:[%s152 + $0x510] sm:%s145]
                %323 = vst [vmem:[%s153 + $0x150] sm:%s145] %v322
                %v324 = vld [vmem:[%s152 + $0x514] sm:%s145]
                %325 = vst [vmem:[%s153 + $0x154] sm:%s145] %v324
                %v326 = vld [vmem:[%s152 + $0x518] sm:%s145]
                %327 = vst [vmem:[%s153 + $0x158] sm:%s145] %v326
                %v328 = vld [vmem:[%s152 + $0x51c] sm:%s145]
                %329 = vst [vmem:[%s153 + $0x15c] sm:%s145] %v328
                %v330 = vld [vmem:[%s152 + $0x520] sm:%s145]
                %331 = vst [vmem:[%s153 + $0x160] sm:%s145] %v330
                %v332 = vld [vmem:[%s152 + $0x524] sm:%s145]
                %333 = vst [vmem:[%s153 + $0x164] sm:%s145] %v332
                %v334 = vld [vmem:[%s152 + $0x528] sm:%s145]
                %335 = vst [vmem:[%s153 + $0x168] sm:%s145] %v334
                %v336 = vld [vmem:[%s152 + $0x52c] sm:%s145]
                %337 = vst [vmem:[%s153 + $0x16c] sm:%s145] %v336
                %v338 = vld [vmem:[%s152 + $0x530] sm:%s145]
                %339 = vst [vmem:[%s153 + $0x170] sm:%s145] %v338
                %v340 = vld [vmem:[%s152 + $0x534] sm:%s145]
                %341 = vst [vmem:[%s153 + $0x174] sm:%s145] %v340
                %v342 = vld [vmem:[%s152 + $0x538] sm:%s145]
                %343 = vst [vmem:[%s153 + $0x178] sm:%s145] %v342
                %v344 = vld [vmem:[%s152 + $0x53c] sm:%s145]
                %345 = vst [vmem:[%s153 + $0x17c] sm:%s145] %v344
                %v346 = vld [vmem:[%s152 + $0x600] sm:%s145]
                %347 = vst [vmem:[%s153 + $0x180] sm:%s145] %v346
                %v348 = vld [vmem:[%s152 + $0x604] sm:%s145]
                %349 = vst [vmem:[%s153 + $0x184] sm:%s145] %v348
                %v350 = vld [vmem:[%s152 + $0x608] sm:%s145]
                %351 = vst [vmem:[%s153 + $0x188] sm:%s145] %v350
                %v352 = vld [vmem:[%s152 + $0x60c] sm:%s145]
                %353 = vst [vmem:[%s153 + $0x18c] sm:%s145] %v352
                %v354 = vld [vmem:[%s152 + $0x610] sm:%s145]
                %355 = vst [vmem:[%s153 + $0x190] sm:%s145] %v354
                %v356 = vld [vmem:[%s152 + $0x614] sm:%s145]
                %357 = vst [vmem:[%s153 + $0x194] sm:%s145] %v356
                %v358 = vld [vmem:[%s152 + $0x618] sm:%s145]
                %359 = vst [vmem:[%s153 + $0x198] sm:%s145] %v358
                %v360 = vld [vmem:[%s152 + $0x61c] sm:%s145]
                %361 = vst [vmem:[%s153 + $0x19c] sm:%s145] %v360
                %v362 = vld [vmem:[%s152 + $0x620] sm:%s145]
                %363 = vst [vmem:[%s153 + $0x1a0] sm:%s145] %v362
                %v364 = vld [vmem:[%s152 + $0x624] sm:%s145]
                %365 = vst [vmem:[%s153 + $0x1a4] sm:%s145] %v364
                %v366 = vld [vmem:[%s152 + $0x628] sm:%s145]
                %367 = vst [vmem:[%s153 + $0x1a8] sm:%s145] %v366
                %v368 = vld [vmem:[%s152 + $0x62c] sm:%s145]
                %369 = vst [vmem:[%s153 + $0x1ac] sm:%s145] %v368
                %v370 = vld [vmem:[%s152 + $0x630] sm:%s145]
                %371 = vst [vmem:[%s153 + $0x1b0] sm:%s145] %v370
                %v372 = vld [vmem:[%s152 + $0x634] sm:%s145]
                %373 = vst [vmem:[%s153 + $0x1b4] sm:%s145] %v372
                %v374 = vld [vmem:[%s152 + $0x638] sm:%s145]
                %375 = vst [vmem:[%s153 + $0x1b8] sm:%s145] %v374
                %v376 = vld [vmem:[%s152 + $0x63c] sm:%s145]
                %377 = vst [vmem:[%s153 + $0x1bc] sm:%s145] %v376
                %v378 = vld [vmem:[%s152 + $0x700] sm:%s145]
                %379 = vst [vmem:[%s153 + $0x1c0] sm:%s145] %v378
                %v380 = vld [vmem:[%s152 + $0x704] sm:%s145]
                %381 = vst [vmem:[%s153 + $0x1c4] sm:%s145] %v380
                %v382 = vld [vmem:[%s152 + $0x708] sm:%s145]
                %383 = vst [vmem:[%s153 + $0x1c8] sm:%s145] %v382
                %v384 = vld [vmem:[%s152 + $0x70c] sm:%s145]
                %385 = vst [vmem:[%s153 + $0x1cc] sm:%s145] %v384
                %v386 = vld [vmem:[%s152 + $0x710] sm:%s145]
                %387 = vst [vmem:[%s153 + $0x1d0] sm:%s145] %v386
                %v388 = vld [vmem:[%s152 + $0x714] sm:%s145]
                %389 = vst [vmem:[%s153 + $0x1d4] sm:%s145] %v388
                %v390 = vld [vmem:[%s152 + $0x718] sm:%s145]
                %391 = vst [vmem:[%s153 + $0x1d8] sm:%s145] %v390
                %v392 = vld [vmem:[%s152 + $0x71c] sm:%s145]
                %393 = vst [vmem:[%s153 + $0x1dc] sm:%s145] %v392
                %v394 = vld [vmem:[%s152 + $0x720] sm:%s145]
                %395 = vst [vmem:[%s153 + $0x1e0] sm:%s145] %v394
                %v396 = vld [vmem:[%s152 + $0x724] sm:%s145]
                %397 = vst [vmem:[%s153 + $0x1e4] sm:%s145] %v396
                %v398 = vld [vmem:[%s152 + $0x728] sm:%s145]
                %399 = vst [vmem:[%s153 + $0x1e8] sm:%s145] %v398
                %v400 = vld [vmem:[%s152 + $0x72c] sm:%s145]
                %401 = vst [vmem:[%s153 + $0x1ec] sm:%s145] %v400
                %v402 = vld [vmem:[%s152 + $0x730] sm:%s145]
                %403 = vst [vmem:[%s153 + $0x1f0] sm:%s145] %v402
                %v404 = vld [vmem:[%s152 + $0x734] sm:%s145]
                %405 = vst [vmem:[%s153 + $0x1f4] sm:%s145] %v404
                %v406 = vld [vmem:[%s152 + $0x738] sm:%s145]
                %407 = vst [vmem:[%s153 + $0x1f8] sm:%s145] %v406
                %v408 = vld [vmem:[%s152 + $0x73c] sm:%s145]
                %409 = vst [vmem:[%s153 + $0x1fc] sm:%s145] %v408
              $region45: #{video_encoder_forward.2} parent=39 // loop_footer
                %s151 = sadd.s32 1, %s147
              $region46: #{video_encoder_forward.2} parent=39 // loop_footer_branch
                %146 = sbr.rel target = $region42
              $region47: #{video_encoder_forward.2} parent=39 // loop_exit
                _
            $region40: #{video_encoder_forward.2} parent=31 // pred_fallthru
              _
          $region32: #{video_encoder_forward.2} parent=27 // pred_fallthru
            _
          %686 = vnop
        $region28: #{video_encoder_forward.2} parent=23 // pred_fallthru
          _
      $region24: #{video_encoder_forward.2} parent=5 // pred_fallthru
        _
      %p687 = scmp.le.s32.totalorder 1, %s9
      %p688 = scmp.lt.s32.totalorder %s9, 5
      %p689 = pnand %p687, %p688
      %p690 = pneg %p689
      // Predicated region
      $region66: #{video_encoder_forward.2} parent=5 // pred_check
        _
      $region67: #{video_encoder_forward.2} parent=5 // pred_check_branch
        %692 = sbr.rel (%p689) target = $region69
      $region68: #{video_encoder_forward.2} parent=5 // pred_region
        %s693 = ssub.s32 %s9, 1
        %s694 = sand.u32 %s22, 1
        %s695 = sand.u32 %s22, 1
        %s696 = smul.addr %s695, 512
        %s697 = scalar_lea.vmem [#allocation2], %s696
        // Predicated region
        $region70: #{video_encoder_forward.2} parent=68 // pred_check
          %p698 = pneg %p35
        $region71: #{video_encoder_forward.2} parent=68 // pred_check_branch
          %700 = sbr.rel (%p698) target = $region73
        $region72: #{video_encoder_forward.2} parent=68 // pred_region
          _
        $region73: #{video_encoder_forward.2} parent=68 // pred_fallthru
          _
        %s701 = sand.u32 %s22, 1
        %s702 = sand.u32 %s22, 1
        %s703 = smul.addr %s702, 512
        %s704 = scalar_lea.vmem [#allocation2], %s703
        %p705 = pneg %p35
        %p706 = pneg %p32
        %p707 = pneg %p56
        %p708 = pneg %p53
        %p709 = pneg %p77
        %p710 = pneg %p74
        %p711 = pneg %p103
        %p712 = pneg %p100
        %s713 = smul.u32 16, %s14
        %p714 = scmp.lt.s32.totalorder %s713, 63
        %s715 = scalar_select %p714, %s713, 63
        %s716 = smul.addr %s715, 4
        %s717 = scalar_lea.vmem %s3, %s716
        %s718 = smul.u32 16, %s14
        %s719 = smul.u32 16, %s14
        %p720 = scmp.lt.s32.totalorder %s719, 63
        %s721 = scalar_select %p720, %s719, 63
        %s722 = smul.addr %s721, 4
        %s723 = scalar_lea.vmem %s3, %s722
        %s724 = smul.u32 16, %s14
        %v726 = vld [vmem:[%s1] sm:$0xf]
        %v727 = vld [vmem:[%s1 + $0x4] sm:$0xf]
        %v728 = vld [vmem:[%s1 + $0x8] sm:$0xf]
        %v729 = vld [vmem:[%s1 + $0xc] sm:$0xf]
        %v730 = vld [vmem:[%s1 + $0x10] sm:$0xf]
        %v731 = vld [vmem:[%s1 + $0x14] sm:$0xf]
        %v732 = vld [vmem:[%s1 + $0x18] sm:$0xf]
        %v733 = vld [vmem:[%s1 + $0x1c] sm:$0xf]
        %v734 = vld [vmem:[%s1 + $0x20] sm:$0xf]
        %v735 = vld [vmem:[%s1 + $0x24] sm:$0xf]
        %v736 = vld [vmem:[%s1 + $0x28] sm:$0x1]
        %v737 = vld [vmem:[%s697] sm:$0xf]
        %v738 = vld [vmem:[%s697 + $0x4] sm:$0xf]
        %v739 = vld [vmem:[%s697 + $0x8] sm:$0xf]
        %v740 = vld [vmem:[%s697 + $0xc] sm:$0xf]
        %v741 = vld [vmem:[%s697 + $0x10] sm:$0xf]
        %v742 = vld [vmem:[%s697 + $0x14] sm:$0xf]
        %v743 = vld [vmem:[%s697 + $0x18] sm:$0xf]
        %v744 = vld [vmem:[%s697 + $0x1c] sm:$0xf]
        %v745 = vld [vmem:[%s697 + $0x20] sm:$0xf]
        %v746 = vld [vmem:[%s697 + $0x24] sm:$0xf]
        %v747 = vld [vmem:[%s697 + $0x28] sm:$0xf]
        %v748 = vld [vmem:[%s697 + $0x2c] sm:$0xf]
        %v749 = vld [vmem:[%s697 + $0x30] sm:$0xf]
        %v750 = vld [vmem:[%s697 + $0x34] sm:$0xf]
        %v751 = vld [vmem:[%s697 + $0x38] sm:$0xf]
        %v752 = vld [vmem:[%s697 + $0x3c] sm:$0xf]
        %v769 = vunpack.c.l.b16 %v737
        %v770 = vunpack.c.l.b16 %v738
        %v771 = vunpack.c.l.b16 %v739
        %v772 = vunpack.c.l.b16 %v740
        %v773 = vunpack.c.l.b16 %v741
        %v774 = vunpack.c.l.b16 %v742
        %v775 = vunpack.c.l.b16 %v743
        %v776 = vunpack.c.l.b16 %v744
        %v777 = vunpack.c.l.b16 %v745
        %v778 = vunpack.c.l.b16 %v746
        %v779 = vunpack.c.l.b16 %v747
        %v780 = vunpack.c.l.b16 %v748
        %v781 = vunpack.c.l.b16 %v749
        %v782 = vunpack.c.l.b16 %v750
        %v783 = vunpack.c.l.b16 %v751
        %v784 = vunpack.c.l.b16 %v752
        %v785 = vpack.c.b16 %v770, %v769
        %v786 = vpack.c.b16 %v772, %v771
        %v787 = vpack.c.b16 %v774, %v773
        %v788 = vpack.c.b16 %v776, %v775
        %v789 = vpack.c.b16 %v778, %v777
        %v790 = vpack.c.b16 %v780, %v779
        %v791 = vpack.c.b16 %v782, %v781
        %v792 = vpack.c.b16 %v784, %v783
        %v804 = vunpack.c.l.b16 %v726
        %v805 = vunpack.c.l.b16 %v727
        %v806 = vunpack.c.l.b16 %v728
        %v807 = vunpack.c.l.b16 %v729
        %v808 = vunpack.c.l.b16 %v730
        %v809 = vunpack.c.l.b16 %v731
        %v810 = vunpack.c.l.b16 %v732
        %v811 = vunpack.c.l.b16 %v733
        %v812 = vunpack.c.l.b16 %v734
        %v813 = vunpack.c.l.b16 %v735
        %v814 = vunpack.c.l.b16 %v736
        %v815 = vpack.c.b16 %v805, %v804
        %v816 = vpack.c.b16 %v807, %v806
        %v817 = vpack.c.b16 %v809, %v808
        %v818 = vpack.c.b16 %v811, %v810
        %v819 = vpack.c.b16 %v813, %v812
        %v820 = vpack.c.b16 %v814, %v814
        %vm826 = vcmask 662528
        %v828 = vsel %vm826, %v785, 0
        %v831 = vsel %vm826, %v786, 0
        %v834 = vsel %vm826, %v787, 0
        %v837 = vsel %vm826, %v788, 0
        %v840 = vsel %vm826, %v789, 0
        %v843 = vsel %vm826, %v790, 0
        %v846 = vsel %vm826, %v791, 0
        %v849 = vsel %vm826, %v792, 0
        %vm851 = vcmask 1040384
        %v852 = vsel 0, 4294967295, 65535
        %v853 = vsel %vm851, %v852, 0
        %v855 = vand.u32 %v820, %v853
        %857 = vmatprep.subr.bf16.mxu0 0
        %858 = vmatpush1.bf16.msra.mxu0 0
        %859 = vmatprep.subr.bf16.mxu0 0
        %860 = vmatpush1.bf16.msra.mxu0 0
        %861 = vmatprep.subr.bf16.mxu0 0
        %862 = vmatpush1.bf16.msra.mxu0 %v855
        %863 = vmatprep.subr.bf16.mxu0 0
        %864 = vmatpush1.bf16.msra.mxu0 %v819
        %865 = vmatprep.subr.bf16.mxu0 0
        %866 = vmatpush1.bf16.msra.mxu0 %v818
        %867 = vmatprep.subr.bf16.mxu0 0
        %868 = vmatpush1.bf16.msra.mxu0 %v817
        %869 = vmatprep.subr.bf16.mxu0 0
        %870 = vmatpush1.bf16.msra.mxu0 %v816
        %871 = vmatprep.subr.bf16.mxu0 0
        %872 = vmatpush1.bf16.msra.mxu0 %v815
        %873 = vmatprep.subr.bf16.mxu0 0
        %874 = vmatpush2.bf16.msra.mxu0 0
        %875 = vmatprep.subr.bf16.mxu0 0
        %876 = vmatpush2.bf16.msra.mxu0 0
        %877 = vmatprep.subr.bf16.mxu0 0
        %878 = vmatpush2.bf16.msra.mxu0 0
        %879 = vmatprep.subr.bf16.mxu0 0
        %880 = vmatpush2.bf16.msra.mxu0 0
        %881 = vmatprep.subr.bf16.mxu0 0
        %882 = vmatpush2.bf16.msra.mxu0 0
        %883 = vmatprep.subr.bf16.mxu0 0
        %884 = vmatpush2.bf16.msra.mxu0 0
        %885 = vmatprep.subr.bf16.mxu0 0
        %886 = vmatpush2.bf16.msra.mxu0 0
        %887 = vmatprep.subr.bf16.mxu0 0
        %888 = vmatpush2.bf16.msra.mxu0 0
        %889 = vmatprep.mubr.bf16.mxu0 0
        %890 = vmatmul.mubr.bf16.gmra.mxu0 %v828
        %v891 = vpop.f32.mrf.mxu0
        %v892 = vadd.f32 0.0, %v891
        %v893 = vpop.f32.mrf.mxu0
        %v894 = vpop.f32.mrf.mxu0
        %v895 = vadd.f32 0.0, %v894
        %v896 = vpop.f32.mrf.mxu0
        %897 = vmatprep.mubr.bf16.mxu0 0
        %898 = vmatmul.mubr.bf16.gmra.mxu0 %v831
        %v899 = vpop.f32.mrf.mxu0
        %v900 = vadd.f32 0.0, %v899
        %v901 = vpop.f32.mrf.mxu0
        %v902 = vpop.f32.mrf.mxu0
        %v903 = vadd.f32 0.0, %v902
        %v904 = vpop.f32.mrf.mxu0
        %905 = vmatprep.mubr.bf16.mxu0 0
        %906 = vmatmul.mubr.bf16.gmra.mxu0 %v834
        %v907 = vpop.f32.mrf.mxu0
        %v908 = vadd.f32 0.0, %v907
        %v909 = vpop.f32.mrf.mxu0
        %v910 = vpop.f32.mrf.mxu0
        %v911 = vadd.f32 0.0, %v910
        %v912 = vpop.f32.mrf.mxu0
        %913 = vmatprep.mubr.bf16.mxu0 0
        %914 = vmatmul.mubr.bf16.gmra.mxu0 %v837
        %v915 = vpop.f32.mrf.mxu0
        %v916 = vadd.f32 0.0, %v915
        %v917 = vpop.f32.mrf.mxu0
        %v918 = vpop.f32.mrf.mxu0
        %v919 = vadd.f32 0.0, %v918
        %v920 = vpop.f32.mrf.mxu0
        %921 = vmatprep.mubr.bf16.mxu0 0
        %922 = vmatmul.mubr.bf16.gmra.mxu0 %v840
        %v923 = vpop.f32.mrf.mxu0
        %v924 = vadd.f32 0.0, %v923
        %v925 = vpop.f32.mrf.mxu0
        %v926 = vpop.f32.mrf.mxu0
        %v927 = vadd.f32 0.0, %v926
        %v928 = vpop.f32.mrf.mxu0
        %929 = vmatprep.mubr.bf16.mxu0 0
        %930 = vmatmul.mubr.bf16.gmra.mxu0 %v843
        %v931 = vpop.f32.mrf.mxu0
        %v932 = vadd.f32 0.0, %v931
        %v933 = vpop.f32.mrf.mxu0
        %v934 = vpop.f32.mrf.mxu0
        %v935 = vadd.f32 0.0, %v934
        %v936 = vpop.f32.mrf.mxu0
        %937 = vmatprep.mubr.bf16.mxu0 0
        %938 = vmatmul.mubr.bf16.gmra.mxu0 %v846
        %v939 = vpop.f32.mrf.mxu0
        %v940 = vadd.f32 0.0, %v939
        %v941 = vpop.f32.mrf.mxu0
        %v942 = vpop.f32.mrf.mxu0
        %v943 = vadd.f32 0.0, %v942
        %v944 = vpop.f32.mrf.mxu0
        %945 = vmatprep.mubr.bf16.mxu0 0
        %946 = vmatmul.mubr.bf16.gmra.mxu0 %v849
        %v947 = vpop.f32.mrf.mxu0
        %v948 = vadd.f32 0.0, %v947
        %v949 = vpop.f32.mrf.mxu0
        %v950 = vpop.f32.mrf.mxu0
        %v951 = vadd.f32 0.0, %v950
        %v952 = vpop.f32.mrf.mxu0
        %953 = vdwg.mxu0
        %s954 = scalar_lea.vmem %s697, 64 [#allocation2]
        %v955 = vld [vmem:[%s954] sm:$0xf]
        %v956 = vld [vmem:[%s954 + $0x4] sm:$0xf]
        %v957 = vld [vmem:[%s954 + $0x8] sm:$0xf]
        %v958 = vld [vmem:[%s954 + $0xc] sm:$0xf]
        %v959 = vld [vmem:[%s954 + $0x10] sm:$0xf]
        %v960 = vld [vmem:[%s954 + $0x14] sm:$0xf]
        %v961 = vld [vmem:[%s954 + $0x18] sm:$0xf]
        %v962 = vld [vmem:[%s954 + $0x1c] sm:$0xf]
        %v963 = vld [vmem:[%s954 + $0x20] sm:$0xf]
        %v964 = vld [vmem:[%s954 + $0x24] sm:$0xf]
        %v965 = vld [vmem:[%s954 + $0x28] sm:$0xf]
        %v966 = vld [vmem:[%s954 + $0x2c] sm:$0xf]
        %v967 = vld [vmem:[%s954 + $0x30] sm:$0xf]
        %v968 = vld [vmem:[%s954 + $0x34] sm:$0xf]
        %v969 = vld [vmem:[%s954 + $0x38] sm:$0xf]
        %v970 = vld [vmem:[%s954 + $0x3c] sm:$0xf]
        %v987 = vunpack.c.l.b16 %v955
        %v988 = vunpack.c.l.b16 %v956
        %v989 = vunpack.c.l.b16 %v957
        %v990 = vunpack.c.l.b16 %v958
        %v991 = vunpack.c.l.b16 %v959
        %v992 = vunpack.c.l.b16 %v960
        %v993 = vunpack.c.l.b16 %v961
        %v994 = vunpack.c.l.b16 %v962
        %v995 = vunpack.c.l.b16 %v963
        %v996 = vunpack.c.l.b16 %v964
        %v997 = vunpack.c.l.b16 %v965
        %v998 = vunpack.c.l.b16 %v966
        %v999 = vunpack.c.l.b16 %v967
        %v1000 = vunpack.c.l.b16 %v968
        %v1001 = vunpack.c.l.b16 %v969
        %v1002 = vunpack.c.l.b16 %v970
        %v1003 = vpack.c.b16 %v988, %v987
        %v1004 = vpack.c.b16 %v990, %v989
        %v1005 = vpack.c.b16 %v992, %v991
        %v1006 = vpack.c.b16 %v994, %v993
        %v1007 = vpack.c.b16 %v996, %v995
        %v1008 = vpack.c.b16 %v998, %v997
        %v1009 = vpack.c.b16 %v1000, %v999
        %v1010 = vpack.c.b16 %v1002, %v1001
        %v1012 = vsel %vm826, %v1003, 0
        %v1015 = vsel %vm826, %v1004, 0
        %v1018 = vsel %vm826, %v1005, 0
        %v1021 = vsel %vm826, %v1006, 0
        %v1024 = vsel %vm826, %v1007, 0
        %v1027 = vsel %vm826, %v1008, 0
        %v1030 = vsel %vm826, %v1009, 0
        %v1033 = vsel %vm826, %v1010, 0
        %1035 = vmatprep.subr.bf16.mxu0 0
        %1036 = vmatpush1.bf16.msra.mxu0 0
        %1037 = vmatprep.subr.bf16.mxu0 0
        %1038 = vmatpush1.bf16.msra.mxu0 0
        %1039 = vmatprep.subr.bf16.mxu0 0
        %1040 = vmatpush1.bf16.msra.mxu0 %v855
        %1041 = vmatprep.subr.bf16.mxu0 0
        %1042 = vmatpush1.bf16.msra.mxu0 %v819
        %1043 = vmatprep.subr.bf16.mxu0 0
        %1044 = vmatpush1.bf16.msra.mxu0 %v818
        %1045 = vmatprep.subr.bf16.mxu0 0
        %1046 = vmatpush1.bf16.msra.mxu0 %v817
        %1047 = vmatprep.subr.bf16.mxu0 0
        %1048 = vmatpush1.bf16.msra.mxu0 %v816
        %1049 = vmatprep.subr.bf16.mxu0 0
        %1050 = vmatpush1.bf16.msra.mxu0 %v815
        %1051 = vmatprep.subr.bf16.mxu0 0
        %1052 = vmatpush2.bf16.msra.mxu0 0
        %1053 = vmatprep.subr.bf16.mxu0 0
        %1054 = vmatpush2.bf16.msra.mxu0 0
        %1055 = vmatprep.subr.bf16.mxu0 0
        %1056 = vmatpush2.bf16.msra.mxu0 0
        %1057 = vmatprep.subr.bf16.mxu0 0
        %1058 = vmatpush2.bf16.msra.mxu0 0
        %1059 = vmatprep.subr.bf16.mxu0 0
        %1060 = vmatpush2.bf16.msra.mxu0 0
        %1061 = vmatprep.subr.bf16.mxu0 0
        %1062 = vmatpush2.bf16.msra.mxu0 0
        %1063 = vmatprep.subr.bf16.mxu0 0
        %1064 = vmatpush2.bf16.msra.mxu0 0
        %1065 = vmatprep.subr.bf16.mxu0 0
        %1066 = vmatpush2.bf16.msra.mxu0 0
        %1067 = vmatprep.mubr.bf16.mxu0 0
        %1068 = vmatmul.mubr.bf16.gmra.mxu0 %v1012
        %v1069 = vpop.f32.mrf.mxu0
        %v1070 = vadd.f32 0.0, %v1069
        %v1071 = vpop.f32.mrf.mxu0
        %v1072 = vpop.f32.mrf.mxu0
        %v1073 = vadd.f32 0.0, %v1072
        %v1074 = vpop.f32.mrf.mxu0
        %1075 = vmatprep.mubr.bf16.mxu0 0
        %1076 = vmatmul.mubr.bf16.gmra.mxu0 %v1015
        %v1077 = vpop.f32.mrf.mxu0
        %v1078 = vadd.f32 0.0, %v1077
        %v1079 = vpop.f32.mrf.mxu0
        %v1080 = vpop.f32.mrf.mxu0
        %v1081 = vadd.f32 0.0, %v1080
        %v1082 = vpop.f32.mrf.mxu0
        %1083 = vmatprep.mubr.bf16.mxu0 0
        %1084 = vmatmul.mubr.bf16.gmra.mxu0 %v1018
        %v1085 = vpop.f32.mrf.mxu0
        %v1086 = vadd.f32 0.0, %v1085
        %v1087 = vpop.f32.mrf.mxu0
        %v1088 = vpop.f32.mrf.mxu0
        %v1089 = vadd.f32 0.0, %v1088
        %v1090 = vpop.f32.mrf.mxu0
        %1091 = vmatprep.mubr.bf16.mxu0 0
        %1092 = vmatmul.mubr.bf16.gmra.mxu0 %v1021
        %v1093 = vpop.f32.mrf.mxu0
        %v1094 = vadd.f32 0.0, %v1093
        %v1095 = vpop.f32.mrf.mxu0
        %v1096 = vpop.f32.mrf.mxu0
        %v1097 = vadd.f32 0.0, %v1096
        %v1098 = vpop.f32.mrf.mxu0
        %1099 = vmatprep.mubr.bf16.mxu0 0
        %1100 = vmatmul.mubr.bf16.gmra.mxu0 %v1024
        %v1101 = vpop.f32.mrf.mxu0
        %v1102 = vadd.f32 0.0, %v1101
        %v1103 = vpop.f32.mrf.mxu0
        %v1104 = vpop.f32.mrf.mxu0
        %v1105 = vadd.f32 0.0, %v1104
        %v1106 = vpop.f32.mrf.mxu0
        %1107 = vmatprep.mubr.bf16.mxu0 0
        %1108 = vmatmul.mubr.bf16.gmra.mxu0 %v1027
        %v1109 = vpop.f32.mrf.mxu0
        %v1110 = vadd.f32 0.0, %v1109
        %v1111 = vpop.f32.mrf.mxu0
        %v1112 = vpop.f32.mrf.mxu0
        %v1113 = vadd.f32 0.0, %v1112
        %v1114 = vpop.f32.mrf.mxu0
        %1115 = vmatprep.mubr.bf16.mxu0 0
        %1116 = vmatmul.mubr.bf16.gmra.mxu0 %v1030
        %v1117 = vpop.f32.mrf.mxu0
        %v1118 = vadd.f32 0.0, %v1117
        %v1119 = vpop.f32.mrf.mxu0
        %v1120 = vpop.f32.mrf.mxu0
        %v1121 = vadd.f32 0.0, %v1120
        %v1122 = vpop.f32.mrf.mxu0
        %1123 = vmatprep.mubr.bf16.mxu0 0
        %1124 = vmatmul.mubr.bf16.gmra.mxu0 %v1033
        %v1125 = vpop.f32.mrf.mxu0
        %v1126 = vadd.f32 0.0, %v1125
        %v1127 = vpop.f32.mrf.mxu0
        %v1128 = vpop.f32.mrf.mxu0
        %v1129 = vadd.f32 0.0, %v1128
        %v1130 = vpop.f32.mrf.mxu0
        %1131 = vdwg.mxu0
        %v1132 = vmax.f32 %v892, %v1070
        %v1133 = vmax.f32 %v895, %v1073
        %v1134 = vmax.f32 %v900, %v1078
        %v1135 = vmax.f32 %v903, %v1081
        %v1136 = vmax.f32 %v908, %v1086
        %v1137 = vmax.f32 %v911, %v1089
        %v1138 = vmax.f32 %v916, %v1094
        %v1139 = vmax.f32 %v919, %v1097
        %v1140 = vmax.f32 %v924, %v1102
        %v1141 = vmax.f32 %v927, %v1105
        %v1142 = vmax.f32 %v932, %v1110
        %v1143 = vmax.f32 %v935, %v1113
        %v1144 = vmax.f32 %v940, %v1118
        %v1145 = vmax.f32 %v943, %v1121
        %v1146 = vmax.f32 %v948, %v1126
        %v1147 = vmax.f32 %v951, %v1129
        %s1148 = scalar_lea.vmem %s697, 128 [#allocation2]
        %v1149 = vld [vmem:[%s1148] sm:$0xf]
        %v1150 = vld [vmem:[%s1148 + $0x4] sm:$0xf]
        %v1151 = vld [vmem:[%s1148 + $0x8] sm:$0xf]
        %v1152 = vld [vmem:[%s1148 + $0xc] sm:$0xf]
        %v1153 = vld [vmem:[%s1148 + $0x10] sm:$0xf]
        %v1154 = vld [vmem:[%s1148 + $0x14] sm:$0xf]
        %v1155 = vld [vmem:[%s1148 + $0x18] sm:$0xf]
        %v1156 = vld [vmem:[%s1148 + $0x1c] sm:$0xf]
        %v1157 = vld [vmem:[%s1148 + $0x20] sm:$0xf]
        %v1158 = vld [vmem:[%s1148 + $0x24] sm:$0xf]
        %v1159 = vld [vmem:[%s1148 + $0x28] sm:$0xf]
        %v1160 = vld [vmem:[%s1148 + $0x2c] sm:$0xf]
        %v1161 = vld [vmem:[%s1148 + $0x30] sm:$0xf]
        %v1162 = vld [vmem:[%s1148 + $0x34] sm:$0xf]
        %v1163 = vld [vmem:[%s1148 + $0x38] sm:$0xf]
        %v1164 = vld [vmem:[%s1148 + $0x3c] sm:$0xf]
        %v1181 = vunpack.c.l.b16 %v1149
        %v1182 = vunpack.c.l.b16 %v1150
        %v1183 = vunpack.c.l.b16 %v1151
        %v1184 = vunpack.c.l.b16 %v1152
        %v1185 = vunpack.c.l.b16 %v1153
        %v1186 = vunpack.c.l.b16 %v1154
        %v1187 = vunpack.c.l.b16 %v1155
        %v1188 = vunpack.c.l.b16 %v1156
        %v1189 = vunpack.c.l.b16 %v1157
        %v1190 = vunpack.c.l.b16 %v1158
        %v1191 = vunpack.c.l.b16 %v1159
        %v1192 = vunpack.c.l.b16 %v1160
        %v1193 = vunpack.c.l.b16 %v1161
        %v1194 = vunpack.c.l.b16 %v1162
        %v1195 = vunpack.c.l.b16 %v1163
        %v1196 = vunpack.c.l.b16 %v1164
        %v1197 = vpack.c.b16 %v1182, %v1181
        %v1198 = vpack.c.b16 %v1184, %v1183
        %v1199 = vpack.c.b16 %v1186, %v1185
        %v1200 = vpack.c.b16 %v1188, %v1187
        %v1201 = vpack.c.b16 %v1190, %v1189
        %v1202 = vpack.c.b16 %v1192, %v1191
        %v1203 = vpack.c.b16 %v1194, %v1193
        %v1204 = vpack.c.b16 %v1196, %v1195
        %v1206 = vsel %vm826, %v1197, 0
        %v1209 = vsel %vm826, %v1198, 0
        %v1212 = vsel %vm826, %v1199, 0
        %v1215 = vsel %vm826, %v1200, 0
        %v1218 = vsel %vm826, %v1201, 0
        %v1221 = vsel %vm826, %v1202, 0
        %v1224 = vsel %vm826, %v1203, 0
        %v1227 = vsel %vm826, %v1204, 0
        %1229 = vmatprep.subr.bf16.mxu0 0
        %1230 = vmatpush1.bf16.msra.mxu0 0
        %1231 = vmatprep.subr.bf16.mxu0 0
        %1232 = vmatpush1.bf16.msra.mxu0 0
        %1233 = vmatprep.subr.bf16.mxu0 0
        %1234 = vmatpush1.bf16.msra.mxu0 %v855
        %1235 = vmatprep.subr.bf16.mxu0 0
        %1236 = vmatpush1.bf16.msra.mxu0 %v819
        %1237 = vmatprep.subr.bf16.mxu0 0
        %1238 = vmatpush1.bf16.msra.mxu0 %v818
        %1239 = vmatprep.subr.bf16.mxu0 0
        %1240 = vmatpush1.bf16.msra.mxu0 %v817
        %1241 = vmatprep.subr.bf16.mxu0 0
        %1242 = vmatpush1.bf16.msra.mxu0 %v816
        %1243 = vmatprep.subr.bf16.mxu0 0
        %1244 = vmatpush1.bf16.msra.mxu0 %v815
        %1245 = vmatprep.subr.bf16.mxu0 0
        %1246 = vmatpush2.bf16.msra.mxu0 0
        %1247 = vmatprep.subr.bf16.mxu0 0
        %1248 = vmatpush2.bf16.msra.mxu0 0
        %1249 = vmatprep.subr.bf16.mxu0 0
        %1250 = vmatpush2.bf16.msra.mxu0 0
        %1251 = vmatprep.subr.bf16.mxu0 0
        %1252 = vmatpush2.bf16.msra.mxu0 0
        %1253 = vmatprep.subr.bf16.mxu0 0
        %1254 = vmatpush2.bf16.msra.mxu0 0
        %1255 = vmatprep.subr.bf16.mxu0 0
        %1256 = vmatpush2.bf16.msra.mxu0 0
        %1257 = vmatprep.subr.bf16.mxu0 0
        %1258 = vmatpush2.bf16.msra.mxu0 0
        %1259 = vmatprep.subr.bf16.mxu0 0
        %1260 = vmatpush2.bf16.msra.mxu0 0
        %1261 = vmatprep.mubr.bf16.mxu0 0
        %1262 = vmatmul.mubr.bf16.gmra.mxu0 %v1206
        %v1263 = vpop.f32.mrf.mxu0
        %v1264 = vadd.f32 0.0, %v1263
        %v1265 = vpop.f32.mrf.mxu0
        %v1266 = vpop.f32.mrf.mxu0
        %v1267 = vadd.f32 0.0, %v1266
        %v1268 = vpop.f32.mrf.mxu0
        %1269 = vmatprep.mubr.bf16.mxu0 0
        %1270 = vmatmul.mubr.bf16.gmra.mxu0 %v1209
        %v1271 = vpop.f32.mrf.mxu0
        %v1272 = vadd.f32 0.0, %v1271
        %v1273 = vpop.f32.mrf.mxu0
        %v1274 = vpop.f32.mrf.mxu0
        %v1275 = vadd.f32 0.0, %v1274
        %v1276 = vpop.f32.mrf.mxu0
        %1277 = vmatprep.mubr.bf16.mxu0 0
        %1278 = vmatmul.mubr.bf16.gmra.mxu0 %v1212
        %v1279 = vpop.f32.mrf.mxu0
        %v1280 = vadd.f32 0.0, %v1279
        %v1281 = vpop.f32.mrf.mxu0
        %v1282 = vpop.f32.mrf.mxu0
        %v1283 = vadd.f32 0.0, %v1282
        %v1284 = vpop.f32.mrf.mxu0
        %1285 = vmatprep.mubr.bf16.mxu0 0
        %1286 = vmatmul.mubr.bf16.gmra.mxu0 %v1215
        %v1287 = vpop.f32.mrf.mxu0
        %v1288 = vadd.f32 0.0, %v1287
        %v1289 = vpop.f32.mrf.mxu0
        %v1290 = vpop.f32.mrf.mxu0
        %v1291 = vadd.f32 0.0, %v1290
        %v1292 = vpop.f32.mrf.mxu0
        %1293 = vmatprep.mubr.bf16.mxu0 0
        %1294 = vmatmul.mubr.bf16.gmra.mxu0 %v1218
        %v1295 = vpop.f32.mrf.mxu0
        %v1296 = vadd.f32 0.0, %v1295
        %v1297 = vpop.f32.mrf.mxu0
        %v1298 = vpop.f32.mrf.mxu0
        %v1299 = vadd.f32 0.0, %v1298
        %v1300 = vpop.f32.mrf.mxu0
        %1301 = vmatprep.mubr.bf16.mxu0 0
        %1302 = vmatmul.mubr.bf16.gmra.mxu0 %v1221
        %v1303 = vpop.f32.mrf.mxu0
        %v1304 = vadd.f32 0.0, %v1303
        %v1305 = vpop.f32.mrf.mxu0
        %v1306 = vpop.f32.mrf.mxu0
        %v1307 = vadd.f32 0.0, %v1306
        %v1308 = vpop.f32.mrf.mxu0
        %1309 = vmatprep.mubr.bf16.mxu0 0
        %1310 = vmatmul.mubr.bf16.gmra.mxu0 %v1224
        %v1311 = vpop.f32.mrf.mxu0
        %v1312 = vadd.f32 0.0, %v1311
        %v1313 = vpop.f32.mrf.mxu0
        %v1314 = vpop.f32.mrf.mxu0
        %v1315 = vadd.f32 0.0, %v1314
        %v1316 = vpop.f32.mrf.mxu0
        %1317 = vmatprep.mubr.bf16.mxu0 0
        %1318 = vmatmul.mubr.bf16.gmra.mxu0 %v1227
        %v1319 = vpop.f32.mrf.mxu0
        %v1320 = vadd.f32 0.0, %v1319
        %v1321 = vpop.f32.mrf.mxu0
        %v1322 = vpop.f32.mrf.mxu0
        %v1323 = vadd.f32 0.0, %v1322
        %v1324 = vpop.f32.mrf.mxu0
        %1325 = vdwg.mxu0
        %v1326 = vmax.f32 %v1132, %v1264
        %v1327 = vmax.f32 %v1133, %v1267
        %v1328 = vmax.f32 %v1134, %v1272
        %v1329 = vmax.f32 %v1135, %v1275
        %v1330 = vmax.f32 %v1136, %v1280
        %v1331 = vmax.f32 %v1137, %v1283
        %v1332 = vmax.f32 %v1138, %v1288
        %v1333 = vmax.f32 %v1139, %v1291
        %v1334 = vmax.f32 %v1140, %v1296
        %v1335 = vmax.f32 %v1141, %v1299
        %v1336 = vmax.f32 %v1142, %v1304
        %v1337 = vmax.f32 %v1143, %v1307
        %v1338 = vmax.f32 %v1144, %v1312
        %v1339 = vmax.f32 %v1145, %v1315
        %v1340 = vmax.f32 %v1146, %v1320
        %v1341 = vmax.f32 %v1147, %v1323
        %s1342 = scalar_lea.vmem %s697, 192 [#allocation2]
        %v1343 = vld [vmem:[%s1342] sm:$0xf]
        %v1344 = vld [vmem:[%s1342 + $0x4] sm:$0xf]
        %v1345 = vld [vmem:[%s1342 + $0x8] sm:$0xf]
        %v1346 = vld [vmem:[%s1342 + $0xc] sm:$0xf]
        %v1347 = vld [vmem:[%s1342 + $0x10] sm:$0xf]
        %v1348 = vld [vmem:[%s1342 + $0x14] sm:$0xf]
        %v1349 = vld [vmem:[%s1342 + $0x18] sm:$0xf]
        %v1350 = vld [vmem:[%s1342 + $0x1c] sm:$0xf]
        %v1351 = vld [vmem:[%s1342 + $0x20] sm:$0xf]
        %v1352 = vld [vmem:[%s1342 + $0x24] sm:$0xf]
        %v1353 = vld [vmem:[%s1342 + $0x28] sm:$0xf]
        %v1354 = vld [vmem:[%s1342 + $0x2c] sm:$0xf]
        %v1355 = vld [vmem:[%s1342 + $0x30] sm:$0xf]
        %v1356 = vld [vmem:[%s1342 + $0x34] sm:$0xf]
        %v1357 = vld [vmem:[%s1342 + $0x38] sm:$0xf]
        %v1358 = vld [vmem:[%s1342 + $0x3c] sm:$0xf]
        %v1375 = vunpack.c.l.b16 %v1343
        %v1376 = vunpack.c.l.b16 %v1344
        %v1377 = vunpack.c.l.b16 %v1345
        %v1378 = vunpack.c.l.b16 %v1346
        %v1379 = vunpack.c.l.b16 %v1347
        %v1380 = vunpack.c.l.b16 %v1348
        %v1381 = vunpack.c.l.b16 %v1349
        %v1382 = vunpack.c.l.b16 %v1350
        %v1383 = vunpack.c.l.b16 %v1351
        %v1384 = vunpack.c.l.b16 %v1352
        %v1385 = vunpack.c.l.b16 %v1353
        %v1386 = vunpack.c.l.b16 %v1354
        %v1387 = vunpack.c.l.b16 %v1355
        %v1388 = vunpack.c.l.b16 %v1356
        %v1389 = vunpack.c.l.b16 %v1357
        %v1390 = vunpack.c.l.b16 %v1358
        %v1391 = vpack.c.b16 %v1376, %v1375
        %v1392 = vpack.c.b16 %v1378, %v1377
        %v1393 = vpack.c.b16 %v1380, %v1379
        %v1394 = vpack.c.b16 %v1382, %v1381
        %v1395 = vpack.c.b16 %v1384, %v1383
        %v1396 = vpack.c.b16 %v1386, %v1385
        %v1397 = vpack.c.b16 %v1388, %v1387
        %v1398 = vpack.c.b16 %v1390, %v1389
        %v1400 = vsel %vm826, %v1391, 0
        %v1403 = vsel %vm826, %v1392, 0
        %v1406 = vsel %vm826, %v1393, 0
        %v1409 = vsel %vm826, %v1394, 0
        %v1412 = vsel %vm826, %v1395, 0
        %v1415 = vsel %vm826, %v1396, 0
        %v1418 = vsel %vm826, %v1397, 0
        %v1421 = vsel %vm826, %v1398, 0
        %1423 = vmatprep.subr.bf16.mxu0 0
        %1424 = vmatpush1.bf16.msra.mxu0 0
        %1425 = vmatprep.subr.bf16.mxu0 0
        %1426 = vmatpush1.bf16.msra.mxu0 0
        %1427 = vmatprep.subr.bf16.mxu0 0
        %1428 = vmatpush1.bf16.msra.mxu0 %v855
        %1429 = vmatprep.subr.bf16.mxu0 0
        %1430 = vmatpush1.bf16.msra.mxu0 %v819
        %1431 = vmatprep.subr.bf16.mxu0 0
        %1432 = vmatpush1.bf16.msra.mxu0 %v818
        %1433 = vmatprep.subr.bf16.mxu0 0
        %1434 = vmatpush1.bf16.msra.mxu0 %v817
        %1435 = vmatprep.subr.bf16.mxu0 0
        %1436 = vmatpush1.bf16.msra.mxu0 %v816
        %1437 = vmatprep.subr.bf16.mxu0 0
        %1438 = vmatpush1.bf16.msra.mxu0 %v815
        %1439 = vmatprep.subr.bf16.mxu0 0
        %1440 = vmatpush2.bf16.msra.mxu0 0
        %1441 = vmatprep.subr.bf16.mxu0 0
        %1442 = vmatpush2.bf16.msra.mxu0 0
        %1443 = vmatprep.subr.bf16.mxu0 0
        %1444 = vmatpush2.bf16.msra.mxu0 0
        %1445 = vmatprep.subr.bf16.mxu0 0
        %1446 = vmatpush2.bf16.msra.mxu0 0
        %1447 = vmatprep.subr.bf16.mxu0 0
        %1448 = vmatpush2.bf16.msra.mxu0 0
        %1449 = vmatprep.subr.bf16.mxu0 0
        %1450 = vmatpush2.bf16.msra.mxu0 0
        %1451 = vmatprep.subr.bf16.mxu0 0
        %1452 = vmatpush2.bf16.msra.mxu0 0
        %1453 = vmatprep.subr.bf16.mxu0 0
        %1454 = vmatpush2.bf16.msra.mxu0 0
        %1455 = vmatprep.mubr.bf16.mxu0 0
        %1456 = vmatmul.mubr.bf16.gmra.mxu0 %v1400
        %v1457 = vpop.f32.mrf.mxu0
        %v1458 = vadd.f32 0.0, %v1457
        %v1459 = vpop.f32.mrf.mxu0
        %v1460 = vpop.f32.mrf.mxu0
        %v1461 = vadd.f32 0.0, %v1460
        %v1462 = vpop.f32.mrf.mxu0
        %1463 = vmatprep.mubr.bf16.mxu0 0
        %1464 = vmatmul.mubr.bf16.gmra.mxu0 %v1403
        %v1465 = vpop.f32.mrf.mxu0
        %v1466 = vadd.f32 0.0, %v1465
        %v1467 = vpop.f32.mrf.mxu0
        %v1468 = vpop.f32.mrf.mxu0
        %v1469 = vadd.f32 0.0, %v1468
        %v1470 = vpop.f32.mrf.mxu0
        %1471 = vmatprep.mubr.bf16.mxu0 0
        %1472 = vmatmul.mubr.bf16.gmra.mxu0 %v1406
        %v1473 = vpop.f32.mrf.mxu0
        %v1474 = vadd.f32 0.0, %v1473
        %v1475 = vpop.f32.mrf.mxu0
        %v1476 = vpop.f32.mrf.mxu0
        %v1477 = vadd.f32 0.0, %v1476
        %v1478 = vpop.f32.mrf.mxu0
        %1479 = vmatprep.mubr.bf16.mxu0 0
        %1480 = vmatmul.mubr.bf16.gmra.mxu0 %v1409
        %v1481 = vpop.f32.mrf.mxu0
        %v1482 = vadd.f32 0.0, %v1481
        %v1483 = vpop.f32.mrf.mxu0
        %v1484 = vpop.f32.mrf.mxu0
        %v1485 = vadd.f32 0.0, %v1484
        %v1486 = vpop.f32.mrf.mxu0
        %1487 = vmatprep.mubr.bf16.mxu0 0
        %1488 = vmatmul.mubr.bf16.gmra.mxu0 %v1412
        %v1489 = vpop.f32.mrf.mxu0
        %v1490 = vadd.f32 0.0, %v1489
        %v1491 = vpop.f32.mrf.mxu0
        %v1492 = vpop.f32.mrf.mxu0
        %v1493 = vadd.f32 0.0, %v1492
        %v1494 = vpop.f32.mrf.mxu0
        %1495 = vmatprep.mubr.bf16.mxu0 0
        %1496 = vmatmul.mubr.bf16.gmra.mxu0 %v1415
        %v1497 = vpop.f32.mrf.mxu0
        %v1498 = vadd.f32 0.0, %v1497
        %v1499 = vpop.f32.mrf.mxu0
        %v1500 = vpop.f32.mrf.mxu0
        %v1501 = vadd.f32 0.0, %v1500
        %v1502 = vpop.f32.mrf.mxu0
        %1503 = vmatprep.mubr.bf16.mxu0 0
        %1504 = vmatmul.mubr.bf16.gmra.mxu0 %v1418
        %v1505 = vpop.f32.mrf.mxu0
        %v1506 = vadd.f32 0.0, %v1505
        %v1507 = vpop.f32.mrf.mxu0
        %v1508 = vpop.f32.mrf.mxu0
        %v1509 = vadd.f32 0.0, %v1508
        %v1510 = vpop.f32.mrf.mxu0
        %1511 = vmatprep.mubr.bf16.mxu0 0
        %1512 = vmatmul.mubr.bf16.gmra.mxu0 %v1421
        %v1513 = vpop.f32.mrf.mxu0
        %v1514 = vadd.f32 0.0, %v1513
        %v1515 = vpop.f32.mrf.mxu0
        %v1516 = vpop.f32.mrf.mxu0
        %v1517 = vadd.f32 0.0, %v1516
        %v1518 = vpop.f32.mrf.mxu0
        %1519 = vdwg.mxu0
        %v1520 = vmax.f32 %v1326, %v1458
        %v1521 = vmax.f32 %v1327, %v1461
        %v1522 = vmax.f32 %v1328, %v1466
        %v1523 = vmax.f32 %v1329, %v1469
        %v1524 = vmax.f32 %v1330, %v1474
        %v1525 = vmax.f32 %v1331, %v1477
        %v1526 = vmax.f32 %v1332, %v1482
        %v1527 = vmax.f32 %v1333, %v1485
        %v1528 = vmax.f32 %v1334, %v1490
        %v1529 = vmax.f32 %v1335, %v1493
        %v1530 = vmax.f32 %v1336, %v1498
        %v1531 = vmax.f32 %v1337, %v1501
        %v1532 = vmax.f32 %v1338, %v1506
        %v1533 = vmax.f32 %v1339, %v1509
        %v1534 = vmax.f32 %v1340, %v1514
        %v1535 = vmax.f32 %v1341, %v1517
        %s1536 = scalar_lea.vmem %s697, 256 [#allocation2]
        %v1537 = vld [vmem:[%s1536] sm:$0xf]
        %v1538 = vld [vmem:[%s1536 + $0x4] sm:$0xf]
        %v1539 = vld [vmem:[%s1536 + $0x8] sm:$0xf]
        %v1540 = vld [vmem:[%s1536 + $0xc] sm:$0xf]
        %v1541 = vld [vmem:[%s1536 + $0x10] sm:$0xf]
        %v1542 = vld [vmem:[%s1536 + $0x14] sm:$0xf]
        %v1543 = vld [vmem:[%s1536 + $0x18] sm:$0xf]
        %v1544 = vld [vmem:[%s1536 + $0x1c] sm:$0xf]
        %v1545 = vld [vmem:[%s1536 + $0x20] sm:$0xf]
        %v1546 = vld [vmem:[%s1536 + $0x24] sm:$0xf]
        %v1547 = vld [vmem:[%s1536 + $0x28] sm:$0xf]
        %v1548 = vld [vmem:[%s1536 + $0x2c] sm:$0xf]
        %v1549 = vld [vmem:[%s1536 + $0x30] sm:$0xf]
        %v1550 = vld [vmem:[%s1536 + $0x34] sm:$0xf]
        %v1551 = vld [vmem:[%s1536 + $0x38] sm:$0xf]
        %v1552 = vld [vmem:[%s1536 + $0x3c] sm:$0xf]
        %v1569 = vunpack.c.l.b16 %v1537
        %v1570 = vunpack.c.l.b16 %v1538
        %v1571 = vunpack.c.l.b16 %v1539
        %v1572 = vunpack.c.l.b16 %v1540
        %v1573 = vunpack.c.l.b16 %v1541
        %v1574 = vunpack.c.l.b16 %v1542
        %v1575 = vunpack.c.l.b16 %v1543
        %v1576 = vunpack.c.l.b16 %v1544
        %v1577 = vunpack.c.l.b16 %v1545
        %v1578 = vunpack.c.l.b16 %v1546
        %v1579 = vunpack.c.l.b16 %v1547
        %v1580 = vunpack.c.l.b16 %v1548
        %v1581 = vunpack.c.l.b16 %v1549
        %v1582 = vunpack.c.l.b16 %v1550
        %v1583 = vunpack.c.l.b16 %v1551
        %v1584 = vunpack.c.l.b16 %v1552
        %v1585 = vpack.c.b16 %v1570, %v1569
        %v1586 = vpack.c.b16 %v1572, %v1571
        %v1587 = vpack.c.b16 %v1574, %v1573
        %v1588 = vpack.c.b16 %v1576, %v1575
        %v1589 = vpack.c.b16 %v1578, %v1577
        %v1590 = vpack.c.b16 %v1580, %v1579
        %v1591 = vpack.c.b16 %v1582, %v1581
        %v1592 = vpack.c.b16 %v1584, %v1583
        %v1594 = vsel %vm826, %v1585, 0
        %v1597 = vsel %vm826, %v1586, 0
        %v1600 = vsel %vm826, %v1587, 0
        %v1603 = vsel %vm826, %v1588, 0
        %v1606 = vsel %vm826, %v1589, 0
        %v1609 = vsel %vm826, %v1590, 0
        %v1612 = vsel %vm826, %v1591, 0
        %v1615 = vsel %vm826, %v1592, 0
        %1617 = vmatprep.subr.bf16.mxu0 0
        %1618 = vmatpush1.bf16.msra.mxu0 0
        %1619 = vmatprep.subr.bf16.mxu0 0
        %1620 = vmatpush1.bf16.msra.mxu0 0
        %1621 = vmatprep.subr.bf16.mxu0 0
        %1622 = vmatpush1.bf16.msra.mxu0 %v855
        %1623 = vmatprep.subr.bf16.mxu0 0
        %1624 = vmatpush1.bf16.msra.mxu0 %v819
        %1625 = vmatprep.subr.bf16.mxu0 0
        %1626 = vmatpush1.bf16.msra.mxu0 %v818
        %1627 = vmatprep.subr.bf16.mxu0 0
        %1628 = vmatpush1.bf16.msra.mxu0 %v817
        %1629 = vmatprep.subr.bf16.mxu0 0
        %1630 = vmatpush1.bf16.msra.mxu0 %v816
        %1631 = vmatprep.subr.bf16.mxu0 0
        %1632 = vmatpush1.bf16.msra.mxu0 %v815
        %1633 = vmatprep.subr.bf16.mxu0 0
        %1634 = vmatpush2.bf16.msra.mxu0 0
        %1635 = vmatprep.subr.bf16.mxu0 0
        %1636 = vmatpush2.bf16.msra.mxu0 0
        %1637 = vmatprep.subr.bf16.mxu0 0
        %1638 = vmatpush2.bf16.msra.mxu0 0
        %1639 = vmatprep.subr.bf16.mxu0 0
        %1640 = vmatpush2.bf16.msra.mxu0 0
        %1641 = vmatprep.subr.bf16.mxu0 0
        %1642 = vmatpush2.bf16.msra.mxu0 0
        %1643 = vmatprep.subr.bf16.mxu0 0
        %1644 = vmatpush2.bf16.msra.mxu0 0
        %1645 = vmatprep.subr.bf16.mxu0 0
        %1646 = vmatpush2.bf16.msra.mxu0 0
        %1647 = vmatprep.subr.bf16.mxu0 0
        %1648 = vmatpush2.bf16.msra.mxu0 0
        %1649 = vmatprep.mubr.bf16.mxu0 0
        %1650 = vmatmul.mubr.bf16.gmra.mxu0 %v1594
        %v1651 = vpop.f32.mrf.mxu0
        %v1652 = vadd.f32 0.0, %v1651
        %v1653 = vpop.f32.mrf.mxu0
        %v1654 = vpop.f32.mrf.mxu0
        %v1655 = vadd.f32 0.0, %v1654
        %v1656 = vpop.f32.mrf.mxu0
        %1657 = vmatprep.mubr.bf16.mxu0 0
        %1658 = vmatmul.mubr.bf16.gmra.mxu0 %v1597
        %v1659 = vpop.f32.mrf.mxu0
        %v1660 = vadd.f32 0.0, %v1659
        %v1661 = vpop.f32.mrf.mxu0
        %v1662 = vpop.f32.mrf.mxu0
        %v1663 = vadd.f32 0.0, %v1662
        %v1664 = vpop.f32.mrf.mxu0
        %1665 = vmatprep.mubr.bf16.mxu0 0
        %1666 = vmatmul.mubr.bf16.gmra.mxu0 %v1600
        %v1667 = vpop.f32.mrf.mxu0
        %v1668 = vadd.f32 0.0, %v1667
        %v1669 = vpop.f32.mrf.mxu0
        %v1670 = vpop.f32.mrf.mxu0
        %v1671 = vadd.f32 0.0, %v1670
        %v1672 = vpop.f32.mrf.mxu0
        %1673 = vmatprep.mubr.bf16.mxu0 0
        %1674 = vmatmul.mubr.bf16.gmra.mxu0 %v1603
        %v1675 = vpop.f32.mrf.mxu0
        %v1676 = vadd.f32 0.0, %v1675
        %v1677 = vpop.f32.mrf.mxu0
        %v1678 = vpop.f32.mrf.mxu0
        %v1679 = vadd.f32 0.0, %v1678
        %v1680 = vpop.f32.mrf.mxu0
        %1681 = vmatprep.mubr.bf16.mxu0 0
        %1682 = vmatmul.mubr.bf16.gmra.mxu0 %v1606
        %v1683 = vpop.f32.mrf.mxu0
        %v1684 = vadd.f32 0.0, %v1683
        %v1685 = vpop.f32.mrf.mxu0
        %v1686 = vpop.f32.mrf.mxu0
        %v1687 = vadd.f32 0.0, %v1686
        %v1688 = vpop.f32.mrf.mxu0
        %1689 = vmatprep.mubr.bf16.mxu0 0
        %1690 = vmatmul.mubr.bf16.gmra.mxu0 %v1609
        %v1691 = vpop.f32.mrf.mxu0
        %v1692 = vadd.f32 0.0, %v1691
        %v1693 = vpop.f32.mrf.mxu0
        %v1694 = vpop.f32.mrf.mxu0
        %v1695 = vadd.f32 0.0, %v1694
        %v1696 = vpop.f32.mrf.mxu0
        %1697 = vmatprep.mubr.bf16.mxu0 0
        %1698 = vmatmul.mubr.bf16.gmra.mxu0 %v1612
        %v1699 = vpop.f32.mrf.mxu0
        %v1700 = vadd.f32 0.0, %v1699
        %v1701 = vpop.f32.mrf.mxu0
        %v1702 = vpop.f32.mrf.mxu0
        %v1703 = vadd.f32 0.0, %v1702
        %v1704 = vpop.f32.mrf.mxu0
        %1705 = vmatprep.mubr.bf16.mxu0 0
        %1706 = vmatmul.mubr.bf16.gmra.mxu0 %v1615
        %v1707 = vpop.f32.mrf.mxu0
        %v1708 = vadd.f32 0.0, %v1707
        %v1709 = vpop.f32.mrf.mxu0
        %v1710 = vpop.f32.mrf.mxu0
        %v1711 = vadd.f32 0.0, %v1710
        %v1712 = vpop.f32.mrf.mxu0
        %1713 = vdwg.mxu0
        %v1714 = vmax.f32 %v1520, %v1652
        %v1715 = vmax.f32 %v1521, %v1655
        %v1716 = vmax.f32 %v1522, %v1660
        %v1717 = vmax.f32 %v1523, %v1663
        %v1718 = vmax.f32 %v1524, %v1668
        %v1719 = vmax.f32 %v1525, %v1671
        %v1720 = vmax.f32 %v1526, %v1676
        %v1721 = vmax.f32 %v1527, %v1679
        %v1722 = vmax.f32 %v1528, %v1684
        %v1723 = vmax.f32 %v1529, %v1687
        %v1724 = vmax.f32 %v1530, %v1692
        %v1725 = vmax.f32 %v1531, %v1695
        %v1726 = vmax.f32 %v1532, %v1700
        %v1727 = vmax.f32 %v1533, %v1703
        %v1728 = vmax.f32 %v1534, %v1708
        %v1729 = vmax.f32 %v1535, %v1711
        %s1730 = scalar_lea.vmem %s697, 320 [#allocation2]
        %v1731 = vld [vmem:[%s1730] sm:$0xf]
        %v1732 = vld [vmem:[%s1730 + $0x4] sm:$0xf]
        %v1733 = vld [vmem:[%s1730 + $0x8] sm:$0xf]
        %v1734 = vld [vmem:[%s1730 + $0xc] sm:$0xf]
        %v1735 = vld [vmem:[%s1730 + $0x10] sm:$0xf]
        %v1736 = vld [vmem:[%s1730 + $0x14] sm:$0xf]
        %v1737 = vld [vmem:[%s1730 + $0x18] sm:$0xf]
        %v1738 = vld [vmem:[%s1730 + $0x1c] sm:$0xf]
        %v1739 = vld [vmem:[%s1730 + $0x20] sm:$0xf]
        %v1740 = vld [vmem:[%s1730 + $0x24] sm:$0xf]
        %v1741 = vld [vmem:[%s1730 + $0x28] sm:$0xf]
        %v1742 = vld [vmem:[%s1730 + $0x2c] sm:$0xf]
        %v1743 = vld [vmem:[%s1730 + $0x30] sm:$0xf]
        %v1744 = vld [vmem:[%s1730 + $0x34] sm:$0xf]
        %v1745 = vld [vmem:[%s1730 + $0x38] sm:$0xf]
        %v1746 = vld [vmem:[%s1730 + $0x3c] sm:$0xf]
        %v1763 = vunpack.c.l.b16 %v1731
        %v1764 = vunpack.c.l.b16 %v1732
        %v1765 = vunpack.c.l.b16 %v1733
        %v1766 = vunpack.c.l.b16 %v1734
        %v1767 = vunpack.c.l.b16 %v1735
        %v1768 = vunpack.c.l.b16 %v1736
        %v1769 = vunpack.c.l.b16 %v1737
        %v1770 = vunpack.c.l.b16 %v1738
        %v1771 = vunpack.c.l.b16 %v1739
        %v1772 = vunpack.c.l.b16 %v1740
        %v1773 = vunpack.c.l.b16 %v1741
        %v1774 = vunpack.c.l.b16 %v1742
        %v1775 = vunpack.c.l.b16 %v1743
        %v1776 = vunpack.c.l.b16 %v1744
        %v1777 = vunpack.c.l.b16 %v1745
        %v1778 = vunpack.c.l.b16 %v1746
        %v1779 = vpack.c.b16 %v1764, %v1763
        %v1780 = vpack.c.b16 %v1766, %v1765
        %v1781 = vpack.c.b16 %v1768, %v1767
        %v1782 = vpack.c.b16 %v1770, %v1769
        %v1783 = vpack.c.b16 %v1772, %v1771
        %v1784 = vpack.c.b16 %v1774, %v1773
        %v1785 = vpack.c.b16 %v1776, %v1775
        %v1786 = vpack.c.b16 %v1778, %v1777
        %v1788 = vsel %vm826, %v1779, 0
        %v1791 = vsel %vm826, %v1780, 0
        %v1794 = vsel %vm826, %v1781, 0
        %v1797 = vsel %vm826, %v1782, 0
        %v1800 = vsel %vm826, %v1783, 0
        %v1803 = vsel %vm826, %v1784, 0
        %v1806 = vsel %vm826, %v1785, 0
        %v1809 = vsel %vm826, %v1786, 0
        %1811 = vmatprep.subr.bf16.mxu0 0
        %1812 = vmatpush1.bf16.msra.mxu0 0
        %1813 = vmatprep.subr.bf16.mxu0 0
        %1814 = vmatpush1.bf16.msra.mxu0 0
        %1815 = vmatprep.subr.bf16.mxu0 0
        %1816 = vmatpush1.bf16.msra.mxu0 %v855
        %1817 = vmatprep.subr.bf16.mxu0 0
        %1818 = vmatpush1.bf16.msra.mxu0 %v819
        %1819 = vmatprep.subr.bf16.mxu0 0
        %1820 = vmatpush1.bf16.msra.mxu0 %v818
        %1821 = vmatprep.subr.bf16.mxu0 0
        %1822 = vmatpush1.bf16.msra.mxu0 %v817
        %1823 = vmatprep.subr.bf16.mxu0 0
        %1824 = vmatpush1.bf16.msra.mxu0 %v816
        %1825 = vmatprep.subr.bf16.mxu0 0
        %1826 = vmatpush1.bf16.msra.mxu0 %v815
        %1827 = vmatprep.subr.bf16.mxu0 0
        %1828 = vmatpush2.bf16.msra.mxu0 0
        %1829 = vmatprep.subr.bf16.mxu0 0
        %1830 = vmatpush2.bf16.msra.mxu0 0
        %1831 = vmatprep.subr.bf16.mxu0 0
        %1832 = vmatpush2.bf16.msra.mxu0 0
        %1833 = vmatprep.subr.bf16.mxu0 0
        %1834 = vmatpush2.bf16.msra.mxu0 0
        %1835 = vmatprep.subr.bf16.mxu0 0
        %1836 = vmatpush2.bf16.msra.mxu0 0
        %1837 = vmatprep.subr.bf16.mxu0 0
        %1838 = vmatpush2.bf16.msra.mxu0 0
        %1839 = vmatprep.subr.bf16.mxu0 0
        %1840 = vmatpush2.bf16.msra.mxu0 0
        %1841 = vmatprep.subr.bf16.mxu0 0
        %1842 = vmatpush2.bf16.msra.mxu0 0
        %1843 = vmatprep.mubr.bf16.mxu0 0
        %1844 = vmatmul.mubr.bf16.gmra.mxu0 %v1788
        %v1845 = vpop.f32.mrf.mxu0
        %v1846 = vadd.f32 0.0, %v1845
        %v1847 = vpop.f32.mrf.mxu0
        %v1848 = vpop.f32.mrf.mxu0
        %v1849 = vadd.f32 0.0, %v1848
        %v1850 = vpop.f32.mrf.mxu0
        %1851 = vmatprep.mubr.bf16.mxu0 0
        %1852 = vmatmul.mubr.bf16.gmra.mxu0 %v1791
        %v1853 = vpop.f32.mrf.mxu0
        %v1854 = vadd.f32 0.0, %v1853
        %v1855 = vpop.f32.mrf.mxu0
        %v1856 = vpop.f32.mrf.mxu0
        %v1857 = vadd.f32 0.0, %v1856
        %v1858 = vpop.f32.mrf.mxu0
        %1859 = vmatprep.mubr.bf16.mxu0 0
        %1860 = vmatmul.mubr.bf16.gmra.mxu0 %v1794
        %v1861 = vpop.f32.mrf.mxu0
        %v1862 = vadd.f32 0.0, %v1861
        %v1863 = vpop.f32.mrf.mxu0
        %v1864 = vpop.f32.mrf.mxu0
        %v1865 = vadd.f32 0.0, %v1864
        %v1866 = vpop.f32.mrf.mxu0
        %1867 = vmatprep.mubr.bf16.mxu0 0
        %1868 = vmatmul.mubr.bf16.gmra.mxu0 %v1797
        %v1869 = vpop.f32.mrf.mxu0
        %v1870 = vadd.f32 0.0, %v1869
        %v1871 = vpop.f32.mrf.mxu0
        %v1872 = vpop.f32.mrf.mxu0
        %v1873 = vadd.f32 0.0, %v1872
        %v1874 = vpop.f32.mrf.mxu0
        %1875 = vmatprep.mubr.bf16.mxu0 0
        %1876 = vmatmul.mubr.bf16.gmra.mxu0 %v1800
        %v1877 = vpop.f32.mrf.mxu0
        %v1878 = vadd.f32 0.0, %v1877
        %v1879 = vpop.f32.mrf.mxu0
        %v1880 = vpop.f32.mrf.mxu0
        %v1881 = vadd.f32 0.0, %v1880
        %v1882 = vpop.f32.mrf.mxu0
        %1883 = vmatprep.mubr.bf16.mxu0 0
        %1884 = vmatmul.mubr.bf16.gmra.mxu0 %v1803
        %v1885 = vpop.f32.mrf.mxu0
        %v1886 = vadd.f32 0.0, %v1885
        %v1887 = vpop.f32.mrf.mxu0
        %v1888 = vpop.f32.mrf.mxu0
        %v1889 = vadd.f32 0.0, %v1888
        %v1890 = vpop.f32.mrf.mxu0
        %1891 = vmatprep.mubr.bf16.mxu0 0
        %1892 = vmatmul.mubr.bf16.gmra.mxu0 %v1806
        %v1893 = vpop.f32.mrf.mxu0
        %v1894 = vadd.f32 0.0, %v1893
        %v1895 = vpop.f32.mrf.mxu0
        %v1896 = vpop.f32.mrf.mxu0
        %v1897 = vadd.f32 0.0, %v1896
        %v1898 = vpop.f32.mrf.mxu0
        %1899 = vmatprep.mubr.bf16.mxu0 0
        %1900 = vmatmul.mubr.bf16.gmra.mxu0 %v1809
        %v1901 = vpop.f32.mrf.mxu0
        %v1902 = vadd.f32 0.0, %v1901
        %v1903 = vpop.f32.mrf.mxu0
        %v1904 = vpop.f32.mrf.mxu0
        %v1905 = vadd.f32 0.0, %v1904
        %v1906 = vpop.f32.mrf.mxu0
        %1907 = vdwg.mxu0
        %v1908 = vmax.f32 %v1714, %v1846
        %v1909 = vmax.f32 %v1715, %v1849
        %v1910 = vmax.f32 %v1716, %v1854
        %v1911 = vmax.f32 %v1717, %v1857
        %v1912 = vmax.f32 %v1718, %v1862
        %v1913 = vmax.f32 %v1719, %v1865
        %v1914 = vmax.f32 %v1720, %v1870
        %v1915 = vmax.f32 %v1721, %v1873
        %v1916 = vmax.f32 %v1722, %v1878
        %v1917 = vmax.f32 %v1723, %v1881
        %v1918 = vmax.f32 %v1724, %v1886
        %v1919 = vmax.f32 %v1725, %v1889
        %v1920 = vmax.f32 %v1726, %v1894
        %v1921 = vmax.f32 %v1727, %v1897
        %v1922 = vmax.f32 %v1728, %v1902
        %v1923 = vmax.f32 %v1729, %v1905
        %s1924 = scalar_lea.vmem %s697, 384 [#allocation2]
        %v1925 = vld [vmem:[%s1924] sm:$0xf]
        %v1926 = vld [vmem:[%s1924 + $0x4] sm:$0xf]
        %v1927 = vld [vmem:[%s1924 + $0x8] sm:$0xf]
        %v1928 = vld [vmem:[%s1924 + $0xc] sm:$0xf]
        %v1929 = vld [vmem:[%s1924 + $0x10] sm:$0xf]
        %v1930 = vld [vmem:[%s1924 + $0x14] sm:$0xf]
        %v1931 = vld [vmem:[%s1924 + $0x18] sm:$0xf]
        %v1932 = vld [vmem:[%s1924 + $0x1c] sm:$0xf]
        %v1933 = vld [vmem:[%s1924 + $0x20] sm:$0xf]
        %v1934 = vld [vmem:[%s1924 + $0x24] sm:$0xf]
        %v1935 = vld [vmem:[%s1924 + $0x28] sm:$0xf]
        %v1936 = vld [vmem:[%s1924 + $0x2c] sm:$0xf]
        %v1937 = vld [vmem:[%s1924 + $0x30] sm:$0xf]
        %v1938 = vld [vmem:[%s1924 + $0x34] sm:$0xf]
        %v1939 = vld [vmem:[%s1924 + $0x38] sm:$0xf]
        %v1940 = vld [vmem:[%s1924 + $0x3c] sm:$0xf]
        %v1957 = vunpack.c.l.b16 %v1925
        %v1958 = vunpack.c.l.b16 %v1926
        %v1959 = vunpack.c.l.b16 %v1927
        %v1960 = vunpack.c.l.b16 %v1928
        %v1961 = vunpack.c.l.b16 %v1929
        %v1962 = vunpack.c.l.b16 %v1930
        %v1963 = vunpack.c.l.b16 %v1931
        %v1964 = vunpack.c.l.b16 %v1932
        %v1965 = vunpack.c.l.b16 %v1933
        %v1966 = vunpack.c.l.b16 %v1934
        %v1967 = vunpack.c.l.b16 %v1935
        %v1968 = vunpack.c.l.b16 %v1936
        %v1969 = vunpack.c.l.b16 %v1937
        %v1970 = vunpack.c.l.b16 %v1938
        %v1971 = vunpack.c.l.b16 %v1939
        %v1972 = vunpack.c.l.b16 %v1940
        %v1973 = vpack.c.b16 %v1958, %v1957
        %v1974 = vpack.c.b16 %v1960, %v1959
        %v1975 = vpack.c.b16 %v1962, %v1961
        %v1976 = vpack.c.b16 %v1964, %v1963
        %v1977 = vpack.c.b16 %v1966, %v1965
        %v1978 = vpack.c.b16 %v1968, %v1967
        %v1979 = vpack.c.b16 %v1970, %v1969
        %v1980 = vpack.c.b16 %v1972, %v1971
        %v1982 = vsel %vm826, %v1973, 0
        %v1985 = vsel %vm826, %v1974, 0
        %v1988 = vsel %vm826, %v1975, 0
        %v1991 = vsel %vm826, %v1976, 0
        %v1994 = vsel %vm826, %v1977, 0
        %v1997 = vsel %vm826, %v1978, 0
        %v2000 = vsel %vm826, %v1979, 0
        %v2003 = vsel %vm826, %v1980, 0
        %2005 = vmatprep.subr.bf16.mxu0 0
        %2006 = vmatpush1.bf16.msra.mxu0 0
        %2007 = vmatprep.subr.bf16.mxu0 0
        %2008 = vmatpush1.bf16.msra.mxu0 0
        %2009 = vmatprep.subr.bf16.mxu0 0
        %2010 = vmatpush1.bf16.msra.mxu0 %v855
        %2011 = vmatprep.subr.bf16.mxu0 0
        %2012 = vmatpush1.bf16.msra.mxu0 %v819
        %2013 = vmatprep.subr.bf16.mxu0 0
        %2014 = vmatpush1.bf16.msra.mxu0 %v818
        %2015 = vmatprep.subr.bf16.mxu0 0
        %2016 = vmatpush1.bf16.msra.mxu0 %v817
        %2017 = vmatprep.subr.bf16.mxu0 0
        %2018 = vmatpush1.bf16.msra.mxu0 %v816
        %2019 = vmatprep.subr.bf16.mxu0 0
        %2020 = vmatpush1.bf16.msra.mxu0 %v815
        %2021 = vmatprep.subr.bf16.mxu0 0
        %2022 = vmatpush2.bf16.msra.mxu0 0
        %2023 = vmatprep.subr.bf16.mxu0 0
        %2024 = vmatpush2.bf16.msra.mxu0 0
        %2025 = vmatprep.subr.bf16.mxu0 0
        %2026 = vmatpush2.bf16.msra.mxu0 0
        %2027 = vmatprep.subr.bf16.mxu0 0
        %2028 = vmatpush2.bf16.msra.mxu0 0
        %2029 = vmatprep.subr.bf16.mxu0 0
        %2030 = vmatpush2.bf16.msra.mxu0 0
        %2031 = vmatprep.subr.bf16.mxu0 0
        %2032 = vmatpush2.bf16.msra.mxu0 0
        %2033 = vmatprep.subr.bf16.mxu0 0
        %2034 = vmatpush2.bf16.msra.mxu0 0
        %2035 = vmatprep.subr.bf16.mxu0 0
        %2036 = vmatpush2.bf16.msra.mxu0 0
        %2037 = vmatprep.mubr.bf16.mxu0 0
        %2038 = vmatmul.mubr.bf16.gmra.mxu0 %v1982
        %v2039 = vpop.f32.mrf.mxu0
        %v2040 = vadd.f32 0.0, %v2039
        %v2041 = vpop.f32.mrf.mxu0
        %v2042 = vpop.f32.mrf.mxu0
        %v2043 = vadd.f32 0.0, %v2042
        %v2044 = vpop.f32.mrf.mxu0
        %2045 = vmatprep.mubr.bf16.mxu0 0
        %2046 = vmatmul.mubr.bf16.gmra.mxu0 %v1985
        %v2047 = vpop.f32.mrf.mxu0
        %v2048 = vadd.f32 0.0, %v2047
        %v2049 = vpop.f32.mrf.mxu0
        %v2050 = vpop.f32.mrf.mxu0
        %v2051 = vadd.f32 0.0, %v2050
        %v2052 = vpop.f32.mrf.mxu0
        %2053 = vmatprep.mubr.bf16.mxu0 0
        %2054 = vmatmul.mubr.bf16.gmra.mxu0 %v1988
        %v2055 = vpop.f32.mrf.mxu0
        %v2056 = vadd.f32 0.0, %v2055
        %v2057 = vpop.f32.mrf.mxu0
        %v2058 = vpop.f32.mrf.mxu0
        %v2059 = vadd.f32 0.0, %v2058
        %v2060 = vpop.f32.mrf.mxu0
        %2061 = vmatprep.mubr.bf16.mxu0 0
        %2062 = vmatmul.mubr.bf16.gmra.mxu0 %v1991
        %v2063 = vpop.f32.mrf.mxu0
        %v2064 = vadd.f32 0.0, %v2063
        %v2065 = vpop.f32.mrf.mxu0
        %v2066 = vpop.f32.mrf.mxu0
        %v2067 = vadd.f32 0.0, %v2066
        %v2068 = vpop.f32.mrf.mxu0
        %2069 = vmatprep.mubr.bf16.mxu0 0
        %2070 = vmatmul.mubr.bf16.gmra.mxu0 %v1994
        %v2071 = vpop.f32.mrf.mxu0
        %v2072 = vadd.f32 0.0, %v2071
        %v2073 = vpop.f32.mrf.mxu0
        %v2074 = vpop.f32.mrf.mxu0
        %v2075 = vadd.f32 0.0, %v2074
        %v2076 = vpop.f32.mrf.mxu0
        %2077 = vmatprep.mubr.bf16.mxu0 0
        %2078 = vmatmul.mubr.bf16.gmra.mxu0 %v1997
        %v2079 = vpop.f32.mrf.mxu0
        %v2080 = vadd.f32 0.0, %v2079
        %v2081 = vpop.f32.mrf.mxu0
        %v2082 = vpop.f32.mrf.mxu0
        %v2083 = vadd.f32 0.0, %v2082
        %v2084 = vpop.f32.mrf.mxu0
        %2085 = vmatprep.mubr.bf16.mxu0 0
        %2086 = vmatmul.mubr.bf16.gmra.mxu0 %v2000
        %v2087 = vpop.f32.mrf.mxu0
        %v2088 = vadd.f32 0.0, %v2087
        %v2089 = vpop.f32.mrf.mxu0
        %v2090 = vpop.f32.mrf.mxu0
        %v2091 = vadd.f32 0.0, %v2090
        %v2092 = vpop.f32.mrf.mxu0
        %2093 = vmatprep.mubr.bf16.mxu0 0
        %2094 = vmatmul.mubr.bf16.gmra.mxu0 %v2003
        %v2095 = vpop.f32.mrf.mxu0
        %v2096 = vadd.f32 0.0, %v2095
        %v2097 = vpop.f32.mrf.mxu0
        %v2098 = vpop.f32.mrf.mxu0
        %v2099 = vadd.f32 0.0, %v2098
        %v2100 = vpop.f32.mrf.mxu0
        %2101 = vdwg.mxu0
        %v2102 = vmax.f32 %v1908, %v2040
        %v2103 = vmax.f32 %v1909, %v2043
        %v2104 = vmax.f32 %v1910, %v2048
        %v2105 = vmax.f32 %v1911, %v2051
        %v2106 = vmax.f32 %v1912, %v2056
        %v2107 = vmax.f32 %v1913, %v2059
        %v2108 = vmax.f32 %v1914, %v2064
        %v2109 = vmax.f32 %v1915, %v2067
        %v2110 = vmax.f32 %v1916, %v2072
        %v2111 = vmax.f32 %v1917, %v2075
        %v2112 = vmax.f32 %v1918, %v2080
        %v2113 = vmax.f32 %v1919, %v2083
        %v2114 = vmax.f32 %v1920, %v2088
        %v2115 = vmax.f32 %v1921, %v2091
        %v2116 = vmax.f32 %v1922, %v2096
        %v2117 = vmax.f32 %v1923, %v2099
        %s2118 = scalar_lea.vmem %s697, 448 [#allocation2]
        %v2119 = vld [vmem:[%s2118] sm:$0xf]
        %v2120 = vld [vmem:[%s2118 + $0x4] sm:$0xf]
        %v2121 = vld [vmem:[%s2118 + $0x8] sm:$0xf]
        %v2122 = vld [vmem:[%s2118 + $0xc] sm:$0xf]
        %v2123 = vld [vmem:[%s2118 + $0x10] sm:$0xf]
        %v2124 = vld [vmem:[%s2118 + $0x14] sm:$0xf]
        %v2125 = vld [vmem:[%s2118 + $0x18] sm:$0xf]
        %v2126 = vld [vmem:[%s2118 + $0x1c] sm:$0xf]
        %v2127 = vld [vmem:[%s2118 + $0x20] sm:$0xf]
        %v2128 = vld [vmem:[%s2118 + $0x24] sm:$0xf]
        %v2129 = vld [vmem:[%s2118 + $0x28] sm:$0xf]
        %v2130 = vld [vmem:[%s2118 + $0x2c] sm:$0xf]
        %v2131 = vld [vmem:[%s2118 + $0x30] sm:$0xf]
        %v2132 = vld [vmem:[%s2118 + $0x34] sm:$0xf]
        %v2133 = vld [vmem:[%s2118 + $0x38] sm:$0xf]
        %v2134 = vld [vmem:[%s2118 + $0x3c] sm:$0xf]
        %v2151 = vunpack.c.l.b16 %v2119
        %v2152 = vunpack.c.l.b16 %v2120
        %v2153 = vunpack.c.l.b16 %v2121
        %v2154 = vunpack.c.l.b16 %v2122
        %v2155 = vunpack.c.l.b16 %v2123
        %v2156 = vunpack.c.l.b16 %v2124
        %v2157 = vunpack.c.l.b16 %v2125
        %v2158 = vunpack.c.l.b16 %v2126
        %v2159 = vunpack.c.l.b16 %v2127
        %v2160 = vunpack.c.l.b16 %v2128
        %v2161 = vunpack.c.l.b16 %v2129
        %v2162 = vunpack.c.l.b16 %v2130
        %v2163 = vunpack.c.l.b16 %v2131
        %v2164 = vunpack.c.l.b16 %v2132
        %v2165 = vunpack.c.l.b16 %v2133
        %v2166 = vunpack.c.l.b16 %v2134
        %v2167 = vpack.c.b16 %v2152, %v2151
        %v2168 = vpack.c.b16 %v2154, %v2153
        %v2169 = vpack.c.b16 %v2156, %v2155
        %v2170 = vpack.c.b16 %v2158, %v2157
        %v2171 = vpack.c.b16 %v2160, %v2159
        %v2172 = vpack.c.b16 %v2162, %v2161
        %v2173 = vpack.c.b16 %v2164, %v2163
        %v2174 = vpack.c.b16 %v2166, %v2165
        %v2176 = vsel %vm826, %v2167, 0
        %v2179 = vsel %vm826, %v2168, 0
        %v2182 = vsel %vm826, %v2169, 0
        %v2185 = vsel %vm826, %v2170, 0
        %v2188 = vsel %vm826, %v2171, 0
        %v2191 = vsel %vm826, %v2172, 0
        %v2194 = vsel %vm826, %v2173, 0
        %v2197 = vsel %vm826, %v2174, 0
        %2199 = vmatprep.subr.bf16.mxu0 0
        %2200 = vmatpush1.bf16.msra.mxu0 0
        %2201 = vmatprep.subr.bf16.mxu0 0
        %2202 = vmatpush1.bf16.msra.mxu0 0
        %2203 = vmatprep.subr.bf16.mxu0 0
        %2204 = vmatpush1.bf16.msra.mxu0 %v855
        %2205 = vmatprep.subr.bf16.mxu0 0
        %2206 = vmatpush1.bf16.msra.mxu0 %v819
        %2207 = vmatprep.subr.bf16.mxu0 0
        %2208 = vmatpush1.bf16.msra.mxu0 %v818
        %2209 = vmatprep.subr.bf16.mxu0 0
        %2210 = vmatpush1.bf16.msra.mxu0 %v817
        %2211 = vmatprep.subr.bf16.mxu0 0
        %2212 = vmatpush1.bf16.msra.mxu0 %v816
        %2213 = vmatprep.subr.bf16.mxu0 0
        %2214 = vmatpush1.bf16.msra.mxu0 %v815
        %2215 = vmatprep.subr.bf16.mxu0 0
        %2216 = vmatpush2.bf16.msra.mxu0 0
        %2217 = vmatprep.subr.bf16.mxu0 0
        %2218 = vmatpush2.bf16.msra.mxu0 0
        %2219 = vmatprep.subr.bf16.mxu0 0
        %2220 = vmatpush2.bf16.msra.mxu0 0
        %2221 = vmatprep.subr.bf16.mxu0 0
        %2222 = vmatpush2.bf16.msra.mxu0 0
        %2223 = vmatprep.subr.bf16.mxu0 0
        %2224 = vmatpush2.bf16.msra.mxu0 0
        %2225 = vmatprep.subr.bf16.mxu0 0
        %2226 = vmatpush2.bf16.msra.mxu0 0
        %2227 = vmatprep.subr.bf16.mxu0 0
        %2228 = vmatpush2.bf16.msra.mxu0 0
        %2229 = vmatprep.subr.bf16.mxu0 0
        %2230 = vmatpush2.bf16.msra.mxu0 0
        %2231 = vmatprep.mubr.bf16.mxu0 0
        %2232 = vmatmul.mubr.bf16.gmra.mxu0 %v2176
        %v2233 = vpop.f32.mrf.mxu0
        %v2234 = vadd.f32 0.0, %v2233
        %v2235 = vpop.f32.mrf.mxu0
        %v2236 = vpop.f32.mrf.mxu0
        %v2237 = vadd.f32 0.0, %v2236
        %v2238 = vpop.f32.mrf.mxu0
        %2239 = vmatprep.mubr.bf16.mxu0 0
        %2240 = vmatmul.mubr.bf16.gmra.mxu0 %v2179
        %v2241 = vpop.f32.mrf.mxu0
        %v2242 = vadd.f32 0.0, %v2241
        %v2243 = vpop.f32.mrf.mxu0
        %v2244 = vpop.f32.mrf.mxu0
        %v2245 = vadd.f32 0.0, %v2244
        %v2246 = vpop.f32.mrf.mxu0
        %2247 = vmatprep.mubr.bf16.mxu0 0
        %2248 = vmatmul.mubr.bf16.gmra.mxu0 %v2182
        %v2249 = vpop.f32.mrf.mxu0
        %v2250 = vadd.f32 0.0, %v2249
        %v2251 = vpop.f32.mrf.mxu0
        %v2252 = vpop.f32.mrf.mxu0
        %v2253 = vadd.f32 0.0, %v2252
        %v2254 = vpop.f32.mrf.mxu0
        %2255 = vmatprep.mubr.bf16.mxu0 0
        %2256 = vmatmul.mubr.bf16.gmra.mxu0 %v2185
        %v2257 = vpop.f32.mrf.mxu0
        %v2258 = vadd.f32 0.0, %v2257
        %v2259 = vpop.f32.mrf.mxu0
        %v2260 = vpop.f32.mrf.mxu0
        %v2261 = vadd.f32 0.0, %v2260
        %v2262 = vpop.f32.mrf.mxu0
        %2263 = vmatprep.mubr.bf16.mxu0 0
        %2264 = vmatmul.mubr.bf16.gmra.mxu0 %v2188
        %v2265 = vpop.f32.mrf.mxu0
        %v2266 = vadd.f32 0.0, %v2265
        %v2267 = vpop.f32.mrf.mxu0
        %v2268 = vpop.f32.mrf.mxu0
        %v2269 = vadd.f32 0.0, %v2268
        %v2270 = vpop.f32.mrf.mxu0
        %2271 = vmatprep.mubr.bf16.mxu0 0
        %2272 = vmatmul.mubr.bf16.gmra.mxu0 %v2191
        %v2273 = vpop.f32.mrf.mxu0
        %v2274 = vadd.f32 0.0, %v2273
        %v2275 = vpop.f32.mrf.mxu0
        %v2276 = vpop.f32.mrf.mxu0
        %v2277 = vadd.f32 0.0, %v2276
        %v2278 = vpop.f32.mrf.mxu0
        %2279 = vmatprep.mubr.bf16.mxu0 0
        %2280 = vmatmul.mubr.bf16.gmra.mxu0 %v2194
        %v2281 = vpop.f32.mrf.mxu0
        %v2282 = vadd.f32 0.0, %v2281
        %v2283 = vpop.f32.mrf.mxu0
        %v2284 = vpop.f32.mrf.mxu0
        %v2285 = vadd.f32 0.0, %v2284
        %v2286 = vpop.f32.mrf.mxu0
        %2287 = vmatprep.mubr.bf16.mxu0 0
        %2288 = vmatmul.mubr.bf16.gmra.mxu0 %v2197
        %v2289 = vpop.f32.mrf.mxu0
        %v2290 = vadd.f32 0.0, %v2289
        %v2291 = vpop.f32.mrf.mxu0
        %v2292 = vpop.f32.mrf.mxu0
        %v2293 = vadd.f32 0.0, %v2292
        %v2294 = vpop.f32.mrf.mxu0
        %2295 = vdwg.mxu0
        %v2296 = vmax.f32 %v2102, %v2234
        %v2297 = vmax.f32 %v2103, %v2237
        %v2298 = vmax.f32 %v2104, %v2242
        %v2299 = vmax.f32 %v2105, %v2245
        %v2300 = vmax.f32 %v2106, %v2250
        %v2301 = vmax.f32 %v2107, %v2253
        %v2302 = vmax.f32 %v2108, %v2258
        %v2303 = vmax.f32 %v2109, %v2261
        %v2304 = vmax.f32 %v2110, %v2266
        %v2305 = vmax.f32 %v2111, %v2269
        %v2306 = vmax.f32 %v2112, %v2274
        %v2307 = vmax.f32 %v2113, %v2277
        %v2308 = vmax.f32 %v2114, %v2282
        %v2309 = vmax.f32 %v2115, %v2285
        %v2310 = vmax.f32 %v2116, %v2290
        %v2311 = vmax.f32 %v2117, %v2293
        %v2312 = vld [vmem:[%s2] sm:$0x1]
        %v2314 = vlaneseq
        %v2315 = vshrl.u32 %v2314, 7
        %v2316 = vsub.s32 0, %v2315
        %v2317 = vrot.slane %v2312, %v2316
        %v2319 = vadd.f32 %v2296, %v2317
        %v2320 = vadd.f32 %v2297, %v2317
        %v2321 = vadd.f32 %v2298, %v2317
        %v2322 = vadd.f32 %v2299, %v2317
        %v2323 = vadd.f32 %v2300, %v2317
        %v2324 = vadd.f32 %v2301, %v2317
        %v2325 = vadd.f32 %v2302, %v2317
        %v2326 = vadd.f32 %v2303, %v2317
        %v2327 = vadd.f32 %v2304, %v2317
        %v2328 = vadd.f32 %v2305, %v2317
        %v2329 = vadd.f32 %v2306, %v2317
        %v2330 = vadd.f32 %v2307, %v2317
        %v2331 = vadd.f32 %v2308, %v2317
        %v2332 = vadd.f32 %v2309, %v2317
        %v2333 = vadd.f32 %v2310, %v2317
        %v2334 = vadd.f32 %v2311, %v2317
        %v2335 = vmax.f32 %v2319, 0.0
        %v2336 = vmax.f32 %v2320, 0.0
        %v2337 = vmax.f32 %v2321, 0.0
        %v2338 = vmax.f32 %v2322, 0.0
        %v2339 = vmax.f32 %v2323, 0.0
        %v2340 = vmax.f32 %v2324, 0.0
        %v2341 = vmax.f32 %v2325, 0.0
        %v2342 = vmax.f32 %v2326, 0.0
        %v2343 = vmax.f32 %v2327, 0.0
        %v2344 = vmax.f32 %v2328, 0.0
        %v2345 = vmax.f32 %v2329, 0.0
        %v2346 = vmax.f32 %v2330, 0.0
        %v2347 = vmax.f32 %v2331, 0.0
        %v2348 = vmax.f32 %v2332, 0.0
        %v2349 = vmax.f32 %v2333, 0.0
        %v2350 = vmax.f32 %v2334, 0.0
        %v2351 = vpack.c.bf16 %v2336, %v2335
        %v2352 = vpack.c.bf16 %v2338, %v2337
        %v2353 = vpack.c.bf16 %v2340, %v2339
        %v2354 = vpack.c.bf16 %v2342, %v2341
        %v2355 = vpack.c.bf16 %v2344, %v2343
        %v2356 = vpack.c.bf16 %v2346, %v2345
        %v2357 = vpack.c.bf16 %v2348, %v2347
        %v2358 = vpack.c.bf16 %v2350, %v2349
        %v2367 = vunpack.c.l.b16 %v2351
        %v2368 = vunpack.c.h.b16 %v2351
        %v2369 = vunpack.c.l.b16 %v2352
        %v2370 = vunpack.c.h.b16 %v2352
        %v2371 = vunpack.c.l.b16 %v2353
        %v2372 = vunpack.c.h.b16 %v2353
        %v2373 = vunpack.c.l.b16 %v2354
        %v2374 = vunpack.c.h.b16 %v2354
        %v2375 = vunpack.c.l.b16 %v2355
        %v2376 = vunpack.c.h.b16 %v2355
        %v2377 = vunpack.c.l.b16 %v2356
        %v2378 = vunpack.c.h.b16 %v2356
        %v2379 = vunpack.c.l.b16 %v2357
        %v2380 = vunpack.c.h.b16 %v2357
        %v2381 = vunpack.c.l.b16 %v2358
        %v2382 = vunpack.c.h.b16 %v2358
        %v2383 = vpack.c.b16 %v2367, %v2367
        %v2384 = vpack.c.b16 %v2368, %v2368
        %v2385 = vpack.c.b16 %v2369, %v2369
        %v2386 = vpack.c.b16 %v2370, %v2370
        %v2387 = vpack.c.b16 %v2371, %v2371
        %v2388 = vpack.c.b16 %v2372, %v2372
        %v2389 = vpack.c.b16 %v2373, %v2373
        %v2390 = vpack.c.b16 %v2374, %v2374
        %v2391 = vpack.c.b16 %v2375, %v2375
        %v2392 = vpack.c.b16 %v2376, %v2376
        %v2393 = vpack.c.b16 %v2377, %v2377
        %v2394 = vpack.c.b16 %v2378, %v2378
        %v2395 = vpack.c.b16 %v2379, %v2379
        %v2396 = vpack.c.b16 %v2380, %v2380
        %v2397 = vpack.c.b16 %v2381, %v2381
        %v2398 = vpack.c.b16 %v2382, %v2382
        %2415 = vst [vmem:[%s723] sm:$0xf] %v2383
        %2416 = vst [vmem:[%s723 + $0x4] sm:$0xf] %v2384
        %2417 = vst [vmem:[%s723 + $0x8] sm:$0xf] %v2385
        %2418 = vst [vmem:[%s723 + $0xc] sm:$0xf] %v2386
        %2419 = vst [vmem:[%s723 + $0x10] sm:$0xf] %v2387
        %2420 = vst [vmem:[%s723 + $0x14] sm:$0xf] %v2388
        %2421 = vst [vmem:[%s723 + $0x18] sm:$0xf] %v2389
        %2422 = vst [vmem:[%s723 + $0x1c] sm:$0xf] %v2390
        %2423 = vst [vmem:[%s723 + $0x20] sm:$0xf] %v2391
        %2424 = vst [vmem:[%s723 + $0x24] sm:$0xf] %v2392
        %2425 = vst [vmem:[%s723 + $0x28] sm:$0xf] %v2393
        %2426 = vst [vmem:[%s723 + $0x2c] sm:$0xf] %v2394
        %2427 = vst [vmem:[%s723 + $0x30] sm:$0xf] %v2395
        %2428 = vst [vmem:[%s723 + $0x34] sm:$0xf] %v2396
        %2429 = vst [vmem:[%s723 + $0x38] sm:$0xf] %v2397
        %2430 = vst [vmem:[%s723 + $0x3c] sm:$0xf] %v2398
        %s2431 = smul.u32 16, %s14
        %p2432 = scmp.lt.s32.totalorder %s2431, 63
        %s2433 = scalar_select %p2432, %s2431, 63
        %s2434 = smul.addr %s2433, 4
        %s2435 = scalar_lea.vmem %s3, %s2434
        // Predicated region
        $region74: #{video_encoder_forward.2} parent=68 // pred_check
          %p2436 = pneg %p100
        $region75: #{video_encoder_forward.2} parent=68 // pred_check_branch
          %2438 = sbr.rel (%p2436) target = $region77
        $region76: #{video_encoder_forward.2} parent=68 // pred_region
          %s2439 = smul.u32 16, %s14
        $region77: #{video_encoder_forward.2} parent=68 // pred_fallthru
          _
      $region69: #{video_encoder_forward.2} parent=5 // pred_fallthru
        _
      %p2440 = scmp.le.s32.totalorder 2, %s9
      // Predicated region
      $region78: #{video_encoder_forward.2} parent=5 // pred_check
        %p2441 = pneg %p2440
      $region79: #{video_encoder_forward.2} parent=5 // pred_check_branch
        %2443 = sbr.rel (%p2441) target = $region81
      $region80: #{video_encoder_forward.2} parent=5 // pred_region
        %s2444 = ssub.s32 %s9, 2
        // Predicated region
        $region82: #{video_encoder_forward.2} parent=80 // pred_check
          %p2445 = pneg %p106
        $region83: #{video_encoder_forward.2} parent=80 // pred_check_branch
          %2447 = sbr.rel (%p2445) target = $region85
        $region84: #{video_encoder_forward.2} parent=80 // pred_region
          %s2448 = smul.u32 16, %s15
          %p2449 = scmp.lt.s32.totalorder %s2448, 63
          %s2450 = scalar_select %p2449, %s2448, 63
          %s2451 = smul.addr %s2450, 4
          %s2452 = scalar_lea.vmem %s3, %s2451
        $region85: #{video_encoder_forward.2} parent=80 // pred_fallthru
          _
      $region81: #{video_encoder_forward.2} parent=5 // pred_fallthru
        _
    $region6: #{video_encoder_forward.2} parent=1 // loop_footer
      %s13 = sadd.s32 1, %s9
    $region7: #{video_encoder_forward.2} parent=1 // loop_footer_branch
      %8 = sbr.rel target = $region3
    $region8: #{video_encoder_forward.2} parent=1 // loop_exit
      _

// kernel: video_encoder_forward.3
$region0: #{video_encoder_forward.3}
  #allocation0 [shape = 'u32[]', space=smem, size = 0x4, offset = 0x4, fixed_abs, tag = 'smem constant byte address 0x4 - core index']
  #allocation1 [shape = 'u32[144,128]{1,0:T(1,128)}', space=vmem, size = 0x12000, scoped, tag = 'internal scratch']
  #allocation2 [shape = 'f32[1,128]{1,0:T(1,128)}', space=vmem, size = 0x200, scoped, tag = 'scratch operand']
  %s0 = inlined_call_operand.vmem [shape: bf16[2,256,216], index: 0, kind: input, shape index: {}]
  %s1 = inlined_call_operand.vmem [shape: bf16[216,128], index: 1, kind: input, shape index: {}]
  %s2 = inlined_call_operand.vmem [shape: f32[1,128], index: 2, kind: input, shape index: {}]
  %s3 = inlined_call_operand.vmem [shape: f32[128,128], index: 3, kind: input, shape index: {}]
  %s4 = inlined_call_operand.vmem [shape: f32[1,128], index: 4, kind: input, shape index: {}]
  %s5 = inlined_call_operand.hbm [shape: f32[2,1,128], index: 5, kind: output, shape index: {}]
  %s6 = sld [smem:[#allocation0]]
  $region61: #{video_encoder_forward.3} parent=0
    _
  %s8 = ssub.s32 1, %s6
  %s9 = scalar_select 0, %s8, %s6
  $region1: #{video_encoder_forward.3} parent=0
    #allocation3 [shape = 'u8[1024]{0}', space=vmem, size = 0x400, scoped, tag = 'output window, operand 0']
    #allocation4 [shape = 's32[2]{0}', space=sflag, size = 0x8, scoped, tag = 'scoped memory for video_encoder_forward.3']
    %10 = vsyncpa [#allocation4], 0
    %s11 = scalar_lea.sflag [#allocation4], 1
    %12 = vsyncpa %s11, 0
    loop: start=0, step=1, limit=4
    $region2: #{video_encoder_forward.3} parent=1 // loop_pre_header
      _
    $region3: #{video_encoder_forward.3} parent=1 // loop_header
      %s14 = sphi 0, %s18
      %p15 = scmp.ge.s32.totalorder %s14, 4
      %s21 = sphi 0, %s33
      %s22 = sphi 0, %s29
      %s23 = sphi 0, %s21
      %s24 = sphi 0, %s22
      %s25 = sphi 0, %s23
      %s26 = sphi 0, %s24
      %s38 = sphi 0, %s40
      %s41 = sphi 0, %s38
      %s42 = sphi 0, %s41
      %s58 = sphi 0, %s42
      %s62 = sphi 0, %s62
      %s64 = sphi 0, %s62
      %s65 = sphi 0, %s64
      %s79 = sphi 0, %s65
      %s83 = sphi 0, %s83
      %s85 = sphi 0, %s83
      %s86 = sphi 0, %s85
      %s100 = sphi 0, %s86
      %s104 = sphi 0, %s104
      %s106 = sphi 0, %s104
      %s107 = sphi 0, %s106
      %s121 = sphi 0, %s107
      %s125 = sphi 0, %s125
      %s127 = sphi 0, %s125
      %s128 = sphi 0, %s127
      %s142 = sphi 0, %s128
      %s148 = sphi 0, %s150
      %s151 = sphi 0, %s148
      %s152 = sphi 0, %s151
      %s168 = sphi 0, %s152
    $region4: #{video_encoder_forward.3} parent=1 // loop_header_branch
      %17 = sbr.rel (%p15) target = $region8
    $region5: #{video_encoder_forward.3} parent=1 // loop_body
      %s19 = ssub.s32 %s14, 1
      %s20 = ssub.s32 %s14, 2
      %s27 = sadd.s32 1, %s22
      %p28 = scmp.ge.s32.totalorder %s27, 1
      %s29 = scalar_select %p28, 0, %s27
      %s30 = sadd.s32 1, %s21
      %s31 = scalar_select %p28, %s30, %s21
      %p32 = scmp.ge.s32.totalorder %s31, 2
      %s33 = scalar_select %p32, 0, %s31
      %s34 = ssub.s32 %s21, %s33
      %s35 = ssub.s32 %s22, %s29
      %s36 = sor.u32 %s34, %s35
      %p37 = scmp.eq.s32.totalorder %s36, 0
      %s39 = sadd.s32 %s38, 1
      %s40 = scalar_select %p37, %s38, %s39
      %p43 = pneg %p37
      %p44 = scmp.eq.s32.totalorder %s14, 1
      %p45 = por %p43, %p44
      %p46 = scmp.ne.s32.totalorder %s38, %s41
      %p47 = scmp.eq.s32.totalorder %s14, 0
      %p48 = por %p46, %p47
      %p49 = scmp.ne.s32.totalorder %s38, %s41
      %p50 = scmp.eq.s32.totalorder %s19, 1
      %p51 = por %p49, %p50
      %p52 = scmp.ne.s32.totalorder %s41, %s42
      %p53 = scmp.eq.s32.totalorder %s19, 0
      %p54 = por %p52, %p53
      %p55 = scmp.ne.s32.totalorder %s41, %s42
      %p56 = scmp.eq.s32.totalorder %s20, 1
      %p57 = por %p55, %p56
      %p59 = scmp.ne.s32.totalorder %s42, %s58
      %p60 = scmp.eq.s32.totalorder %s20, 0
      %p61 = por %p59, %p60
      %s63 = sadd.s32 %s62, 1
      %p66 = scmp.eq.s32.totalorder %s14, 1
      %p67 = scmp.ne.s32.totalorder %s62, %s64
      %p68 = scmp.eq.s32.totalorder %s14, 0
      %p69 = por %p67, %p68
      %p70 = scmp.ne.s32.totalorder %s62, %s64
      %p71 = scmp.eq.s32.totalorder %s19, 1
      %p72 = por %p70, %p71
      %p73 = scmp.ne.s32.totalorder %s64, %s65
      %p74 = scmp.eq.s32.totalorder %s19, 0
      %p75 = por %p73, %p74
      %p76 = scmp.ne.s32.totalorder %s64, %s65
      %p77 = scmp.eq.s32.totalorder %s20, 1
      %p78 = por %p76, %p77
      %p80 = scmp.ne.s32.totalorder %s65, %s79
      %p81 = scmp.eq.s32.totalorder %s20, 0
      %p82 = por %p80, %p81
      %s84 = sadd.s32 %s83, 1
      %p87 = scmp.eq.s32.totalorder %s14, 1
      %p88 = scmp.ne.s32.totalorder %s83, %s85
      %p89 = scmp.eq.s32.totalorder %s14, 0
      %p90 = por %p88, %p89
      %p91 = scmp.ne.s32.totalorder %s83, %s85
      %p92 = scmp.eq.s32.totalorder %s19, 1
      %p93 = por %p91, %p92
      %p94 = scmp.ne.s32.totalorder %s85, %s86
      %p95 = scmp.eq.s32.totalorder %s19, 0
      %p96 = por %p94, %p95
      %p97 = scmp.ne.s32.totalorder %s85, %s86
      %p98 = scmp.eq.s32.totalorder %s20, 1
      %p99 = por %p97, %p98
      %p101 = scmp.ne.s32.totalorder %s86, %s100
      %p102 = scmp.eq.s32.totalorder %s20, 0
      %p103 = por %p101, %p102
      %s105 = sadd.s32 %s104, 1
      %p108 = scmp.eq.s32.totalorder %s14, 1
      %p109 = scmp.ne.s32.totalorder %s104, %s106
      %p110 = scmp.eq.s32.totalorder %s14, 0
      %p111 = por %p109, %p110
      %p112 = scmp.ne.s32.totalorder %s104, %s106
      %p113 = scmp.eq.s32.totalorder %s19, 1
      %p114 = por %p112, %p113
      %p115 = scmp.ne.s32.totalorder %s106, %s107
      %p116 = scmp.eq.s32.totalorder %s19, 0
      %p117 = por %p115, %p116
      %p118 = scmp.ne.s32.totalorder %s106, %s107
      %p119 = scmp.eq.s32.totalorder %s20, 1
      %p120 = por %p118, %p119
      %p122 = scmp.ne.s32.totalorder %s107, %s121
      %p123 = scmp.eq.s32.totalorder %s20, 0
      %p124 = por %p122, %p123
      %s126 = sadd.s32 %s125, 1
      %p129 = scmp.eq.s32.totalorder %s14, 1
      %p130 = scmp.ne.s32.totalorder %s125, %s127
      %p131 = scmp.eq.s32.totalorder %s14, 0
      %p132 = por %p130, %p131
      %p133 = scmp.ne.s32.totalorder %s125, %s127
      %p134 = scmp.eq.s32.totalorder %s19, 1
      %p135 = por %p133, %p134
      %p136 = scmp.ne.s32.totalorder %s127, %s128
      %p137 = scmp.eq.s32.totalorder %s19, 0
      %p138 = por %p136, %p137
      %p139 = scmp.ne.s32.totalorder %s127, %s128
      %p140 = scmp.eq.s32.totalorder %s20, 1
      %p141 = por %p139, %p140
      %p143 = scmp.ne.s32.totalorder %s128, %s142
      %p144 = scmp.eq.s32.totalorder %s20, 0
      %p145 = por %p143, %p144
      %s146 = ssub.s32 %s21, %s33
      %p147 = scmp.eq.s32.totalorder %s146, 0
      %s149 = sadd.s32 %s148, 1
      %s150 = scalar_select %p147, %s148, %s149
      %p153 = pneg %p147
      %p154 = scmp.eq.s32.totalorder %s14, 1
      %p155 = por %p153, %p154
      %p156 = scmp.ne.s32.totalorder %s148, %s151
      %p157 = scmp.eq.s32.totalorder %s14, 0
      %p158 = por %p156, %p157
      %p159 = scmp.ne.s32.totalorder %s148, %s151
      %p160 = scmp.eq.s32.totalorder %s19, 1
      %p161 = por %p159, %p160
      %p162 = scmp.ne.s32.totalorder %s151, %s152
      %p163 = scmp.eq.s32.totalorder %s19, 0
      %p164 = por %p162, %p163
      %p165 = scmp.ne.s32.totalorder %s151, %s152
      %p166 = scmp.eq.s32.totalorder %s20, 1
      %p167 = por %p165, %p166
      %p169 = scmp.ne.s32.totalorder %s152, %s168
      %p170 = scmp.eq.s32.totalorder %s20, 0
      %p171 = por %p169, %p170
      %p172 = scmp.le.s32.totalorder 1, %s14
      %p173 = scmp.lt.s32.totalorder %s14, 3
      %p174 = pnand %p172, %p173
      %p175 = pneg %p174
      // Predicated region
      $region9: #{video_encoder_forward.3} parent=5 // pred_check
        _
      $region10: #{video_encoder_forward.3} parent=5 // pred_check_branch
        %177 = sbr.rel (%p174) target = $region12
      $region11: #{video_encoder_forward.3} parent=5 // pred_region
        %s178 = ssub.s32 %s14, 1
        // Predicated region
        $region13: #{video_encoder_forward.3} parent=11 // pred_check
          %p179 = pneg %p75
        $region14: #{video_encoder_forward.3} parent=11 // pred_check_branch
          %181 = sbr.rel (%p179) target = $region16
        $region15: #{video_encoder_forward.3} parent=11 // pred_region
          _
        $region16: #{video_encoder_forward.3} parent=11 // pred_fallthru
          _
        // Predicated region
        $region17: #{video_encoder_forward.3} parent=11 // pred_check
          %p182 = pneg %p96
        $region18: #{video_encoder_forward.3} parent=11 // pred_check_branch
          %184 = sbr.rel (%p182) target = $region20
        $region19: #{video_encoder_forward.3} parent=11 // pred_region
          _
        $region20: #{video_encoder_forward.3} parent=11 // pred_fallthru
          _
        // Predicated region
        $region21: #{video_encoder_forward.3} parent=11 // pred_check
          %p185 = pneg %p117
        $region22: #{video_encoder_forward.3} parent=11 // pred_check_branch
          %187 = sbr.rel (%p185) target = $region24
        $region23: #{video_encoder_forward.3} parent=11 // pred_region
          _
        $region24: #{video_encoder_forward.3} parent=11 // pred_fallthru
          _
        // Predicated region
        $region25: #{video_encoder_forward.3} parent=11 // pred_check
          %p188 = pneg %p138
        $region26: #{video_encoder_forward.3} parent=11 // pred_check_branch
          %190 = sbr.rel (%p188) target = $region28
        $region27: #{video_encoder_forward.3} parent=11 // pred_region
          _
        $region28: #{video_encoder_forward.3} parent=11 // pred_fallthru
          _
      $region12: #{video_encoder_forward.3} parent=5 // pred_fallthru
        _
      %p191 = scmp.lt.s32.totalorder %s14, 2
      // Predicated region
      $region29: #{video_encoder_forward.3} parent=5 // pred_check
        %p192 = pneg %p191
      $region30: #{video_encoder_forward.3} parent=5 // pred_check_branch
        %194 = sbr.rel (%p192) target = $region32
      $region31: #{video_encoder_forward.3} parent=5 // pred_region
        // Predicated region
        $region33: #{video_encoder_forward.3} parent=31 // pred_check
          %p195 = pneg %p48
        $region34: #{video_encoder_forward.3} parent=31 // pred_check_branch
          %197 = sbr.rel (%p195) target = $region36
        $region35: #{video_encoder_forward.3} parent=31 // pred_region
          %s198 = smul.u32 32, %s22
          %p199 = scmp.lt.s32.totalorder %s21, 1
          %s200 = scalar_select %p199, %s21, 1
          %p201 = scmp.lt.s32.totalorder %s198, 31
          %s202 = scalar_select %p201, %s198, 31
          %s203 = smul.addr %s202, 2
          %s204 = smul.addr %s200, 64
          %s205 = sadd.s32 %s203, %s204
          %s206 = smul.addr %s205, 4
          %s207 = scalar_lea.vmem %s0, %s206
          %s208 = smul.u32 32, %s22
        $region36: #{video_encoder_forward.3} parent=31 // pred_fallthru
          _
      $region32: #{video_encoder_forward.3} parent=5 // pred_fallthru
        _
      %p209 = scmp.le.s32.totalorder 1, %s14
      %p210 = scmp.lt.s32.totalorder %s14, 3
      %p211 = pnand %p209, %p210
      %p212 = pneg %p211
      // Predicated region
      $region37: #{video_encoder_forward.3} parent=5 // pred_check
        _
      $region38: #{video_encoder_forward.3} parent=5 // pred_check_branch
        %214 = sbr.rel (%p211) target = $region40
      $region39: #{video_encoder_forward.3} parent=5 // pred_region
        %s215 = ssub.s32 %s14, 1
        %s216 = smul.u32 32, %s24
        %p217 = scmp.lt.s32.totalorder %s23, 1
        %s218 = scalar_select %p217, %s23, 1
        %p219 = scmp.lt.s32.totalorder %s216, 31
        %s220 = scalar_select %p219, %s216, 31
        %s221 = smul.addr %s220, 2
        %s222 = smul.addr %s218, 64
        %s223 = sadd.s32 %s221, %s222
        %s224 = smul.addr %s223, 4
        %s225 = scalar_lea.vmem %s0, %s224
        %p226 = pneg %p54
        %p227 = pneg %p51
        %p228 = pneg %p75
        %p229 = pneg %p72
        %p230 = pneg %p96
        %p231 = pneg %p93
        %p232 = pneg %p117
        %p233 = pneg %p114
        %p234 = pneg %p138
        %p235 = pneg %p135
        %p236 = pneg %p164
        %p237 = pneg %p161
        %s238 = sand.u32 %s151, 1
        %s239 = scalar_lea.sflag [#allocation4], %s238
        %s240 = sand.u32 %s151, 1
        %s241 = scalar_lea.vmem [#allocation3], %s240
        %s242 = smul.u32 32, %s24
        %p243 = scmp.lt.s32.totalorder %s23, 1
        %s244 = scalar_select %p243, %s23, 1
        %p245 = scmp.lt.s32.totalorder %s242, 31
        %s246 = scalar_select %p245, %s242, 31
        %s247 = smul.addr %s246, 2
        %s248 = smul.addr %s244, 64
        %s249 = sadd.s32 %s247, %s248
        %s250 = smul.addr %s249, 4
        %s251 = scalar_lea.vmem %s0, %s250
        %s252 = smul.u32 32, %s24
        %p254 = scmp.eq.s32.totalorder %s24, 0
        // Predicated region
        $region41: #{video_encoder_forward.3} parent=39 // pred_check
          %p255 = pneg %p254
        $region42: #{video_encoder_forward.3} parent=39 // pred_check_branch
          %257 = sbr.rel (%p255) target = $region44
        $region43: #{video_encoder_forward.3} parent=39 // pred_region
          %258 = vst [vmem:[#allocation2] sm:$0x1] 0.0
        $region44: #{video_encoder_forward.3} parent=39 // pred_fallthru
          _
        %v259 = vld [vmem:[%s251] sm:$0xff]
        %v260 = vld [vmem:[%s251 + $0x8] sm:$0xff]
        %v261 = vld [vmem:[%s251 + $0x10] sm:$0xff]
        %v262 = vld [vmem:[%s251 + $0x18] sm:$0xff]
        %v263 = vld [vmem:[%s251 + $0x20] sm:$0xff]
        %v264 = vld [vmem:[%s251 + $0x28] sm:$0xff]
        %v265 = vld [vmem:[%s251 + $0x30] sm:$0xff]
        %v266 = vld [vmem:[%s251 + $0x38] sm:$0xff]
        %v267 = vld [vmem:[%s251 + $0x40] sm:$0xff]
        %v268 = vld [vmem:[%s251 + $0x48] sm:$0xff]
        %v269 = vld [vmem:[%s251 + $0x50] sm:$0xff]
        %v270 = vld [vmem:[%s251 + $0x58] sm:$0xff]
        %v271 = vld [vmem:[%s251 + $0x60] sm:$0xff]
        %v272 = vld [vmem:[%s251 + $0x68] sm:$0xff]
        %v273 = vld [vmem:[%s251 + $0x70] sm:$0xff]
        %v274 = vld [vmem:[%s251 + $0x78] sm:$0xff]
        %v275 = vld [vmem:[%s251 + $0x80] sm:$0xff]
        %v276 = vld [vmem:[%s251 + $0x88] sm:$0xff]
        %v277 = vld [vmem:[%s251 + $0x90] sm:$0xff]
        %v278 = vld [vmem:[%s251 + $0x98] sm:$0xff]
        %v279 = vld [vmem:[%s251 + $0xa0] sm:$0xff]
        %v280 = vld [vmem:[%s251 + $0xa8] sm:$0xff]
        %v281 = vld [vmem:[%s251 + $0xb0] sm:$0xff]
        %v282 = vld [vmem:[%s251 + $0xb8] sm:$0xff]
        %v283 = vld [vmem:[%s251 + $0xc0] sm:$0xff]
        %v284 = vld [vmem:[%s251 + $0xc8] sm:$0xff]
        %v285 = vld [vmem:[%s251 + $0xd0] sm:$0xff]
        %v286 = vld [vmem:[%s251 + $0xd8] sm:$0xff]
        %v287 = vld [vmem:[%s251 + $0xe0] sm:$0xff]
        %v288 = vld [vmem:[%s251 + $0xe8] sm:$0xff]
        %v289 = vld [vmem:[%s251 + $0xf0] sm:$0xff]
        %v290 = vld [vmem:[%s251 + $0xf8] sm:$0xff]
        %v291 = vld [vmem:[%s1] sm:$0xf]
        %v292 = vld [vmem:[%s1 + $0x4] sm:$0xf]
        %v293 = vld [vmem:[%s1 + $0x8] sm:$0xf]
        %v294 = vld [vmem:[%s1 + $0xc] sm:$0xf]
        %v295 = vld [vmem:[%s1 + $0x10] sm:$0xf]
        %v296 = vld [vmem:[%s1 + $0x14] sm:$0xf]
        %v297 = vld [vmem:[%s1 + $0x18] sm:$0xf]
        %v298 = vld [vmem:[%s1 + $0x1c] sm:$0xf]
        %v299 = vld [vmem:[%s1 + $0x20] sm:$0xf]
        %v300 = vld [vmem:[%s1 + $0x24] sm:$0xf]
        %v301 = vld [vmem:[%s1 + $0x28] sm:$0xf]
        %v302 = vld [vmem:[%s1 + $0x2c] sm:$0xf]
        %v303 = vld [vmem:[%s1 + $0x30] sm:$0xf]
        %v304 = vld [vmem:[%s1 + $0x34] sm:$0xf]
        %v305 = vld [vmem:[%s1 + $0x38] sm:$0xf]
        %v306 = vld [vmem:[%s1 + $0x3c] sm:$0xf]
        %v307 = vld [vmem:[%s1 + $0x40] sm:$0xf]
        %v308 = vld [vmem:[%s1 + $0x44] sm:$0xf]
        %v309 = vld [vmem:[%s1 + $0x48] sm:$0xf]
        %v310 = vld [vmem:[%s1 + $0x4c] sm:$0xf]
        %v311 = vld [vmem:[%s1 + $0x50] sm:$0xf]
        %v312 = vld [vmem:[%s1 + $0x54] sm:$0xf]
        %v313 = vld [vmem:[%s1 + $0x58] sm:$0xf]
        %v314 = vld [vmem:[%s1 + $0x5c] sm:$0xf]
        %v315 = vld [vmem:[%s1 + $0x60] sm:$0xf]
        %v316 = vld [vmem:[%s1 + $0x64] sm:$0xf]
        %v317 = vld [vmem:[%s1 + $0x68] sm:$0xf]
        %v318 = vld [vmem:[%s2] sm:$0x1]
        %v320 = vlaneseq
        %v321 = vshrl.u32 %v320, 7
        %v322 = vsub.s32 0, %v321
        %v323 = vrot.slane %v318, %v322
        %v357 = vunpack.c.l.b16 %v259
        %v358 = vunpack.c.h.b16 %v259
        %v359 = vunpack.c.l.b16 %v260
        %v360 = vunpack.c.h.b16 %v260
        %v361 = vunpack.c.l.b16 %v261
        %v362 = vunpack.c.h.b16 %v261
        %v363 = vunpack.c.l.b16 %v262
        %v364 = vunpack.c.h.b16 %v262
        %v365 = vunpack.c.l.b16 %v263
        %v366 = vunpack.c.h.b16 %v263
        %v367 = vunpack.c.l.b16 %v264
        %v368 = vunpack.c.h.b16 %v264
        %v369 = vunpack.c.l.b16 %v265
        %v370 = vunpack.c.h.b16 %v265
        %v371 = vunpack.c.l.b16 %v266
        %v372 = vunpack.c.h.b16 %v266
        %v373 = vunpack.c.l.b16 %v267
        %v374 = vunpack.c.h.b16 %v267
        %v375 = vunpack.c.l.b16 %v268
        %v376 = vunpack.c.h.b16 %v268
        %v377 = vunpack.c.l.b16 %v269
        %v378 = vunpack.c.h.b16 %v269
        %v379 = vunpack.c.l.b16 %v270
        %v380 = vunpack.c.h.b16 %v270
        %v381 = vunpack.c.l.b16 %v271
        %v382 = vunpack.c.h.b16 %v271
        %v383 = vunpack.c.l.b16 %v272
        %v384 = vunpack.c.h.b16 %v272
        %v385 = vunpack.c.l.b16 %v273
        %v386 = vunpack.c.h.b16 %v273
        %v387 = vunpack.c.l.b16 %v274
        %v388 = vunpack.c.h.b16 %v274
        %v389 = vunpack.c.l.b16 %v275
        %v390 = vunpack.c.h.b16 %v275
        %v391 = vunpack.c.l.b16 %v276
        %v392 = vunpack.c.h.b16 %v276
        %v393 = vunpack.c.l.b16 %v277
        %v394 = vunpack.c.h.b16 %v277
        %v395 = vunpack.c.l.b16 %v278
        %v396 = vunpack.c.h.b16 %v278
        %v397 = vunpack.c.l.b16 %v279
        %v398 = vunpack.c.h.b16 %v279
        %v399 = vunpack.c.l.b16 %v280
        %v400 = vunpack.c.h.b16 %v280
        %v401 = vunpack.c.l.b16 %v281
        %v402 = vunpack.c.h.b16 %v281
        %v403 = vunpack.c.l.b16 %v282
        %v404 = vunpack.c.h.b16 %v282
        %v405 = vunpack.c.l.b16 %v283
        %v406 = vunpack.c.h.b16 %v283
        %v407 = vunpack.c.l.b16 %v284
        %v408 = vunpack.c.h.b16 %v284
        %v409 = vunpack.c.l.b16 %v285
        %v410 = vunpack.c.h.b16 %v285
        %v411 = vunpack.c.l.b16 %v286
        %v412 = vunpack.c.h.b16 %v286
        %v413 = vunpack.c.l.b16 %v287
        %v414 = vunpack.c.h.b16 %v287
        %v415 = vunpack.c.l.b16 %v288
        %v416 = vunpack.c.h.b16 %v288
        %v417 = vunpack.c.l.b16 %v289
        %v418 = vunpack.c.h.b16 %v289
        %v419 = vunpack.c.l.b16 %v290
        %v420 = vunpack.c.h.b16 %v290
        %v421 = vpack.c.b16 %v359, %v357
        %v422 = vpack.c.b16 %v360, %v358
        %v423 = vpack.c.b16 %v363, %v361
        %v424 = vpack.c.b16 %v364, %v362
        %v425 = vpack.c.b16 %v367, %v365
        %v426 = vpack.c.b16 %v368, %v366
        %v427 = vpack.c.b16 %v371, %v369
        %v428 = vpack.c.b16 %v372, %v370
        %v429 = vpack.c.b16 %v375, %v373
        %v430 = vpack.c.b16 %v376, %v374
        %v431 = vpack.c.b16 %v379, %v377
        %v432 = vpack.c.b16 %v380, %v378
        %v433 = vpack.c.b16 %v383, %v381
        %v434 = vpack.c.b16 %v384, %v382
        %v435 = vpack.c.b16 %v387, %v385
        %v436 = vpack.c.b16 %v388, %v386
        %v437 = vpack.c.b16 %v391, %v389
        %v438 = vpack.c.b16 %v392, %v390
        %v439 = vpack.c.b16 %v395, %v393
        %v440 = vpack.c.b16 %v396, %v394
        %v441 = vpack.c.b16 %v399, %v397
        %v442 = vpack.c.b16 %v400, %v398
        %v443 = vpack.c.b16 %v403, %v401
        %v444 = vpack.c.b16 %v404, %v402
        %v445 = vpack.c.b16 %v407, %v405
        %v446 = vpack.c.b16 %v408, %v406
        %v447 = vpack.c.b16 %v411, %v409
        %v448 = vpack.c.b16 %v412, %v410
        %v449 = vpack.c.b16 %v415, %v413
        %v450 = vpack.c.b16 %v416, %v414
        %v451 = vpack.c.b16 %v419, %v417
        %v452 = vpack.c.b16 %v420, %v418
        %v496 = vunpack.c.l.b16 %v291
        %v497 = vunpack.c.l.b16 %v292
        %v498 = vunpack.c.l.b16 %v293
        %v499 = vunpack.c.l.b16 %v294
        %v500 = vunpack.c.l.b16 %v295
        %v501 = vunpack.c.l.b16 %v296
        %v502 = vunpack.c.l.b16 %v297
        %v503 = vunpack.c.l.b16 %v298
        %v504 = vunpack.c.l.b16 %v299
        %v505 = vunpack.c.l.b16 %v300
        %v506 = vunpack.c.l.b16 %v301
        %v507 = vunpack.c.l.b16 %v302
        %v508 = vunpack.c.l.b16 %v303
        %v509 = vunpack.c.l.b16 %v304
        %v510 = vunpack.c.l.b16 %v305
        %v511 = vunpack.c.l.b16 %v306
        %v512 = vunpack.c.l.b16 %v307
        %v513 = vunpack.c.l.b16 %v308
        %v514 = vunpack.c.l.b16 %v309
        %v515 = vunpack.c.l.b16 %v310
        %v516 = vunpack.c.l.b16 %v311
        %v517 = vunpack.c.l.b16 %v312
        %v518 = vunpack.c.l.b16 %v313
        %v519 = vunpack.c.l.b16 %v314
        %v520 = vunpack.c.l.b16 %v315
        %v521 = vunpack.c.l.b16 %v316
        %v522 = vunpack.c.l.b16 %v317
        %v523 = vpack.c.b16 %v497, %v496
        %v524 = vpack.c.b16 %v499, %v498
        %v525 = vpack.c.b16 %v501, %v500
        %v526 = vpack.c.b16 %v503, %v502
        %v527 = vpack.c.b16 %v505, %v504
        %v528 = vpack.c.b16 %v507, %v506
        %v529 = vpack.c.b16 %v509, %v508
        %v530 = vpack.c.b16 %v511, %v510
        %v531 = vpack.c.b16 %v513, %v512
        %v532 = vpack.c.b16 %v515, %v514
        %v533 = vpack.c.b16 %v517, %v516
        %v534 = vpack.c.b16 %v519, %v518
        %v535 = vpack.c.b16 %v521, %v520
        %v536 = vpack.c.b16 %v522, %v522
        %vm550 = vcmask 719872
        %v552 = vsel %vm550, %v422, 0
        %v555 = vsel %vm550, %v424, 0
        %v558 = vsel %vm550, %v426, 0
        %v561 = vsel %vm550, %v428, 0
        %v564 = vsel %vm550, %v430, 0
        %v567 = vsel %vm550, %v432, 0
        %v570 = vsel %vm550, %v434, 0
        %v573 = vsel %vm550, %v436, 0
        %v576 = vsel %vm550, %v438, 0
        %v579 = vsel %vm550, %v440, 0
        %v582 = vsel %vm550, %v442, 0
        %v585 = vsel %vm550, %v444, 0
        %v588 = vsel %vm550, %v446, 0
        %v591 = vsel %vm550, %v448, 0
        %v594 = vsel %vm550, %v450, 0
        %v597 = vsel %vm550, %v452, 0
        %vm599 = vcmask 1043456
        %v601 = vsel %vm599, %v536, 0
        %603 = vmatprep.subr.bf16.mxu0 0
        %604 = vmatpush1.bf16.msra.mxu0 %v530
        %605 = vmatprep.subr.bf16.mxu0 0
        %606 = vmatpush1.bf16.msra.mxu0 %v529
        %607 = vmatprep.subr.bf16.mxu0 0
        %608 = vmatpush1.bf16.msra.mxu0 %v528
        %609 = vmatprep.subr.bf16.mxu0 0
        %610 = vmatpush1.bf16.msra.mxu0 %v527
        %611 = vmatprep.subr.bf16.mxu0 0
        %612 = vmatpush1.bf16.msra.mxu0 %v526
        %613 = vmatprep.subr.bf16.mxu0 0
        %614 = vmatpush1.bf16.msra.mxu0 %v525
        %615 = vmatprep.subr.bf16.mxu0 0
        %616 = vmatpush1.bf16.msra.mxu0 %v524
        %617 = vmatprep.subr.bf16.mxu0 0
        %618 = vmatpush1.bf16.msra.mxu0 %v523
        %619 = vmatprep.subr.bf16.mxu0 0
        %620 = vmatpush2.bf16.msra.mxu0 0
        %621 = vmatprep.subr.bf16.mxu0 0
        %622 = vmatpush2.bf16.msra.mxu0 0
        %623 = vmatprep.subr.bf16.mxu0 0
        %624 = vmatpush2.bf16.msra.mxu0 %v601
        %625 = vmatprep.subr.bf16.mxu0 0
        %626 = vmatpush2.bf16.msra.mxu0 %v535
        %627 = vmatprep.subr.bf16.mxu0 0
        %628 = vmatpush2.bf16.msra.mxu0 %v534
        %629 = vmatprep.subr.bf16.mxu0 0
        %630 = vmatpush2.bf16.msra.mxu0 %v533
        %631 = vmatprep.subr.bf16.mxu0 0
        %632 = vmatpush2.bf16.msra.mxu0 %v532
        %633 = vmatprep.subr.bf16.mxu0 0
        %634 = vmatpush2.bf16.msra.mxu0 %v531
        %635 = vmatprep.mubr.bf16.mxu0 %v552
        %636 = vmatmul.mubr.bf16.gmra.mxu0 %v421
        %v637 = vpop.f32.mrf.mxu0
        %v638 = vadd.f32 %v323, %v637
        %v639 = vpop.f32.mrf.mxu0
        %v640 = vpop.f32.mrf.mxu0
        %v641 = vadd.f32 %v323, %v640
        %v642 = vpop.f32.mrf.mxu0
        %643 = vmatprep.mubr.bf16.mxu0 %v555
        %644 = vmatmul.mubr.bf16.gmra.mxu0 %v423
        %v645 = vpop.f32.mrf.mxu0
        %v646 = vadd.f32 %v323, %v645
        %v647 = vpop.f32.mrf.mxu0
        %v648 = vpop.f32.mrf.mxu0
        %v649 = vadd.f32 %v323, %v648
        %v650 = vpop.f32.mrf.mxu0
        %651 = vmatprep.mubr.bf16.mxu0 %v558
        %652 = vmatmul.mubr.bf16.gmra.mxu0 %v425
        %v653 = vpop.f32.mrf.mxu0
        %v654 = vadd.f32 %v323, %v653
        %v655 = vpop.f32.mrf.mxu0
        %v656 = vpop.f32.mrf.mxu0
        %v657 = vadd.f32 %v323, %v656
        %v658 = vpop.f32.mrf.mxu0
        %659 = vmatprep.mubr.bf16.mxu0 %v561
        %660 = vmatmul.mubr.bf16.gmra.mxu0 %v427
        %v661 = vpop.f32.mrf.mxu0
        %v662 = vadd.f32 %v323, %v661
        %v663 = vpop.f32.mrf.mxu0
        %v664 = vpop.f32.mrf.mxu0
        %v665 = vadd.f32 %v323, %v664
        %v666 = vpop.f32.mrf.mxu0
        %667 = vmatprep.mubr.bf16.mxu0 %v564
        %668 = vmatmul.mubr.bf16.gmra.mxu0 %v429
        %v669 = vpop.f32.mrf.mxu0
        %v670 = vadd.f32 %v323, %v669
        %v671 = vpop.f32.mrf.mxu0
        %v672 = vpop.f32.mrf.mxu0
        %v673 = vadd.f32 %v323, %v672
        %v674 = vpop.f32.mrf.mxu0
        %675 = vmatprep.mubr.bf16.mxu0 %v567
        %676 = vmatmul.mubr.bf16.gmra.mxu0 %v431
        %v677 = vpop.f32.mrf.mxu0
        %v678 = vadd.f32 %v323, %v677
        %v679 = vpop.f32.mrf.mxu0
        %v680 = vpop.f32.mrf.mxu0
        %v681 = vadd.f32 %v323, %v680
        %v682 = vpop.f32.mrf.mxu0
        %683 = vmatprep.mubr.bf16.mxu0 %v570
        %684 = vmatmul.mubr.bf16.gmra.mxu0 %v433
        %v685 = vpop.f32.mrf.mxu0
        %v686 = vadd.f32 %v323, %v685
        %v687 = vpop.f32.mrf.mxu0
        %v688 = vpop.f32.mrf.mxu0
        %v689 = vadd.f32 %v323, %v688
        %v690 = vpop.f32.mrf.mxu0
        %691 = vmatprep.mubr.bf16.mxu0 %v573
        %692 = vmatmul.mubr.bf16.gmra.mxu0 %v435
        %v693 = vpop.f32.mrf.mxu0
        %v694 = vadd.f32 %v323, %v693
        %v695 = vpop.f32.mrf.mxu0
        %v696 = vpop.f32.mrf.mxu0
        %v697 = vadd.f32 %v323, %v696
        %v698 = vpop.f32.mrf.mxu0
        %699 = vmatprep.mubr.bf16.mxu0 %v576
        %700 = vmatmul.mubr.bf16.gmra.mxu0 %v437
        %v701 = vpop.f32.mrf.mxu0
        %v702 = vadd.f32 %v323, %v701
        %v703 = vpop.f32.mrf.mxu0
        %v704 = vpop.f32.mrf.mxu0
        %v705 = vadd.f32 %v323, %v704
        %v706 = vpop.f32.mrf.mxu0
        %707 = vmatprep.mubr.bf16.mxu0 %v579
        %708 = vmatmul.mubr.bf16.gmra.mxu0 %v439
        %v709 = vpop.f32.mrf.mxu0
        %v710 = vadd.f32 %v323, %v709
        %v711 = vpop.f32.mrf.mxu0
        %v712 = vpop.f32.mrf.mxu0
        %v713 = vadd.f32 %v323, %v712
        %v714 = vpop.f32.mrf.mxu0
        %715 = vmatprep.mubr.bf16.mxu0 %v582
        %716 = vmatmul.mubr.bf16.gmra.mxu0 %v441
        %v717 = vpop.f32.mrf.mxu0
        %v718 = vadd.f32 %v323, %v717
        %v719 = vpop.f32.mrf.mxu0
        %v720 = vpop.f32.mrf.mxu0
        %v721 = vadd.f32 %v323, %v720
        %v722 = vpop.f32.mrf.mxu0
        %723 = vmatprep.mubr.bf16.mxu0 %v585
        %724 = vmatmul.mubr.bf16.gmra.mxu0 %v443
        %v725 = vpop.f32.mrf.mxu0
        %v726 = vadd.f32 %v323, %v725
        %v727 = vpop.f32.mrf.mxu0
        %v728 = vpop.f32.mrf.mxu0
        %v729 = vadd.f32 %v323, %v728
        %v730 = vpop.f32.mrf.mxu0
        %731 = vmatprep.mubr.bf16.mxu0 %v588
        %732 = vmatmul.mubr.bf16.gmra.mxu0 %v445
        %v733 = vpop.f32.mrf.mxu0
        %v734 = vadd.f32 %v323, %v733
        %v735 = vpop.f32.mrf.mxu0
        %v736 = vpop.f32.mrf.mxu0
        %v737 = vadd.f32 %v323, %v736
        %v738 = vpop.f32.mrf.mxu0
        %739 = vmatprep.mubr.bf16.mxu0 %v591
        %740 = vmatmul.mubr.bf16.gmra.mxu0 %v447
        %v741 = vpop.f32.mrf.mxu0
        %v742 = vadd.f32 %v323, %v741
        %v743 = vpop.f32.mrf.mxu0
        %v744 = vpop.f32.mrf.mxu0
        %v745 = vadd.f32 %v323, %v744
        %v746 = vpop.f32.mrf.mxu0
        %747 = vmatprep.mubr.bf16.mxu0 %v594
        %748 = vmatmul.mubr.bf16.gmra.mxu0 %v449
        %v749 = vpop.f32.mrf.mxu0
        %v750 = vadd.f32 %v323, %v749
        %v751 = vpop.f32.mrf.mxu0
        %v752 = vpop.f32.mrf.mxu0
        %v753 = vadd.f32 %v323, %v752
        %v754 = vpop.f32.mrf.mxu0
        %755 = vmatprep.mubr.bf16.mxu0 %v597
        %756 = vmatmul.mubr.bf16.gmra.mxu0 %v451
        %v757 = vpop.f32.mrf.mxu0
        %v758 = vadd.f32 %v323, %v757
        %v759 = vpop.f32.mrf.mxu0
        %v760 = vpop.f32.mrf.mxu0
        %v761 = vadd.f32 %v323, %v760
        %v762 = vpop.f32.mrf.mxu0
        %763 = vdwg.mxu0
        %v764 = vmax.f32 %v638, 0.0
        %v765 = vmax.f32 %v641, 0.0
        %v766 = vmax.f32 %v646, 0.0
        %v767 = vmax.f32 %v649, 0.0
        %v768 = vmax.f32 %v654, 0.0
        %v769 = vmax.f32 %v657, 0.0
        %v770 = vmax.f32 %v662, 0.0
        %v771 = vmax.f32 %v665, 0.0
        %v772 = vmax.f32 %v670, 0.0
        %v773 = vmax.f32 %v673, 0.0
        %v774 = vmax.f32 %v678, 0.0
        %v775 = vmax.f32 %v681, 0.0
        %v776 = vmax.f32 %v686, 0.0
        %v777 = vmax.f32 %v689, 0.0
        %v778 = vmax.f32 %v694, 0.0
        %v779 = vmax.f32 %v697, 0.0
        %v780 = vmax.f32 %v702, 0.0
        %v781 = vmax.f32 %v705, 0.0
        %v782 = vmax.f32 %v710, 0.0
        %v783 = vmax.f32 %v713, 0.0
        %v784 = vmax.f32 %v718, 0.0
        %v785 = vmax.f32 %v721, 0.0
        %v786 = vmax.f32 %v726, 0.0
        %v787 = vmax.f32 %v729, 0.0
        %v788 = vmax.f32 %v734, 0.0
        %v789 = vmax.f32 %v737, 0.0
        %v790 = vmax.f32 %v742, 0.0
        %v791 = vmax.f32 %v745, 0.0
        %v792 = vmax.f32 %v750, 0.0
        %v793 = vmax.f32 %v753, 0.0
        %v794 = vmax.f32 %v758, 0.0
        %v795 = vmax.f32 %v761, 0.0
        %v796 = vld [vmem:[#allocation2] sm:$0x1]
        %v797 = vadd.f32 %v764, %v765
        %v798 = vadd.f32 %v797, %v766
        %v799 = vadd.f32 %v798, %v767
        %v800 = vadd.f32 %v799, %v768
        %v801 = vadd.f32 %v800, %v769
        %v802 = vadd.f32 %v801, %v770
        %v803 = vadd.f32 %v802, %v771
        %v804 = vadd.f32 %v803, %v772
        %v805 = vadd.f32 %v804, %v773
        %v806 = vadd.f32 %v805, %v774
        %v807 = vadd.f32 %v806, %v775
        %v808 = vadd.f32 %v807, %v776
        %v809 = vadd.f32 %v808, %v777
        %v810 = vadd.f32 %v809, %v778
        %v811 = vadd.f32 %v810, %v779
        %v812 = vadd.f32 %v811, %v780
        %v813 = vadd.f32 %v812, %v781
        %v814 = vadd.f32 %v813, %v782
        %v815 = vadd.f32 %v814, %v783
        %v816 = vadd.f32 %v815, %v784
        %v817 = vadd.f32 %v816, %v785
        %v818 = vadd.f32 %v817, %v786
        %v819 = vadd.f32 %v818, %v787
        %v820 = vadd.f32 %v819, %v788
        %v821 = vadd.f32 %v820, %v789
        %v822 = vadd.f32 %v821, %v790
        %v823 = vadd.f32 %v822, %v791
        %v824 = vadd.f32 %v823, %v792
        %v825 = vadd.f32 %v824, %v793
        %v826 = vadd.f32 %v825, %v794
        %v827 = vadd.f32 %v826, %v795
        %v828 = vrot.slane %v827, 4
        %v829 = vadd.f32 %v827, %v828
        %v830 = vrot.slane %v829, 2
        %v831 = vadd.f32 %v829, %v830
        %v832 = vrot.slane %v831, 1
        %v833 = vadd.f32 %v831, %v832
        %v834 = vadd.f32 %v796, %v833
        %835 = vst [vmem:[#allocation2] sm:$0x1] %v834
        // Predicated region
        $region45: #{video_encoder_forward.3} parent=39 // pred_check
          %p836 = pneg %p254
        $region46: #{video_encoder_forward.3} parent=39 // pred_check_branch
          %838 = sbr.rel (%p836) target = $region48
        $region47: #{video_encoder_forward.3} parent=39 // pred_region
          %v839 = vld [vmem:[#allocation2] sm:$0x1]
          %v840 = vmul.f32 %v839, 0.00390625
          %v841 = vld [vmem:[%s3] sm:$0xff]
          %v842 = vld [vmem:[%s3 + $0x8] sm:$0xff]
          %v843 = vld [vmem:[%s3 + $0x10] sm:$0xff]
          %v844 = vld [vmem:[%s3 + $0x18] sm:$0xff]
          %v845 = vld [vmem:[%s3 + $0x20] sm:$0xff]
          %v846 = vld [vmem:[%s3 + $0x28] sm:$0xff]
          %v847 = vld [vmem:[%s3 + $0x30] sm:$0xff]
          %v848 = vld [vmem:[%s3 + $0x38] sm:$0xff]
          %v849 = vld [vmem:[%s3 + $0x40] sm:$0xff]
          %v850 = vld [vmem:[%s3 + $0x48] sm:$0xff]
          %v851 = vld [vmem:[%s3 + $0x50] sm:$0xff]
          %v852 = vld [vmem:[%s3 + $0x58] sm:$0xff]
          %v853 = vld [vmem:[%s3 + $0x60] sm:$0xff]
          %v854 = vld [vmem:[%s3 + $0x68] sm:$0xff]
          %v855 = vld [vmem:[%s3 + $0x70] sm:$0xff]
          %v856 = vld [vmem:[%s3 + $0x78] sm:$0xff]
          %v857 = vld [vmem:[%s4] sm:$0x1]
          %858 = vmatprep.subr.mxu0 0.0
          %859 = vmatpush1.msra.mxu0 %v856
          %860 = vmatprep.subr.mxu0 0.0
          %861 = vmatpush1.msra.mxu0 %v855
          %862 = vmatprep.subr.mxu0 0.0
          %863 = vmatpush1.msra.mxu0 %v854
          %864 = vmatprep.subr.mxu0 0.0
          %865 = vmatpush1.msra.mxu0 %v853
          %866 = vmatprep.subr.mxu0 0.0
          %867 = vmatpush1.msra.mxu0 %v852
          %868 = vmatprep.subr.mxu0 0.0
          %869 = vmatpush1.msra.mxu0 %v851
          %870 = vmatprep.subr.mxu0 0.0
          %871 = vmatpush1.msra.mxu0 %v850
          %872 = vmatprep.subr.mxu0 0.0
          %873 = vmatpush1.msra.mxu0 %v849
          %874 = vmatprep.subr.mxu0 0.0
          %875 = vmatpush1.msra.mxu0 %v848
          %876 = vmatprep.subr.mxu0 0.0
          %877 = vmatpush1.msra.mxu0 %v847
          %878 = vmatprep.subr.mxu0 0.0
          %879 = vmatpush1.msra.mxu0 %v846
          %880 = vmatprep.subr.mxu0 0.0
          %881 = vmatpush1.msra.mxu0 %v845
          %882 = vmatprep.subr.mxu0 0.0
          %883 = vmatpush1.msra.mxu0 %v844
          %884 = vmatprep.subr.mxu0 0.0
          %885 = vmatpush1.msra.mxu0 %v843
          %886 = vmatprep.subr.mxu0 0.0
          %887 = vmatpush1.msra.mxu0 %v842
          %888 = vmatprep.subr.mxu0 0.0
          %889 = vmatpush1.msra.mxu0 %v841
          %890 = vmatprep.subr.mxu0 0.0
          %891 = vmatpush2.msra.mxu0 0.0
          %892 = vmatprep.subr.mxu0 0.0
          %893 = vmatpush2.msra.mxu0 0.0
          %894 = vmatprep.subr.mxu0 0.0
          %895 = vmatpush2.msra.mxu0 0.0
          %896 = vmatprep.subr.mxu0 0.0
          %897 = vmatpush2.msra.mxu0 0.0
          %898 = vmatprep.subr.mxu0 0.0
          %899 = vmatpush2.msra.mxu0 0.0
          %900 = vmatprep.subr.mxu0 0.0
          %901 = vmatpush2.msra.mxu0 0.0
          %902 = vmatprep.subr.mxu0 0.0
          %903 = vmatpush2.msra.mxu0 0.0
          %904 = vmatprep.subr.mxu0 0.0
          %905 = vmatpush2.msra.mxu0 0.0
          %906 = vmatprep.subr.mxu0 0.0
          %907 = vmatpush2.msra.mxu0 0.0
          %908 = vmatprep.subr.mxu0 0.0
          %909 = vmatpush2.msra.mxu0 0.0
          %910 = vmatprep.subr.mxu0 0.0
          %911 = vmatpush2.msra.mxu0 0.0
          %912 = vmatprep.subr.mxu0 0.0
          %913 = vmatpush2.msra.mxu0 0.0
          %914 = vmatprep.subr.mxu0 0.0
          %915 = vmatpush2.msra.mxu0 0.0
          %916 = vmatprep.subr.mxu0 0.0
          %917 = vmatpush2.msra.mxu0 0.0
          %918 = vmatprep.subr.mxu0 0.0
          %919 = vmatpush2.msra.mxu0 0.0
          %920 = vmatprep.subr.mxu0 0.0
          %921 = vmatpush2.msra.mxu0 0.0
          %922 = vmatprep.mubr.f32.mxu0 0.0
          %923 = vmatmul.mubr.f32.gmra.mxu0 %v840
          %v924 = vpop.f32.mrf.mxu0
          %v925 = vadd.f32 %v857, %v924
          %v926 = vpop.f32.mrf.mxu0
          %927 = vdwg.mxu0
          %v928 = vmax.f32 %v925, 0.0
          %929 = vst [vmem:[%s241] sm:$0x1] %v928
        $region48: #{video_encoder_forward.3} parent=39 // pred_fallthru
          _
        %s930 = sand.u32 %s151, 1
        %s931 = scalar_lea.sflag [#allocation4], %s930
        %s932 = sand.u32 %s151, 1
        %s933 = scalar_lea.vmem [#allocation3], %s932
        // Predicated region
        $region49: #{video_encoder_forward.3} parent=39 // pred_check
          %p934 = pneg %p161
        $region50: #{video_encoder_forward.3} parent=39 // pred_check_branch
          %936 = sbr.rel (%p934) target = $region52
        $region51: #{video_encoder_forward.3} parent=39 // pred_region
          %s938 = ssub.s32 16, 16
          %939 = vsyncadd %s931, %s938
          %s940 = smul.addr %s23, 16
          %s941 = scalar_lea.hbm %s5, %s940
          %s943 = sshll.u32 %s933, 4
          %s944 = int_to_ptr.vmem [resolvable:$true] %s943
          %946 = dma.vmem_to_hbm [thread:$0]  %s944, 16, %s941, %s931
        $region52: #{video_encoder_forward.3} parent=39 // pred_fallthru
          _
      $region40: #{video_encoder_forward.3} parent=5 // pred_fallthru
        _
      %p947 = scmp.le.s32.totalorder 2, %s14
      // Predicated region
      $region53: #{video_encoder_forward.3} parent=5 // pred_check
        %p948 = pneg %p947
      $region54: #{video_encoder_forward.3} parent=5 // pred_check_branch
        %950 = sbr.rel (%p948) target = $region56
      $region55: #{video_encoder_forward.3} parent=5 // pred_region
        %s951 = ssub.s32 %s14, 2
        // Predicated region
        $region57: #{video_encoder_forward.3} parent=55 // pred_check
          %p952 = pneg %p167
        $region58: #{video_encoder_forward.3} parent=55 // pred_check_branch
          %954 = sbr.rel (%p952) target = $region60
        $region59: #{video_encoder_forward.3} parent=55 // pred_region
          %s955 = sand.u32 %s152, 1
          %s956 = scalar_lea.sflag [#allocation4], %s955
          %s957 = sand.u32 %s152, 1
          %s958 = scalar_lea.vmem [#allocation3], %s957
          %959 = dma.done %s956, 16
        $region60: #{video_encoder_forward.3} parent=55 // pred_fallthru
          _
      $region56: #{video_encoder_forward.3} parent=5 // pred_fallthru
        _
    $region6: #{video_encoder_forward.3} parent=1 // loop_footer
      %s18 = sadd.s32 1, %s14
    $region7: #{video_encoder_forward.3} parent=1 // loop_footer_branch
      %13 = sbr.rel target = $region3
    $region8: #{video_encoder_forward.3} parent=1 // loop_exit
      _
    %960 = vsyncpa [#allocation4], 1
    %s961 = scalar_lea.sflag [#allocation4], 1
    %962 = vsyncpa %s961, 1

</llo_original>
